<compile_context>
chip_gen: v5e
topology: v5e:2x2
jax: 0.10.0
libtpu: 0.0.40
codegen_flags: <defaults>
</compile_context>

<pallas_src>
import functools
import math

import jax
import jax.numpy as jnp
import numpy as np
from jax import lax
from jax.experimental import pallas as pl
from jax.experimental.pallas import tpu as pltpu

# ---- problem sizes (small, consistent with the module) ----------------------
B = 2        # batch
N = 16       # query tokens (flattened spatial)
M = 8        # context tokens (text sequence)
D = 32       # model dim (query_dim)
DC = 24      # context_dim
H = 4        # n_heads
DH = 8       # d_head
INNER = H * DH          # 32
FF = 4 * D              # 128 (FeedForward inner dim), lane-tile aligned
SCALE = DH ** (-0.5)
EPS = 1e-5
_INV_SQRT2 = 1.0 / math.sqrt(2.0)
_NEG_INF = -1.0e30      # key-padding bias; exp() underflows to exactly 0

# Production knobs (default off so the parity test below matches PyTorch's
# exact softmax / erf-GELU / f32 matmuls within 2e-4):
_APPROX_SOFTMAX_RECIP = False   # True -> EUP vrcp for the softmax denominator
_TANH_GELU = False              # True -> tanh-GELU on the EUP
_MM_DTYPE = jnp.float32         # jnp.bfloat16 -> bf16 MXU operands, f32 accum


def _transformer_block_kernel(
    x_ref, ctx_ref,
    ln1_w, ln1_b, wqkv1, wo1, bo1,
    ln2_w, ln2_b, wq2, wkv2, wo2, bo2,
    ln3_w, ln3_b, wp, bp, wof, bof,
    out_ref, *, m_valid,
):
    """One batch element per grid step: x (N, D), ctx (M_pad, DC)."""
    f32 = jnp.float32
    x = x_ref[...]
    ctx = ctx_ref[...]

    def mm(a, b):
        # MXU matmul with f32 accumulation; operands optionally bf16.
        return jnp.dot(a.astype(_MM_DTYPE), b.astype(_MM_DTYPE),
                       preferred_element_type=f32)

    def layer_norm(h, w_ref, b_ref):
        mu = jnp.mean(h, axis=-1, keepdims=True)
        var = jnp.mean((h - mu) * (h - mu), axis=-1, keepdims=True)
        return (h - mu) * lax.rsqrt(var + EPS) * w_ref[...] + b_ref[...]

    def attend(q, kv, wo_ref, bo_ref, kv_valid):
        # q: (Nq, H*DH) fused query projection; kv: (Mk, 2*H*DH) = [K | V].
        nq, mk = q.shape[0], kv.shape[0]
        # Per-head QK^T, stacked along sublanes -> a single softmax over all heads.
        sim = jnp.concatenate(
            [jnp.einsum("nk,mk->nm",
                        q[:, h * DH:(h + 1) * DH].astype(_MM_DTYPE),
                        kv[:, h * DH:(h + 1) * DH].astype(_MM_DTYPE),
                        preferred_element_type=f32)
             for h in range(H)], axis=0) * SCALE               # (H*Nq, Mk)
        if kv_valid < mk:    # static key-padding mask (padded context tokens)
            col = lax.broadcasted_iota(jnp.int32, (1, mk), 1)
            sim = sim + jnp.where(col < kv_valid, 0.0, _NEG_INF).astype(f32)
        sim = sim - jnp.max(sim, axis=-1, keepdims=True)
        p = jnp.exp(sim)
        p = p * pl.reciprocal(jnp.sum(p, axis=-1, keepdims=True),
                              approx=_APPROX_SOFTMAX_RECIP)
        # Per-head PV, concatenated back to (Nq, H*DH): the head reduction is
        # folded into ONE (Nq, H*DH) x (H*DH, D) output-projection matmul.
        o = jnp.concatenate(
            [mm(p[h * nq:(h + 1) * nq, :],
                kv[:, INNER + h * DH:INNER + (h + 1) * DH])
             for h in range(H)], axis=1)
        return mm(o, wo_ref[...]) + bo_ref[...]

    # --- attn1: self-attention (single fused QKV projection matmul) ---
    h1 = layer_norm(x, ln1_w, ln1_b)
    qkv = mm(h1, wqkv1[...])                                   # (N, 3*INNER)
    x = attend(qkv[:, :INNER], qkv[:, INNER:], wo1, bo1, x.shape[0]) + x

    # --- attn2: cross-attention (fused KV projection, lane-padded keys) ---
    h2 = layer_norm(x, ln2_w, ln2_b)
    q2 = mm(h2, wq2[...])                                      # (N, INNER)
    kv2 = mm(ctx, wkv2[...])                                   # (M_pad, 2*INNER)
    x = attend(q2, kv2, wo2, bo2, m_valid) + x

    # --- feed-forward: GEGLU, single (D, 2*FF) in-projection matmul ---
    h3 = layer_norm(x, ln3_w, ln3_b)
    proj = mm(h3, wp[...]) + bp[...]                           # (N, 2*FF)
    a, g = proj[:, :FF], proj[:, FF:]                          # lane-tile-aligned slices
    if _TANH_GELU:
        gate = jax.nn.gelu(g, approximate=True)
    else:
        gate = 0.5 * g * (1.0 + lax.erf(g * _INV_SQRT2))       # exact GELU (torch)
    ffo = mm(a * gate, wof[...]) + bof[...]

    out_ref[...] = (ffo + x).astype(out_ref.dtype)


def _full_spec(arr):
    nd = arr.ndim
    # TODO(synk): single-buffer these grid-invariant weight blocks
    # (pipeline_mode=pl.Buffered(1)) or DMA them once into scratch; at real
    # weight sizes that halves their VMEM footprint (matters most on v7x).
    return pl.BlockSpec(arr.shape, lambda i, _nd=nd: (0,) * _nd)


def basic_transformer_block(x, context, params):
    """x: (B, N, D) f32, context: (B, M, DC) f32, params: dict of arrays."""
    Bx, Nx, Dx = x.shape
    _, Mx, DCx = context.shape
    mp = -(-Mx // 128) * 128        # pad context tokens to a lane-tile multiple

    p = params
    cast_w = (lambda w: w.astype(_MM_DTYPE)) if _MM_DTYPE != jnp.float32 else (lambda w: w)
    # Fused, lane-dense projection weights (one matmul per attention projection).
    wqkv1 = cast_w(jnp.concatenate([p["wq1"], p["wk1"], p["wv1"]], axis=1))  # (D, 3*INNER)
    wkv2 = cast_w(jnp.concatenate([p["wk2"], p["wv2"]], axis=1))             # (DC, 2*INNER)
    weights = [
        p["ln1_w"], p["ln1_b"], wqkv1, cast_w(p["wo1"]), p["bo1"],
        p["ln2_w"], p["ln2_b"], cast_w(p["wq2"]), wkv2, cast_w(p["wo2"]), p["bo2"],
        p["ln3_w"], p["ln3_b"], cast_w(p["wp"]), p["bp"], cast_w(p["wof"]), p["bof"],
    ]

    x2 = x.reshape(Bx * Nx, Dx)     # free host-side relabeling of major dims
    ctx2 = jnp.pad(context, ((0, 0), (0, mp - Mx), (0, 0))).reshape(Bx * mp, DCx)

    # TODO(synk): at production ModelScope shapes, add a query-token grid axis
    # (tq ~ 128-512, halved on v7x for its 64 MiB VMEM) with a flash-style
    # online softmax over K/V blocks instead of the whole-sequence block here.
    in_specs = [
        pl.BlockSpec((Nx, Dx), lambda i: (i, 0)),
        pl.BlockSpec((mp, DCx), lambda i: (i, 0)),
    ] + [_full_spec(w) for w in weights]
    out_spec = pl.BlockSpec((Nx, Dx), lambda i: (i, 0))

    out = pl.pallas_call(
        functools.partial(_transformer_block_kernel, m_valid=Mx),
        out_shape=jax.ShapeDtypeStruct((Bx * Nx, Dx), x.dtype),
        grid_spec=pltpu.PrefetchScalarGridSpec(
            num_scalar_prefetch=0,
            grid=(Bx,),
            in_specs=in_specs,
            out_specs=out_spec,
        ),
        # TODO(synk): on v7x switch the batch axis to pltpu.CORE_PARALLEL (or
        # pl.core_map) if plain "parallel" does not shard across the 2 cores.
        compiler_params=pltpu.CompilerParams(
            dimension_semantics=("parallel",)),
    )(x2, ctx2, *weights)
    return out.reshape(Bx, Nx, Dx)


# ---- pure-JAX reference for validation --------------------------------------
def _reference(x, context, p):
    def ln(h, w, b):
        mu = jnp.mean(h, axis=-1, keepdims=True)
        var = jnp.mean((h - mu) ** 2, axis=-1, keepdims=True)
        return (h - mu) / jnp.sqrt(var + EPS) * w[0] + b[0]

    def mha(q_in, kv_in, wq, wk, wv, wo, bo):
        q = q_in @ wq
        k = kv_in @ wk
        v = kv_in @ wv

        def split(t):
            return t.reshape(t.shape[0], t.shape[1], H, DH).transpose(0, 2, 1, 3)

        qh, kh, vh = split(q), split(k), split(v)
        sim = jnp.einsum("bhid,bhjd->bhij", qh, kh) * SCALE
        p_ = jax.nn.softmax(sim, axis=-1)
        o = jnp.einsum("bhij,bhjd->bhid", p_, vh)
        o = o.transpose(0, 2, 1, 3).reshape(o.shape[0], -1, INNER)
        return o @ wo + bo[0]

    h1 = ln(x, p["ln1_w"], p["ln1_b"])
    x = mha(h1, h1, p["wq1"], p["wk1"], p["wv1"], p["wo1"], p["bo1"]) + x
    h2 = ln(x, p["ln2_w"], p["ln2_b"])
    x = mha(h2, context, p["wq2"], p["wk2"], p["wv2"], p["wo2"], p["bo2"]) + x
    h3 = ln(x, p["ln3_w"], p["ln3_b"])
    proj = h3 @ p["wp"] + p["bp"][0]
    a, gate = proj[..., :FF], proj[..., FF:]
    g = a * (0.5 * gate * (1.0 + lax.erf(gate / jnp.sqrt(2.0))))
    return g @ p["wof"] + p["bof"][0] + x


def _init_params(key):
    ks = jax.random.split(key, 16)
    s = 0.08
    p = {
        # norm1 / attn1 (self, context_dim=None -> DIM)
        "ln1_w": jnp.ones((1, D), jnp.float32),
        "ln1_b": jnp.zeros((1, D), jnp.float32),
        "wq1": s * jax.random.normal(ks[0], (D, INNER), jnp.float32),
        "wk1": s * jax.random.normal(ks[1], (D, INNER), jnp.float32),
        "wv1": s * jax.random.normal(ks[2], (D, INNER), jnp.float32),
        "wo1": s * jax.random.normal(ks[3], (INNER, D), jnp.float32),
        "bo1": s * jax.random.normal(ks[4], (1, D), jnp.float32),
        # norm2 / attn2 (cross, context_dim=DC)
        "ln2_w": jnp.ones((1, D), jnp.float32),
        "ln2_b": jnp.zeros((1, D), jnp.float32),
        "wq2": s * jax.random.normal(ks[5], (D, INNER), jnp.float32),
        "wk2": s * jax.random.normal(ks[6], (DC, INNER), jnp.float32),
        "wv2": s * jax.random.normal(ks[7], (DC, INNER), jnp.float32),
        "wo2": s * jax.random.normal(ks[8], (INNER, D), jnp.float32),
        "bo2": s * jax.random.normal(ks[9], (1, D), jnp.float32),
        # norm3 / GEGLU feed-forward
        "ln3_w": jnp.ones((1, D), jnp.float32),
        "ln3_b": jnp.zeros((1, D), jnp.float32),
        "wp": s * jax.random.normal(ks[10], (D, 2 * FF), jnp.float32),
        "bp": s * jax.random.normal(ks[11], (1, 2 * FF), jnp.float32),
        "wof": s * jax.random.normal(ks[12], (FF, D), jnp.float32),
        "bof": s * jax.random.normal(ks[13], (1, D), jnp.float32),
    }
    return p


if __name__ == "__main__":
    key = jax.random.PRNGKey(0)
    kx, kc, kp = jax.random.split(key, 3)
    x = jax.random.normal(kx, (B, N, D), jnp.float32)
    context = jax.random.normal(kc, (B, M, DC), jnp.float32)
    params = _init_params(kp)

    ref = _reference(x, context, params)
    out = jax.block_until_ready(basic_transformer_block(x, context, params))

    np.testing.assert_allclose(np.asarray(out), np.asarray(ref),
                               atol=2e-4, rtol=2e-4)
    assert out.shape == (B, N, D) and np.isfinite(np.asarray(out)).all()
    print("KERNEL_OK")
</pallas_src>

<mosaic_0001>
module attributes {stable_mosaic.version = 11 : i64} {
  func.func @_transformer_block_kernel(%arg0: i32, %arg1: memref<16x32xf32, #tpu.memory_space<vmem>>, %arg2: memref<128x24xf32, #tpu.memory_space<vmem>>, %arg3: memref<1x32xf32, #tpu.memory_space<vmem>>, %arg4: memref<1x32xf32, #tpu.memory_space<vmem>>, %arg5: memref<32x96xf32, #tpu.memory_space<vmem>>, %arg6: memref<32x32xf32, #tpu.memory_space<vmem>>, %arg7: memref<1x32xf32, #tpu.memory_space<vmem>>, %arg8: memref<1x32xf32, #tpu.memory_space<vmem>>, %arg9: memref<1x32xf32, #tpu.memory_space<vmem>>, %arg10: memref<32x32xf32, #tpu.memory_space<vmem>>, %arg11: memref<24x64xf32, #tpu.memory_space<vmem>>, %arg12: memref<32x32xf32, #tpu.memory_space<vmem>>, %arg13: memref<1x32xf32, #tpu.memory_space<vmem>>, %arg14: memref<1x32xf32, #tpu.memory_space<vmem>>, %arg15: memref<1x32xf32, #tpu.memory_space<vmem>>, %arg16: memref<32x256xf32, #tpu.memory_space<vmem>>, %arg17: memref<1x256xf32, #tpu.memory_space<vmem>>, %arg18: memref<128x32xf32, #tpu.memory_space<vmem>>, %arg19: memref<1x32xf32, #tpu.memory_space<vmem>>, %arg20: memref<16x32xf32, #tpu.memory_space<vmem>>) attributes {dimension_semantics = [#tpu.dimension_semantics<parallel>], iteration_bounds = array<i64: 2>, scalar_prefetch = 0 : i64, scratch_operands = 0 : i64, tpu.core_type = #tpu.core_type<tc>, window_params = [{transform_indices = @transform_0, window_bounds = array<i64: 16, 32>}, {transform_indices = @transform_1, window_bounds = array<i64: 128, 24>}, {pipeline_mode = #tpu.pipeline_mode<synchronous>, transform_indices = @transform_2, window_bounds = array<i64: 1, 32>}, {pipeline_mode = #tpu.pipeline_mode<synchronous>, transform_indices = @transform_3, window_bounds = array<i64: 1, 32>}, {pipeline_mode = #tpu.pipeline_mode<synchronous>, transform_indices = @transform_4, window_bounds = array<i64: 32, 96>}, {pipeline_mode = #tpu.pipeline_mode<synchronous>, transform_indices = @transform_5, window_bounds = array<i64: 32, 32>}, {pipeline_mode = #tpu.pipeline_mode<synchronous>, transform_indices = @transform_6, window_bounds = array<i64: 1, 32>}, {pipeline_mode = #tpu.pipeline_mode<synchronous>, transform_indices = @transform_7, window_bounds = array<i64: 1, 32>}, {pipeline_mode = #tpu.pipeline_mode<synchronous>, transform_indices = @transform_8, window_bounds = array<i64: 1, 32>}, {pipeline_mode = #tpu.pipeline_mode<synchronous>, transform_indices = @transform_9, window_bounds = array<i64: 32, 32>}, {pipeline_mode = #tpu.pipeline_mode<synchronous>, transform_indices = @transform_10, window_bounds = array<i64: 24, 64>}, {pipeline_mode = #tpu.pipeline_mode<synchronous>, transform_indices = @transform_11, window_bounds = array<i64: 32, 32>}, {pipeline_mode = #tpu.pipeline_mode<synchronous>, transform_indices = @transform_12, window_bounds = array<i64: 1, 32>}, {pipeline_mode = #tpu.pipeline_mode<synchronous>, transform_indices = @transform_13, window_bounds = array<i64: 1, 32>}, {pipeline_mode = #tpu.pipeline_mode<synchronous>, transform_indices = @transform_14, window_bounds = array<i64: 1, 32>}, {pipeline_mode = #tpu.pipeline_mode<synchronous>, transform_indices = @transform_15, window_bounds = array<i64: 32, 256>}, {pipeline_mode = #tpu.pipeline_mode<synchronous>, transform_indices = @transform_16, window_bounds = array<i64: 1, 256>}, {pipeline_mode = #tpu.pipeline_mode<synchronous>, transform_indices = @transform_17, window_bounds = array<i64: 128, 32>}, {pipeline_mode = #tpu.pipeline_mode<synchronous>, transform_indices = @transform_18, window_bounds = array<i64: 1, 32>}, {transform_indices = @transform_19, window_bounds = array<i64: 16, 32>}]} {
    %c0 = arith.constant 0 : index
    %c0_0 = arith.constant 0 : index
    %0 = vector.load %arg1[%c0, %c0_0] : memref<16x32xf32, #tpu.memory_space<vmem>>, vector<16x32xf32>
    %c0_1 = arith.constant 0 : index
    %c0_2 = arith.constant 0 : index
    %1 = vector.load %arg2[%c0_1, %c0_2] : memref<128x24xf32, #tpu.memory_space<vmem>>, vector<128x24xf32>
    %cst = arith.constant dense<0.000000e+00> : vector<16xf32>
    %2 = vector.multi_reduction <add>, %0, %cst [1] : vector<16x32xf32> to vector<16xf32>
    %3 = vector.shape_cast %2 : vector<16xf32> to vector<16x1xf32>
    %cst_3 = arith.constant 3.200000e+01 : f32
    %4 = vector.broadcast %cst_3 : f32 to vector<16x1xf32>
    %5 = arith.divf %3, %4 : vector<16x1xf32>
    %6 = vector.broadcast %5 : vector<16x1xf32> to vector<16x32xf32>
    %7 = arith.subf %0, %6 : vector<16x32xf32>
    %8 = vector.broadcast %5 : vector<16x1xf32> to vector<16x32xf32>
    %9 = arith.subf %0, %8 : vector<16x32xf32>
    %10 = arith.mulf %7, %9 : vector<16x32xf32>
    %cst_4 = arith.constant dense<0.000000e+00> : vector<16xf32>
    %11 = vector.multi_reduction <add>, %10, %cst_4 [1] : vector<16x32xf32> to vector<16xf32>
    %12 = vector.shape_cast %11 : vector<16xf32> to vector<16x1xf32>
    %cst_5 = arith.constant 3.200000e+01 : f32
    %13 = vector.broadcast %cst_5 : f32 to vector<16x1xf32>
    %14 = arith.divf %12, %13 : vector<16x1xf32>
    %15 = vector.broadcast %5 : vector<16x1xf32> to vector<16x32xf32>
    %16 = arith.subf %0, %15 : vector<16x32xf32>
    %cst_6 = arith.constant 9.99999974E-6 : f32
    %17 = vector.broadcast %cst_6 : f32 to vector<16x1xf32>
    %18 = arith.addf %14, %17 : vector<16x1xf32>
    %19 = math.rsqrt %18 : vector<16x1xf32>
    %20 = vector.broadcast %19 : vector<16x1xf32> to vector<16x32xf32>
    %21 = arith.mulf %16, %20 : vector<16x32xf32>
    %c0_7 = arith.constant 0 : index
    %c0_8 = arith.constant 0 : index
    %22 = vector.load %arg3[%c0_7, %c0_8] : memref<1x32xf32, #tpu.memory_space<vmem>>, vector<1x32xf32>
    %23 = vector.broadcast %22 : vector<1x32xf32> to vector<16x32xf32>
    %24 = arith.mulf %21, %23 : vector<16x32xf32>
    %c0_9 = arith.constant 0 : index
    %c0_10 = arith.constant 0 : index
    %25 = vector.load %arg4[%c0_9, %c0_10] : memref<1x32xf32, #tpu.memory_space<vmem>>, vector<1x32xf32>
    %26 = vector.broadcast %25 : vector<1x32xf32> to vector<16x32xf32>
    %27 = arith.addf %24, %26 : vector<16x32xf32>
    %c0_11 = arith.constant 0 : index
    %c0_12 = arith.constant 0 : index
    %28 = vector.load %arg5[%c0_11, %c0_12] : memref<32x96xf32, #tpu.memory_space<vmem>>, vector<32x96xf32>
    %cst_13 = arith.constant dense<0.000000e+00> : vector<16x96xf32>
    %29 = tpu.matmul %27, %28, %cst_13 {dimension_numbers = #tpu.dot_dimension_numbers<[1], [0], [0], [1], [0, 0, 1, 1], [], []>} : vector<16x32xf32>, vector<32x96xf32>, vector<16x96xf32> -> vector<16x96xf32>
    %30 = vector.extract_strided_slice %29 {offsets = [0, 0], sizes = [16, 32], strides = [1, 1]} : vector<16x96xf32> to vector<16x32xf32>
    %31 = vector.extract_strided_slice %29 {offsets = [0, 32], sizes = [16, 64], strides = [1, 1]} : vector<16x96xf32> to vector<16x64xf32>
    %32 = vector.extract_strided_slice %30 {offsets = [0, 0], sizes = [16, 8], strides = [1, 1]} : vector<16x32xf32> to vector<16x8xf32>
    %33 = vector.extract_strided_slice %31 {offsets = [0, 0], sizes = [16, 8], strides = [1, 1]} : vector<16x64xf32> to vector<16x8xf32>
    "tpu.trace_start"() <{level = 10 : i32, message = "nk,mk->nm"}> : () -> ()
    %cst_14 = arith.constant dense<0.000000e+00> : vector<16x16xf32>
    %34 = tpu.matmul %32, %33, %cst_14 {dimension_numbers = #tpu.dot_dimension_numbers<[1], [1], [0], [0], [0, 0, 1, 0], [], []>} : vector<16x8xf32>, vector<16x8xf32>, vector<16x16xf32> -> vector<16x16xf32>
    "tpu.trace_stop"() : () -> ()
    %35 = vector.extract_strided_slice %30 {offsets = [0, 8], sizes = [16, 8], strides = [1, 1]} : vector<16x32xf32> to vector<16x8xf32>
    %36 = vector.extract_strided_slice %31 {offsets = [0, 8], sizes = [16, 8], strides = [1, 1]} : vector<16x64xf32> to vector<16x8xf32>
    "tpu.trace_start"() <{level = 10 : i32, message = "nk,mk->nm"}> : () -> ()
    %cst_15 = arith.constant dense<0.000000e+00> : vector<16x16xf32>
    %37 = tpu.matmul %35, %36, %cst_15 {dimension_numbers = #tpu.dot_dimension_numbers<[1], [1], [0], [0], [0, 0, 1, 0], [], []>} : vector<16x8xf32>, vector<16x8xf32>, vector<16x16xf32> -> vector<16x16xf32>
    "tpu.trace_stop"() : () -> ()
    %38 = vector.extract_strided_slice %30 {offsets = [0, 16], sizes = [16, 8], strides = [1, 1]} : vector<16x32xf32> to vector<16x8xf32>
    %39 = vector.extract_strided_slice %31 {offsets = [0, 16], sizes = [16, 8], strides = [1, 1]} : vector<16x64xf32> to vector<16x8xf32>
    "tpu.trace_start"() <{level = 10 : i32, message = "nk,mk->nm"}> : () -> ()
    %cst_16 = arith.constant dense<0.000000e+00> : vector<16x16xf32>
    %40 = tpu.matmul %38, %39, %cst_16 {dimension_numbers = #tpu.dot_dimension_numbers<[1], [1], [0], [0], [0, 0, 1, 0], [], []>} : vector<16x8xf32>, vector<16x8xf32>, vector<16x16xf32> -> vector<16x16xf32>
    "tpu.trace_stop"() : () -> ()
    %41 = vector.extract_strided_slice %30 {offsets = [0, 24], sizes = [16, 8], strides = [1, 1]} : vector<16x32xf32> to vector<16x8xf32>
    %42 = vector.extract_strided_slice %31 {offsets = [0, 24], sizes = [16, 8], strides = [1, 1]} : vector<16x64xf32> to vector<16x8xf32>
    "tpu.trace_start"() <{level = 10 : i32, message = "nk,mk->nm"}> : () -> ()
    %cst_17 = arith.constant dense<0.000000e+00> : vector<16x16xf32>
    %43 = tpu.matmul %41, %42, %cst_17 {dimension_numbers = #tpu.dot_dimension_numbers<[1], [1], [0], [0], [0, 0, 1, 0], [], []>} : vector<16x8xf32>, vector<16x8xf32>, vector<16x16xf32> -> vector<16x16xf32>
    "tpu.trace_stop"() : () -> ()
    %44 = tpu.concatenate %34, %37, %40, %43 in 0 : vector<16x16xf32>, vector<16x16xf32>, vector<16x16xf32>, vector<16x16xf32> -> vector<64x16xf32>
    %cst_18 = arith.constant 0.353553385 : f32
    %45 = vector.broadcast %cst_18 : f32 to vector<64x16xf32>
    %46 = arith.mulf %44, %45 : vector<64x16xf32>
    %cst_19 = arith.constant dense<0xFF800000> : vector<64xf32>
    %47 = vector.multi_reduction <maximumf>, %46, %cst_19 [1] : vector<64x16xf32> to vector<64xf32>
    %48 = vector.shape_cast %47 : vector<64xf32> to vector<64x1xf32>
    %49 = vector.broadcast %48 : vector<64x1xf32> to vector<64x16xf32>
    %50 = arith.subf %46, %49 : vector<64x16xf32>
    %51 = math.exp %50 : vector<64x16xf32>
    %cst_20 = arith.constant dense<0.000000e+00> : vector<64xf32>
    %52 = vector.multi_reduction <add>, %51, %cst_20 [1] : vector<64x16xf32> to vector<64xf32>
    %53 = vector.shape_cast %52 : vector<64xf32> to vector<64x1xf32>
    %54 = tpu.reciprocal %53 : vector<64x1xf32> -> vector<64x1xf32>
    %55 = vector.broadcast %54 : vector<64x1xf32> to vector<64x16xf32>
    %56 = arith.mulf %51, %55 : vector<64x16xf32>
    %57 = vector.extract_strided_slice %56 {offsets = [0, 0], sizes = [16, 16], strides = [1, 1]} : vector<64x16xf32> to vector<16x16xf32>
    %58 = vector.extract_strided_slice %31 {offsets = [0, 32], sizes = [16, 8], strides = [1, 1]} : vector<16x64xf32> to vector<16x8xf32>
    %cst_21 = arith.constant dense<0.000000e+00> : vector<16x8xf32>
    %59 = tpu.matmul %57, %58, %cst_21 {dimension_numbers = #tpu.dot_dimension_numbers<[1], [0], [0], [1], [0, 0, 1, 1], [], []>} : vector<16x16xf32>, vector<16x8xf32>, vector<16x8xf32> -> vector<16x8xf32>
    %60 = vector.extract_strided_slice %56 {offsets = [16, 0], sizes = [16, 16], strides = [1, 1]} : vector<64x16xf32> to vector<16x16xf32>
    %61 = vector.extract_strided_slice %31 {offsets = [0, 40], sizes = [16, 8], strides = [1, 1]} : vector<16x64xf32> to vector<16x8xf32>
    %cst_22 = arith.constant dense<0.000000e+00> : vector<16x8xf32>
    %62 = tpu.matmul %60, %61, %cst_22 {dimension_numbers = #tpu.dot_dimension_numbers<[1], [0], [0], [1], [0, 0, 1, 1], [], []>} : vector<16x16xf32>, vector<16x8xf32>, vector<16x8xf32> -> vector<16x8xf32>
    %63 = vector.extract_strided_slice %56 {offsets = [32, 0], sizes = [16, 16], strides = [1, 1]} : vector<64x16xf32> to vector<16x16xf32>
    %64 = vector.extract_strided_slice %31 {offsets = [0, 48], sizes = [16, 8], strides = [1, 1]} : vector<16x64xf32> to vector<16x8xf32>
    %cst_23 = arith.constant dense<0.000000e+00> : vector<16x8xf32>
    %65 = tpu.matmul %63, %64, %cst_23 {dimension_numbers = #tpu.dot_dimension_numbers<[1], [0], [0], [1], [0, 0, 1, 1], [], []>} : vector<16x16xf32>, vector<16x8xf32>, vector<16x8xf32> -> vector<16x8xf32>
    %66 = vector.extract_strided_slice %56 {offsets = [48, 0], sizes = [16, 16], strides = [1, 1]} : vector<64x16xf32> to vector<16x16xf32>
    %67 = vector.extract_strided_slice %31 {offsets = [0, 56], sizes = [16, 8], strides = [1, 1]} : vector<16x64xf32> to vector<16x8xf32>
    %cst_24 = arith.constant dense<0.000000e+00> : vector<16x8xf32>
    %68 = tpu.matmul %66, %67, %cst_24 {dimension_numbers = #tpu.dot_dimension_numbers<[1], [0], [0], [1], [0, 0, 1, 1], [], []>} : vector<16x16xf32>, vector<16x8xf32>, vector<16x8xf32> -> vector<16x8xf32>
    %69 = tpu.concatenate %59, %62, %65, %68 in 1 : vector<16x8xf32>, vector<16x8xf32>, vector<16x8xf32>, vector<16x8xf32> -> vector<16x32xf32>
    %c0_25 = arith.constant 0 : index
    %c0_26 = arith.constant 0 : index
    %70 = vector.load %arg6[%c0_25, %c0_26] : memref<32x32xf32, #tpu.memory_space<vmem>>, vector<32x32xf32>
    %cst_27 = arith.constant dense<0.000000e+00> : vector<16x32xf32>
    %71 = tpu.matmul %69, %70, %cst_27 {dimension_numbers = #tpu.dot_dimension_numbers<[1], [0], [0], [1], [0, 0, 1, 1], [], []>} : vector<16x32xf32>, vector<32x32xf32>, vector<16x32xf32> -> vector<16x32xf32>
    %c0_28 = arith.constant 0 : index
    %c0_29 = arith.constant 0 : index
    %72 = vector.load %arg7[%c0_28, %c0_29] : memref<1x32xf32, #tpu.memory_space<vmem>>, vector<1x32xf32>
    %73 = vector.broadcast %72 : vector<1x32xf32> to vector<16x32xf32>
    %74 = arith.addf %71, %73 : vector<16x32xf32>
    %75 = arith.addf %74, %0 : vector<16x32xf32>
    %cst_30 = arith.constant dense<0.000000e+00> : vector<16xf32>
    %76 = vector.multi_reduction <add>, %75, %cst_30 [1] : vector<16x32xf32> to vector<16xf32>
    %77 = vector.shape_cast %76 : vector<16xf32> to vector<16x1xf32>
    %cst_31 = arith.constant 3.200000e+01 : f32
    %78 = vector.broadcast %cst_31 : f32 to vector<16x1xf32>
    %79 = arith.divf %77, %78 : vector<16x1xf32>
    %80 = vector.broadcast %79 : vector<16x1xf32> to vector<16x32xf32>
    %81 = arith.subf %75, %80 : vector<16x32xf32>
    %82 = vector.broadcast %79 : vector<16x1xf32> to vector<16x32xf32>
    %83 = arith.subf %75, %82 : vector<16x32xf32>
    %84 = arith.mulf %81, %83 : vector<16x32xf32>
    %cst_32 = arith.constant dense<0.000000e+00> : vector<16xf32>
    %85 = vector.multi_reduction <add>, %84, %cst_32 [1] : vector<16x32xf32> to vector<16xf32>
    %86 = vector.shape_cast %85 : vector<16xf32> to vector<16x1xf32>
    %cst_33 = arith.constant 3.200000e+01 : f32
    %87 = vector.broadcast %cst_33 : f32 to vector<16x1xf32>
    %88 = arith.divf %86, %87 : vector<16x1xf32>
    %89 = vector.broadcast %79 : vector<16x1xf32> to vector<16x32xf32>
    %90 = arith.subf %75, %89 : vector<16x32xf32>
    %cst_34 = arith.constant 9.99999974E-6 : f32
    %91 = vector.broadcast %cst_34 : f32 to vector<16x1xf32>
    %92 = arith.addf %88, %91 : vector<16x1xf32>
    %93 = math.rsqrt %92 : vector<16x1xf32>
    %94 = vector.broadcast %93 : vector<16x1xf32> to vector<16x32xf32>
    %95 = arith.mulf %90, %94 : vector<16x32xf32>
    %c0_35 = arith.constant 0 : index
    %c0_36 = arith.constant 0 : index
    %96 = vector.load %arg8[%c0_35, %c0_36] : memref<1x32xf32, #tpu.memory_space<vmem>>, vector<1x32xf32>
    %97 = vector.broadcast %96 : vector<1x32xf32> to vector<16x32xf32>
    %98 = arith.mulf %95, %97 : vector<16x32xf32>
    %c0_37 = arith.constant 0 : index
    %c0_38 = arith.constant 0 : index
    %99 = vector.load %arg9[%c0_37, %c0_38] : memref<1x32xf32, #tpu.memory_space<vmem>>, vector<1x32xf32>
    %100 = vector.broadcast %99 : vector<1x32xf32> to vector<16x32xf32>
    %101 = arith.addf %98, %100 : vector<16x32xf32>
    %c0_39 = arith.constant 0 : index
    %c0_40 = arith.constant 0 : index
    %102 = vector.load %arg10[%c0_39, %c0_40] : memref<32x32xf32, #tpu.memory_space<vmem>>, vector<32x32xf32>
    %cst_41 = arith.constant dense<0.000000e+00> : vector<16x32xf32>
    %103 = tpu.matmul %101, %102, %cst_41 {dimension_numbers = #tpu.dot_dimension_numbers<[1], [0], [0], [1], [0, 0, 1, 1], [], []>} : vector<16x32xf32>, vector<32x32xf32>, vector<16x32xf32> -> vector<16x32xf32>
    %c0_42 = arith.constant 0 : index
    %c0_43 = arith.constant 0 : index
    %104 = vector.load %arg11[%c0_42, %c0_43] : memref<24x64xf32, #tpu.memory_space<vmem>>, vector<24x64xf32>
    %cst_44 = arith.constant dense<0.000000e+00> : vector<128x64xf32>
    %105 = tpu.matmul %1, %104, %cst_44 {dimension_numbers = #tpu.dot_dimension_numbers<[1], [0], [0], [1], [0, 0, 1, 1], [], []>} : vector<128x24xf32>, vector<24x64xf32>, vector<128x64xf32> -> vector<128x64xf32>
    %106 = vector.extract_strided_slice %103 {offsets = [0, 0], sizes = [16, 8], strides = [1, 1]} : vector<16x32xf32> to vector<16x8xf32>
    %107 = vector.extract_strided_slice %105 {offsets = [0, 0], sizes = [128, 8], strides = [1, 1]} : vector<128x64xf32> to vector<128x8xf32>
    "tpu.trace_start"() <{level = 10 : i32, message = "nk,mk->nm"}> : () -> ()
    %cst_45 = arith.constant dense<0.000000e+00> : vector<16x128xf32>
    %108 = tpu.matmul %106, %107, %cst_45 {dimension_numbers = #tpu.dot_dimension_numbers<[1], [1], [0], [0], [0, 0, 1, 0], [], []>} : vector<16x8xf32>, vector<128x8xf32>, vector<16x128xf32> -> vector<16x128xf32>
    "tpu.trace_stop"() : () -> ()
    %109 = vector.extract_strided_slice %103 {offsets = [0, 8], sizes = [16, 8], strides = [1, 1]} : vector<16x32xf32> to vector<16x8xf32>
    %110 = vector.extract_strided_slice %105 {offsets = [0, 8], sizes = [128, 8], strides = [1, 1]} : vector<128x64xf32> to vector<128x8xf32>
    "tpu.trace_start"() <{level = 10 : i32, message = "nk,mk->nm"}> : () -> ()
    %cst_46 = arith.constant dense<0.000000e+00> : vector<16x128xf32>
    %111 = tpu.matmul %109, %110, %cst_46 {dimension_numbers = #tpu.dot_dimension_numbers<[1], [1], [0], [0], [0, 0, 1, 0], [], []>} : vector<16x8xf32>, vector<128x8xf32>, vector<16x128xf32> -> vector<16x128xf32>
    "tpu.trace_stop"() : () -> ()
    %112 = vector.extract_strided_slice %103 {offsets = [0, 16], sizes = [16, 8], strides = [1, 1]} : vector<16x32xf32> to vector<16x8xf32>
    %113 = vector.extract_strided_slice %105 {offsets = [0, 16], sizes = [128, 8], strides = [1, 1]} : vector<128x64xf32> to vector<128x8xf32>
    "tpu.trace_start"() <{level = 10 : i32, message = "nk,mk->nm"}> : () -> ()
    %cst_47 = arith.constant dense<0.000000e+00> : vector<16x128xf32>
    %114 = tpu.matmul %112, %113, %cst_47 {dimension_numbers = #tpu.dot_dimension_numbers<[1], [1], [0], [0], [0, 0, 1, 0], [], []>} : vector<16x8xf32>, vector<128x8xf32>, vector<16x128xf32> -> vector<16x128xf32>
    "tpu.trace_stop"() : () -> ()
    %115 = vector.extract_strided_slice %103 {offsets = [0, 24], sizes = [16, 8], strides = [1, 1]} : vector<16x32xf32> to vector<16x8xf32>
    %116 = vector.extract_strided_slice %105 {offsets = [0, 24], sizes = [128, 8], strides = [1, 1]} : vector<128x64xf32> to vector<128x8xf32>
    "tpu.trace_start"() <{level = 10 : i32, message = "nk,mk->nm"}> : () -> ()
    %cst_48 = arith.constant dense<0.000000e+00> : vector<16x128xf32>
    %117 = tpu.matmul %115, %116, %cst_48 {dimension_numbers = #tpu.dot_dimension_numbers<[1], [1], [0], [0], [0, 0, 1, 0], [], []>} : vector<16x8xf32>, vector<128x8xf32>, vector<16x128xf32> -> vector<16x128xf32>
    "tpu.trace_stop"() : () -> ()
    %118 = tpu.concatenate %108, %111, %114, %117 in 0 : vector<16x128xf32>, vector<16x128xf32>, vector<16x128xf32>, vector<16x128xf32> -> vector<64x128xf32>
    %cst_49 = arith.constant 0.353553385 : f32
    %119 = vector.broadcast %cst_49 : f32 to vector<64x128xf32>
    %120 = arith.mulf %118, %119 : vector<64x128xf32>
    %121 = tpu.iota {dimensions = array<i32: 1>} : vector<1x128xi32>
    %c8_i32 = arith.constant 8 : i32
    %122 = vector.broadcast %c8_i32 : i32 to vector<1x128xi32>
    %123 = arith.cmpi slt, %121, %122 : vector<1x128xi32>
    %cst_50 = arith.constant 0.000000e+00 : f32
    %cst_51 = arith.constant -1.000000e+30 : f32
    %124 = vector.broadcast %cst_50 : f32 to vector<1x128xf32>
    %125 = vector.broadcast %cst_51 : f32 to vector<1x128xf32>
    %126 = arith.select %123, %124, %125 : vector<1x128xi1>, vector<1x128xf32>
    %127 = vector.broadcast %126 : vector<1x128xf32> to vector<64x128xf32>
    %128 = arith.addf %120, %127 : vector<64x128xf32>
    %cst_52 = arith.constant dense<0xFF800000> : vector<64xf32>
    %129 = vector.multi_reduction <maximumf>, %128, %cst_52 [1] : vector<64x128xf32> to vector<64xf32>
    %130 = vector.shape_cast %129 : vector<64xf32> to vector<64x1xf32>
    %131 = vector.broadcast %130 : vector<64x1xf32> to vector<64x128xf32>
    %132 = arith.subf %128, %131 : vector<64x128xf32>
    %133 = math.exp %132 : vector<64x128xf32>
    %cst_53 = arith.constant dense<0.000000e+00> : vector<64xf32>
    %134 = vector.multi_reduction <add>, %133, %cst_53 [1] : vector<64x128xf32> to vector<64xf32>
    %135 = vector.shape_cast %134 : vector<64xf32> to vector<64x1xf32>
    %136 = tpu.reciprocal %135 : vector<64x1xf32> -> vector<64x1xf32>
    %137 = vector.broadcast %136 : vector<64x1xf32> to vector<64x128xf32>
    %138 = arith.mulf %133, %137 : vector<64x128xf32>
    %139 = vector.extract_strided_slice %138 {offsets = [0, 0], sizes = [16, 128], strides = [1, 1]} : vector<64x128xf32> to vector<16x128xf32>
    %140 = vector.extract_strided_slice %105 {offsets = [0, 32], sizes = [128, 8], strides = [1, 1]} : vector<128x64xf32> to vector<128x8xf32>
    %cst_54 = arith.constant dense<0.000000e+00> : vector<16x8xf32>
    %141 = tpu.matmul %139, %140, %cst_54 {dimension_numbers = #tpu.dot_dimension_numbers<[1], [0], [0], [1], [0, 0, 1, 1], [], []>} : vector<16x128xf32>, vector<128x8xf32>, vector<16x8xf32> -> vector<16x8xf32>
    %142 = vector.extract_strided_slice %138 {offsets = [16, 0], sizes = [16, 128], strides = [1, 1]} : vector<64x128xf32> to vector<16x128xf32>
    %143 = vector.extract_strided_slice %105 {offsets = [0, 40], sizes = [128, 8], strides = [1, 1]} : vector<128x64xf32> to vector<128x8xf32>
    %cst_55 = arith.constant dense<0.000000e+00> : vector<16x8xf32>
    %144 = tpu.matmul %142, %143, %cst_55 {dimension_numbers = #tpu.dot_dimension_numbers<[1], [0], [0], [1], [0, 0, 1, 1], [], []>} : vector<16x128xf32>, vector<128x8xf32>, vector<16x8xf32> -> vector<16x8xf32>
    %145 = vector.extract_strided_slice %138 {offsets = [32, 0], sizes = [16, 128], strides = [1, 1]} : vector<64x128xf32> to vector<16x128xf32>
    %146 = vector.extract_strided_slice %105 {offsets = [0, 48], sizes = [128, 8], strides = [1, 1]} : vector<128x64xf32> to vector<128x8xf32>
    %cst_56 = arith.constant dense<0.000000e+00> : vector<16x8xf32>
    %147 = tpu.matmul %145, %146, %cst_56 {dimension_numbers = #tpu.dot_dimension_numbers<[1], [0], [0], [1], [0, 0, 1, 1], [], []>} : vector<16x128xf32>, vector<128x8xf32>, vector<16x8xf32> -> vector<16x8xf32>
    %148 = vector.extract_strided_slice %138 {offsets = [48, 0], sizes = [16, 128], strides = [1, 1]} : vector<64x128xf32> to vector<16x128xf32>
    %149 = vector.extract_strided_slice %105 {offsets = [0, 56], sizes = [128, 8], strides = [1, 1]} : vector<128x64xf32> to vector<128x8xf32>
    %cst_57 = arith.constant dense<0.000000e+00> : vector<16x8xf32>
    %150 = tpu.matmul %148, %149, %cst_57 {dimension_numbers = #tpu.dot_dimension_numbers<[1], [0], [0], [1], [0, 0, 1, 1], [], []>} : vector<16x128xf32>, vector<128x8xf32>, vector<16x8xf32> -> vector<16x8xf32>
    %151 = tpu.concatenate %141, %144, %147, %150 in 1 : vector<16x8xf32>, vector<16x8xf32>, vector<16x8xf32>, vector<16x8xf32> -> vector<16x32xf32>
    %c0_58 = arith.constant 0 : index
    %c0_59 = arith.constant 0 : index
    %152 = vector.load %arg12[%c0_58, %c0_59] : memref<32x32xf32, #tpu.memory_space<vmem>>, vector<32x32xf32>
    %cst_60 = arith.constant dense<0.000000e+00> : vector<16x32xf32>
    %153 = tpu.matmul %151, %152, %cst_60 {dimension_numbers = #tpu.dot_dimension_numbers<[1], [0], [0], [1], [0, 0, 1, 1], [], []>} : vector<16x32xf32>, vector<32x32xf32>, vector<16x32xf32> -> vector<16x32xf32>
    %c0_61 = arith.constant 0 : index
    %c0_62 = arith.constant 0 : index
    %154 = vector.load %arg13[%c0_61, %c0_62] : memref<1x32xf32, #tpu.memory_space<vmem>>, vector<1x32xf32>
    %155 = vector.broadcast %154 : vector<1x32xf32> to vector<16x32xf32>
    %156 = arith.addf %153, %155 : vector<16x32xf32>
    %157 = arith.addf %156, %75 : vector<16x32xf32>
    %cst_63 = arith.constant dense<0.000000e+00> : vector<16xf32>
    %158 = vector.multi_reduction <add>, %157, %cst_63 [1] : vector<16x32xf32> to vector<16xf32>
    %159 = vector.shape_cast %158 : vector<16xf32> to vector<16x1xf32>
    %cst_64 = arith.constant 3.200000e+01 : f32
    %160 = vector.broadcast %cst_64 : f32 to vector<16x1xf32>
    %161 = arith.divf %159, %160 : vector<16x1xf32>
    %162 = vector.broadcast %161 : vector<16x1xf32> to vector<16x32xf32>
    %163 = arith.subf %157, %162 : vector<16x32xf32>
    %164 = vector.broadcast %161 : vector<16x1xf32> to vector<16x32xf32>
    %165 = arith.subf %157, %164 : vector<16x32xf32>
    %166 = arith.mulf %163, %165 : vector<16x32xf32>
    %cst_65 = arith.constant dense<0.000000e+00> : vector<16xf32>
    %167 = vector.multi_reduction <add>, %166, %cst_65 [1] : vector<16x32xf32> to vector<16xf32>
    %168 = vector.shape_cast %167 : vector<16xf32> to vector<16x1xf32>
    %cst_66 = arith.constant 3.200000e+01 : f32
    %169 = vector.broadcast %cst_66 : f32 to vector<16x1xf32>
    %170 = arith.divf %168, %169 : vector<16x1xf32>
    %171 = vector.broadcast %161 : vector<16x1xf32> to vector<16x32xf32>
    %172 = arith.subf %157, %171 : vector<16x32xf32>
    %cst_67 = arith.constant 9.99999974E-6 : f32
    %173 = vector.broadcast %cst_67 : f32 to vector<16x1xf32>
    %174 = arith.addf %170, %173 : vector<16x1xf32>
    %175 = math.rsqrt %174 : vector<16x1xf32>
    %176 = vector.broadcast %175 : vector<16x1xf32> to vector<16x32xf32>
    %177 = arith.mulf %172, %176 : vector<16x32xf32>
    %c0_68 = arith.constant 0 : index
    %c0_69 = arith.constant 0 : index
    %178 = vector.load %arg14[%c0_68, %c0_69] : memref<1x32xf32, #tpu.memory_space<vmem>>, vector<1x32xf32>
    %179 = vector.broadcast %178 : vector<1x32xf32> to vector<16x32xf32>
    %180 = arith.mulf %177, %179 : vector<16x32xf32>
    %c0_70 = arith.constant 0 : index
    %c0_71 = arith.constant 0 : index
    %181 = vector.load %arg15[%c0_70, %c0_71] : memref<1x32xf32, #tpu.memory_space<vmem>>, vector<1x32xf32>
    %182 = vector.broadcast %181 : vector<1x32xf32> to vector<16x32xf32>
    %183 = arith.addf %180, %182 : vector<16x32xf32>
    %c0_72 = arith.constant 0 : index
    %c0_73 = arith.constant 0 : index
    %184 = vector.load %arg16[%c0_72, %c0_73] : memref<32x256xf32, #tpu.memory_space<vmem>>, vector<32x256xf32>
    %cst_74 = arith.constant dense<0.000000e+00> : vector<16x256xf32>
    %185 = tpu.matmul %183, %184, %cst_74 {dimension_numbers = #tpu.dot_dimension_numbers<[1], [0], [0], [1], [0, 0, 1, 1], [], []>} : vector<16x32xf32>, vector<32x256xf32>, vector<16x256xf32> -> vector<16x256xf32>
    %c0_75 = arith.constant 0 : index
    %c0_76 = arith.constant 0 : index
    %186 = vector.load %arg17[%c0_75, %c0_76] : memref<1x256xf32, #tpu.memory_space<vmem>>, vector<1x256xf32>
    %187 = vector.broadcast %186 : vector<1x256xf32> to vector<16x256xf32>
    %188 = arith.addf %185, %187 : vector<16x256xf32>
    %189 = vector.extract_strided_slice %188 {offsets = [0, 0], sizes = [16, 128], strides = [1, 1]} : vector<16x256xf32> to vector<16x128xf32>
    %190 = vector.extract_strided_slice %188 {offsets = [0, 128], sizes = [16, 128], strides = [1, 1]} : vector<16x256xf32> to vector<16x128xf32>
    %cst_77 = arith.constant 5.000000e-01 : f32
    %191 = vector.broadcast %cst_77 : f32 to vector<16x128xf32>
    %192 = arith.mulf %191, %190 : vector<16x128xf32>
    %cst_78 = arith.constant 0.707106769 : f32
    %193 = vector.broadcast %cst_78 : f32 to vector<16x128xf32>
    %194 = arith.mulf %190, %193 : vector<16x128xf32>
    %195 = math.erf %194 : vector<16x128xf32>
    %cst_79 = arith.constant 1.000000e+00 : f32
    %196 = vector.broadcast %cst_79 : f32 to vector<16x128xf32>
    %197 = arith.addf %196, %195 : vector<16x128xf32>
    %198 = arith.mulf %192, %197 : vector<16x128xf32>
    %199 = arith.mulf %189, %198 : vector<16x128xf32>
    %c0_80 = arith.constant 0 : index
    %c0_81 = arith.constant 0 : index
    %200 = vector.load %arg18[%c0_80, %c0_81] : memref<128x32xf32, #tpu.memory_space<vmem>>, vector<128x32xf32>
    %cst_82 = arith.constant dense<0.000000e+00> : vector<16x32xf32>
    %201 = tpu.matmul %199, %200, %cst_82 {dimension_numbers = #tpu.dot_dimension_numbers<[1], [0], [0], [1], [0, 0, 1, 1], [], []>} : vector<16x128xf32>, vector<128x32xf32>, vector<16x32xf32> -> vector<16x32xf32>
    %c0_83 = arith.constant 0 : index
    %c0_84 = arith.constant 0 : index
    %202 = vector.load %arg19[%c0_83, %c0_84] : memref<1x32xf32, #tpu.memory_space<vmem>>, vector<1x32xf32>
    %203 = vector.broadcast %202 : vector<1x32xf32> to vector<16x32xf32>
    %204 = arith.addf %201, %203 : vector<16x32xf32>
    %205 = arith.addf %204, %157 : vector<16x32xf32>
    %c0_85 = arith.constant 0 : index
    %c0_86 = arith.constant 0 : index
    %206 = vector.load %arg20[%c0_85, %c0_86] : memref<16x32xf32, #tpu.memory_space<vmem>>, vector<16x32xf32>
    tpu.vector_store %arg20[%c0_85, %c0_86], %205 {strides = array<i32>} : memref<16x32xf32, #tpu.memory_space<vmem>>, vector<16x32xf32>,
    return
  }
  func.func @transform_0(%arg0: i32) -> (i32, i32) {
    %c0_i32 = arith.constant 0 : i32
    %c0_i32_0 = arith.constant 0 : i32
    return %arg0, %c0_i32 : i32, i32
  }
  func.func @transform_1(%arg0: i32) -> (i32, i32) {
    %c0_i32 = arith.constant 0 : i32
    %c0_i32_0 = arith.constant 0 : i32
    return %arg0, %c0_i32 : i32, i32
  }
  func.func @transform_2(%arg0: i32) -> (i32, i32) {
    %c0_i32 = arith.constant 0 : i32
    %c0_i32_0 = arith.constant 0 : i32
    %c0_i32_1 = arith.constant 0 : i32
    return %c0_i32, %c0_i32_0 : i32, i32
  }
  func.func @transform_3(%arg0: i32) -> (i32, i32) {
    %c0_i32 = arith.constant 0 : i32
    %c0_i32_0 = arith.constant 0 : i32
    %c0_i32_1 = arith.constant 0 : i32
    return %c0_i32, %c0_i32_0 : i32, i32
  }
  func.func @transform_4(%arg0: i32) -> (i32, i32) {
    %c0_i32 = arith.constant 0 : i32
    %c0_i32_0 = arith.constant 0 : i32
    %c0_i32_1 = arith.constant 0 : i32
    return %c0_i32, %c0_i32_0 : i32, i32
  }
  func.func @transform_5(%arg0: i32) -> (i32, i32) {
    %c0_i32 = arith.constant 0 : i32
    %c0_i32_0 = arith.constant 0 : i32
    %c0_i32_1 = arith.constant 0 : i32
    return %c0_i32, %c0_i32_0 : i32, i32
  }
  func.func @transform_6(%arg0: i32) -> (i32, i32) {
    %c0_i32 = arith.constant 0 : i32
    %c0_i32_0 = arith.constant 0 : i32
    %c0_i32_1 = arith.constant 0 : i32
    return %c0_i32, %c0_i32_0 : i32, i32
  }
  func.func @transform_7(%arg0: i32) -> (i32, i32) {
    %c0_i32 = arith.constant 0 : i32
    %c0_i32_0 = arith.constant 0 : i32
    %c0_i32_1 = arith.constant 0 : i32
    return %c0_i32, %c0_i32_0 : i32, i32
  }
  func.func @transform_8(%arg0: i32) -> (i32, i32) {
    %c0_i32 = arith.constant 0 : i32
    %c0_i32_0 = arith.constant 0 : i32
    %c0_i32_1 = arith.constant 0 : i32
    return %c0_i32, %c0_i32_0 : i32, i32
  }
  func.func @transform_9(%arg0: i32) -> (i32, i32) {
    %c0_i32 = arith.constant 0 : i32
    %c0_i32_0 = arith.constant 0 : i32
    %c0_i32_1 = arith.constant 0 : i32
    return %c0_i32, %c0_i32_0 : i32, i32
  }
  func.func @transform_10(%arg0: i32) -> (i32, i32) {
    %c0_i32 = arith.constant 0 : i32
    %c0_i32_0 = arith.constant 0 : i32
    %c0_i32_1 = arith.constant 0 : i32
    return %c0_i32, %c0_i32_0 : i32, i32
  }
  func.func @transform_11(%arg0: i32) -> (i32, i32) {
    %c0_i32 = arith.constant 0 : i32
    %c0_i32_0 = arith.constant 0 : i32
    %c0_i32_1 = arith.constant 0 : i32
    return %c0_i32, %c0_i32_0 : i32, i32
  }
  func.func @transform_12(%arg0: i32) -> (i32, i32) {
    %c0_i32 = arith.constant 0 : i32
    %c0_i32_0 = arith.constant 0 : i32
    %c0_i32_1 = arith.constant 0 : i32
    return %c0_i32, %c0_i32_0 : i32, i32
  }
  func.func @transform_13(%arg0: i32) -> (i32, i32) {
    %c0_i32 = arith.constant 0 : i32
    %c0_i32_0 = arith.constant 0 : i32
    %c0_i32_1 = arith.constant 0 : i32
    return %c0_i32, %c0_i32_0 : i32, i32
  }
  func.func @transform_14(%arg0: i32) -> (i32, i32) {
    %c0_i32 = arith.constant 0 : i32
    %c0_i32_0 = arith.constant 0 : i32
    %c0_i32_1 = arith.constant 0 : i32
    return %c0_i32, %c0_i32_0 : i32, i32
  }
  func.func @transform_15(%arg0: i32) -> (i32, i32) {
    %c0_i32 = arith.constant 0 : i32
    %c0_i32_0 = arith.constant 0 : i32
    %c0_i32_1 = arith.constant 0 : i32
    return %c0_i32, %c0_i32_0 : i32, i32
  }
  func.func @transform_16(%arg0: i32) -> (i32, i32) {
    %c0_i32 = arith.constant 0 : i32
    %c0_i32_0 = arith.constant 0 : i32
    %c0_i32_1 = arith.constant 0 : i32
    return %c0_i32, %c0_i32_0 : i32, i32
  }
  func.func @transform_17(%arg0: i32) -> (i32, i32) {
    %c0_i32 = arith.constant 0 : i32
    %c0_i32_0 = arith.constant 0 : i32
    %c0_i32_1 = arith.constant 0 : i32
    return %c0_i32, %c0_i32_0 : i32, i32
  }
  func.func @transform_18(%arg0: i32) -> (i32, i32) {
    %c0_i32 = arith.constant 0 : i32
    %c0_i32_0 = arith.constant 0 : i32
    %c0_i32_1 = arith.constant 0 : i32
    return %c0_i32, %c0_i32_0 : i32, i32
  }
  func.func @transform_19(%arg0: i32) -> (i32, i32) {
    %c0_i32 = arith.constant 0 : i32
    %c0_i32_0 = arith.constant 0 : i32
    return %arg0, %c0_i32 : i32, i32
  }
}

</mosaic_0001>

<llo_original>
// kernel: tpu_custom_call.1
$region0: #{tpu_custom_call.1}
  #allocation0 [shape = 'u32[]', space=smem, size = 0x4, offset = 0x4, fixed_abs, tag = 'smem constant byte address 0x4 - core index']
  #allocation1 [shape = 'u32[72,128]{1,0:T(1,128)}', space=vmem, size = 0x9000, scoped, tag = 'internal scratch']
  %s0 = inlined_call_operand.vmem [shape: f32[32,32], index: 0, kind: input, shape index: {}]
  %s1 = inlined_call_operand.vmem [shape: f32[256,24], index: 1, kind: input, shape index: {}]
  %s2 = inlined_call_operand.vmem [shape: f32[1,32], index: 2, kind: input, shape index: {}]
  %s3 = inlined_call_operand.vmem [shape: f32[1,32], index: 3, kind: input, shape index: {}]
  %s4 = inlined_call_operand.vmem [shape: f32[32,96], index: 4, kind: input, shape index: {}]
  %s5 = inlined_call_operand.vmem [shape: f32[32,32], index: 5, kind: input, shape index: {}]
  %s6 = inlined_call_operand.vmem [shape: f32[1,32], index: 6, kind: input, shape index: {}]
  %s7 = inlined_call_operand.vmem [shape: f32[1,32], index: 7, kind: input, shape index: {}]
  %s8 = inlined_call_operand.vmem [shape: f32[1,32], index: 8, kind: input, shape index: {}]
  %s9 = inlined_call_operand.vmem [shape: f32[32,32], index: 9, kind: input, shape index: {}]
  %s10 = inlined_call_operand.vmem [shape: f32[24,64], index: 10, kind: input, shape index: {}]
  %s11 = inlined_call_operand.vmem [shape: f32[32,32], index: 11, kind: input, shape index: {}]
  %s12 = inlined_call_operand.vmem [shape: f32[1,32], index: 12, kind: input, shape index: {}]
  %s13 = inlined_call_operand.vmem [shape: f32[1,32], index: 13, kind: input, shape index: {}]
  %s14 = inlined_call_operand.vmem [shape: f32[1,32], index: 14, kind: input, shape index: {}]
  %s15 = inlined_call_operand.vmem [shape: f32[32,256], index: 15, kind: input, shape index: {}]
  %s16 = inlined_call_operand.vmem [shape: f32[1,256], index: 16, kind: input, shape index: {}]
  %s17 = inlined_call_operand.vmem [shape: f32[128,32], index: 17, kind: input, shape index: {}]
  %s18 = inlined_call_operand.vmem [shape: f32[1,32], index: 18, kind: input, shape index: {}]
  %s19 = inlined_call_operand.hbm [shape: f32[32,32], index: 19, kind: output, shape index: {}]
  %s20 = sld [smem:[#allocation0]]
  $region109: #{tpu_custom_call.1} parent=0
    _
  %s22 = ssub.s32 1, %s20
  %s23 = scalar_select 0, %s22, %s20
  $region1: #{tpu_custom_call.1} parent=0
    #allocation2 [shape = 'u8[16384]{0}', space=vmem, size = 0x4000, scoped, tag = 'output window, operand 0']
    #allocation3 [shape = 's32[2]{0}', space=sflag, size = 0x8, scoped, tag = 'scoped memory for tpu_custom_call.1']
    %24 = vsyncpa [#allocation3], 0
    %s25 = scalar_lea.sflag [#allocation3], 1
    %26 = vsyncpa %s25, 0
    loop: start=0, step=1, limit=4
    $region2: #{tpu_custom_call.1} parent=1 // loop_pre_header
      _
    $region3: #{tpu_custom_call.1} parent=1 // loop_header
      %s28 = sphi 0, %s32
      %p29 = scmp.ge.s32.totalorder %s28, 4
      %s38 = sphi 0, %s40
      %s41 = sphi 0, %s38
      %s42 = sphi 0, %s41
      %s58 = sphi 0, %s42
      %s64 = sphi 0, %s66
      %s67 = sphi 0, %s64
      %s68 = sphi 0, %s67
      %s84 = sphi 0, %s68
      %s88 = sphi 0, %s88
      %s90 = sphi 0, %s88
      %s91 = sphi 0, %s90
      %s105 = sphi 0, %s91
      %s109 = sphi 0, %s109
      %s111 = sphi 0, %s109
      %s112 = sphi 0, %s111
      %s126 = sphi 0, %s112
      %s130 = sphi 0, %s130
      %s132 = sphi 0, %s130
      %s133 = sphi 0, %s132
      %s147 = sphi 0, %s133
      %s151 = sphi 0, %s151
      %s153 = sphi 0, %s151
      %s154 = sphi 0, %s153
      %s168 = sphi 0, %s154
      %s172 = sphi 0, %s172
      %s174 = sphi 0, %s172
      %s175 = sphi 0, %s174
      %s189 = sphi 0, %s175
      %s193 = sphi 0, %s193
      %s195 = sphi 0, %s193
      %s196 = sphi 0, %s195
      %s210 = sphi 0, %s196
      %s214 = sphi 0, %s214
      %s216 = sphi 0, %s214
      %s217 = sphi 0, %s216
      %s231 = sphi 0, %s217
      %s235 = sphi 0, %s235
      %s237 = sphi 0, %s235
      %s238 = sphi 0, %s237
      %s252 = sphi 0, %s238
      %s256 = sphi 0, %s256
      %s258 = sphi 0, %s256
      %s259 = sphi 0, %s258
      %s273 = sphi 0, %s259
      %s277 = sphi 0, %s277
      %s279 = sphi 0, %s277
      %s280 = sphi 0, %s279
      %s294 = sphi 0, %s280
      %s298 = sphi 0, %s298
      %s300 = sphi 0, %s298
      %s301 = sphi 0, %s300
      %s315 = sphi 0, %s301
      %s319 = sphi 0, %s319
      %s321 = sphi 0, %s319
      %s322 = sphi 0, %s321
      %s336 = sphi 0, %s322
      %s340 = sphi 0, %s340
      %s342 = sphi 0, %s340
      %s343 = sphi 0, %s342
      %s357 = sphi 0, %s343
      %s361 = sphi 0, %s361
      %s363 = sphi 0, %s361
      %s364 = sphi 0, %s363
      %s378 = sphi 0, %s364
      %s382 = sphi 0, %s382
      %s384 = sphi 0, %s382
      %s385 = sphi 0, %s384
      %s399 = sphi 0, %s385
      %s403 = sphi 0, %s403
      %s405 = sphi 0, %s403
      %s406 = sphi 0, %s405
      %s420 = sphi 0, %s406
      %s424 = sphi 0, %s424
      %s426 = sphi 0, %s424
      %s427 = sphi 0, %s426
      %s441 = sphi 0, %s427
      %s447 = sphi 0, %s449
      %s450 = sphi 0, %s447
      %s451 = sphi 0, %s450
      %s467 = sphi 0, %s451
    $region4: #{tpu_custom_call.1} parent=1 // loop_header_branch
      %31 = sbr.rel (%p29) target = $region8
    $region5: #{tpu_custom_call.1} parent=1 // loop_body
      %s33 = ssub.s32 %s28, 1
      %s34 = ssub.s32 %s28, 2
      %s35 = sadd.s32 %s28, 1
      %s36 = ssub.s32 %s28, %s35
      %p37 = scmp.eq.s32.totalorder %s36, 0
      %s39 = sadd.s32 %s38, 1
      %s40 = scalar_select %p37, %s38, %s39
      %p43 = pneg %p37
      %p44 = scmp.eq.s32.totalorder %s28, 1
      %p45 = por %p43, %p44
      %p46 = scmp.ne.s32.totalorder %s38, %s41
      %p47 = scmp.eq.s32.totalorder %s28, 0
      %p48 = por %p46, %p47
      %p49 = scmp.ne.s32.totalorder %s38, %s41
      %p50 = scmp.eq.s32.totalorder %s33, 1
      %p51 = por %p49, %p50
      %p52 = scmp.ne.s32.totalorder %s41, %s42
      %p53 = scmp.eq.s32.totalorder %s33, 0
      %p54 = por %p52, %p53
      %p55 = scmp.ne.s32.totalorder %s41, %s42
      %p56 = scmp.eq.s32.totalorder %s34, 1
      %p57 = por %p55, %p56
      %p59 = scmp.ne.s32.totalorder %s42, %s58
      %p60 = scmp.eq.s32.totalorder %s34, 0
      %p61 = por %p59, %p60
      %s62 = ssub.s32 %s28, %s35
      %p63 = scmp.eq.s32.totalorder %s62, 0
      %s65 = sadd.s32 %s64, 1
      %s66 = scalar_select %p63, %s64, %s65
      %p69 = pneg %p63
      %p70 = scmp.eq.s32.totalorder %s28, 1
      %p71 = por %p69, %p70
      %p72 = scmp.ne.s32.totalorder %s64, %s67
      %p73 = scmp.eq.s32.totalorder %s28, 0
      %p74 = por %p72, %p73
      %p75 = scmp.ne.s32.totalorder %s64, %s67
      %p76 = scmp.eq.s32.totalorder %s33, 1
      %p77 = por %p75, %p76
      %p78 = scmp.ne.s32.totalorder %s67, %s68
      %p79 = scmp.eq.s32.totalorder %s33, 0
      %p80 = por %p78, %p79
      %p81 = scmp.ne.s32.totalorder %s67, %s68
      %p82 = scmp.eq.s32.totalorder %s34, 1
      %p83 = por %p81, %p82
      %p85 = scmp.ne.s32.totalorder %s68, %s84
      %p86 = scmp.eq.s32.totalorder %s34, 0
      %p87 = por %p85, %p86
      %s89 = sadd.s32 %s88, 1
      %p92 = scmp.eq.s32.totalorder %s28, 1
      %p93 = scmp.ne.s32.totalorder %s88, %s90
      %p94 = scmp.eq.s32.totalorder %s28, 0
      %p95 = por %p93, %p94
      %p96 = scmp.ne.s32.totalorder %s88, %s90
      %p97 = scmp.eq.s32.totalorder %s33, 1
      %p98 = por %p96, %p97
      %p99 = scmp.ne.s32.totalorder %s90, %s91
      %p100 = scmp.eq.s32.totalorder %s33, 0
      %p101 = por %p99, %p100
      %p102 = scmp.ne.s32.totalorder %s90, %s91
      %p103 = scmp.eq.s32.totalorder %s34, 1
      %p104 = por %p102, %p103
      %p106 = scmp.ne.s32.totalorder %s91, %s105
      %p107 = scmp.eq.s32.totalorder %s34, 0
      %p108 = por %p106, %p107
      %s110 = sadd.s32 %s109, 1
      %p113 = scmp.eq.s32.totalorder %s28, 1
      %p114 = scmp.ne.s32.totalorder %s109, %s111
      %p115 = scmp.eq.s32.totalorder %s28, 0
      %p116 = por %p114, %p115
      %p117 = scmp.ne.s32.totalorder %s109, %s111
      %p118 = scmp.eq.s32.totalorder %s33, 1
      %p119 = por %p117, %p118
      %p120 = scmp.ne.s32.totalorder %s111, %s112
      %p121 = scmp.eq.s32.totalorder %s33, 0
      %p122 = por %p120, %p121
      %p123 = scmp.ne.s32.totalorder %s111, %s112
      %p124 = scmp.eq.s32.totalorder %s34, 1
      %p125 = por %p123, %p124
      %p127 = scmp.ne.s32.totalorder %s112, %s126
      %p128 = scmp.eq.s32.totalorder %s34, 0
      %p129 = por %p127, %p128
      %s131 = sadd.s32 %s130, 1
      %p134 = scmp.eq.s32.totalorder %s28, 1
      %p135 = scmp.ne.s32.totalorder %s130, %s132
      %p136 = scmp.eq.s32.totalorder %s28, 0
      %p137 = por %p135, %p136
      %p138 = scmp.ne.s32.totalorder %s130, %s132
      %p139 = scmp.eq.s32.totalorder %s33, 1
      %p140 = por %p138, %p139
      %p141 = scmp.ne.s32.totalorder %s132, %s133
      %p142 = scmp.eq.s32.totalorder %s33, 0
      %p143 = por %p141, %p142
      %p144 = scmp.ne.s32.totalorder %s132, %s133
      %p145 = scmp.eq.s32.totalorder %s34, 1
      %p146 = por %p144, %p145
      %p148 = scmp.ne.s32.totalorder %s133, %s147
      %p149 = scmp.eq.s32.totalorder %s34, 0
      %p150 = por %p148, %p149
      %s152 = sadd.s32 %s151, 1
      %p155 = scmp.eq.s32.totalorder %s28, 1
      %p156 = scmp.ne.s32.totalorder %s151, %s153
      %p157 = scmp.eq.s32.totalorder %s28, 0
      %p158 = por %p156, %p157
      %p159 = scmp.ne.s32.totalorder %s151, %s153
      %p160 = scmp.eq.s32.totalorder %s33, 1
      %p161 = por %p159, %p160
      %p162 = scmp.ne.s32.totalorder %s153, %s154
      %p163 = scmp.eq.s32.totalorder %s33, 0
      %p164 = por %p162, %p163
      %p165 = scmp.ne.s32.totalorder %s153, %s154
      %p166 = scmp.eq.s32.totalorder %s34, 1
      %p167 = por %p165, %p166
      %p169 = scmp.ne.s32.totalorder %s154, %s168
      %p170 = scmp.eq.s32.totalorder %s34, 0
      %p171 = por %p169, %p170
      %s173 = sadd.s32 %s172, 1
      %p176 = scmp.eq.s32.totalorder %s28, 1
      %p177 = scmp.ne.s32.totalorder %s172, %s174
      %p178 = scmp.eq.s32.totalorder %s28, 0
      %p179 = por %p177, %p178
      %p180 = scmp.ne.s32.totalorder %s172, %s174
      %p181 = scmp.eq.s32.totalorder %s33, 1
      %p182 = por %p180, %p181
      %p183 = scmp.ne.s32.totalorder %s174, %s175
      %p184 = scmp.eq.s32.totalorder %s33, 0
      %p185 = por %p183, %p184
      %p186 = scmp.ne.s32.totalorder %s174, %s175
      %p187 = scmp.eq.s32.totalorder %s34, 1
      %p188 = por %p186, %p187
      %p190 = scmp.ne.s32.totalorder %s175, %s189
      %p191 = scmp.eq.s32.totalorder %s34, 0
      %p192 = por %p190, %p191
      %s194 = sadd.s32 %s193, 1
      %p197 = scmp.eq.s32.totalorder %s28, 1
      %p198 = scmp.ne.s32.totalorder %s193, %s195
      %p199 = scmp.eq.s32.totalorder %s28, 0
      %p200 = por %p198, %p199
      %p201 = scmp.ne.s32.totalorder %s193, %s195
      %p202 = scmp.eq.s32.totalorder %s33, 1
      %p203 = por %p201, %p202
      %p204 = scmp.ne.s32.totalorder %s195, %s196
      %p205 = scmp.eq.s32.totalorder %s33, 0
      %p206 = por %p204, %p205
      %p207 = scmp.ne.s32.totalorder %s195, %s196
      %p208 = scmp.eq.s32.totalorder %s34, 1
      %p209 = por %p207, %p208
      %p211 = scmp.ne.s32.totalorder %s196, %s210
      %p212 = scmp.eq.s32.totalorder %s34, 0
      %p213 = por %p211, %p212
      %s215 = sadd.s32 %s214, 1
      %p218 = scmp.eq.s32.totalorder %s28, 1
      %p219 = scmp.ne.s32.totalorder %s214, %s216
      %p220 = scmp.eq.s32.totalorder %s28, 0
      %p221 = por %p219, %p220
      %p222 = scmp.ne.s32.totalorder %s214, %s216
      %p223 = scmp.eq.s32.totalorder %s33, 1
      %p224 = por %p222, %p223
      %p225 = scmp.ne.s32.totalorder %s216, %s217
      %p226 = scmp.eq.s32.totalorder %s33, 0
      %p227 = por %p225, %p226
      %p228 = scmp.ne.s32.totalorder %s216, %s217
      %p229 = scmp.eq.s32.totalorder %s34, 1
      %p230 = por %p228, %p229
      %p232 = scmp.ne.s32.totalorder %s217, %s231
      %p233 = scmp.eq.s32.totalorder %s34, 0
      %p234 = por %p232, %p233
      %s236 = sadd.s32 %s235, 1
      %p239 = scmp.eq.s32.totalorder %s28, 1
      %p240 = scmp.ne.s32.totalorder %s235, %s237
      %p241 = scmp.eq.s32.totalorder %s28, 0
      %p242 = por %p240, %p241
      %p243 = scmp.ne.s32.totalorder %s235, %s237
      %p244 = scmp.eq.s32.totalorder %s33, 1
      %p245 = por %p243, %p244
      %p246 = scmp.ne.s32.totalorder %s237, %s238
      %p247 = scmp.eq.s32.totalorder %s33, 0
      %p248 = por %p246, %p247
      %p249 = scmp.ne.s32.totalorder %s237, %s238
      %p250 = scmp.eq.s32.totalorder %s34, 1
      %p251 = por %p249, %p250
      %p253 = scmp.ne.s32.totalorder %s238, %s252
      %p254 = scmp.eq.s32.totalorder %s34, 0
      %p255 = por %p253, %p254
      %s257 = sadd.s32 %s256, 1
      %p260 = scmp.eq.s32.totalorder %s28, 1
      %p261 = scmp.ne.s32.totalorder %s256, %s258
      %p262 = scmp.eq.s32.totalorder %s28, 0
      %p263 = por %p261, %p262
      %p264 = scmp.ne.s32.totalorder %s256, %s258
      %p265 = scmp.eq.s32.totalorder %s33, 1
      %p266 = por %p264, %p265
      %p267 = scmp.ne.s32.totalorder %s258, %s259
      %p268 = scmp.eq.s32.totalorder %s33, 0
      %p269 = por %p267, %p268
      %p270 = scmp.ne.s32.totalorder %s258, %s259
      %p271 = scmp.eq.s32.totalorder %s34, 1
      %p272 = por %p270, %p271
      %p274 = scmp.ne.s32.totalorder %s259, %s273
      %p275 = scmp.eq.s32.totalorder %s34, 0
      %p276 = por %p274, %p275
      %s278 = sadd.s32 %s277, 1
      %p281 = scmp.eq.s32.totalorder %s28, 1
      %p282 = scmp.ne.s32.totalorder %s277, %s279
      %p283 = scmp.eq.s32.totalorder %s28, 0
      %p284 = por %p282, %p283
      %p285 = scmp.ne.s32.totalorder %s277, %s279
      %p286 = scmp.eq.s32.totalorder %s33, 1
      %p287 = por %p285, %p286
      %p288 = scmp.ne.s32.totalorder %s279, %s280
      %p289 = scmp.eq.s32.totalorder %s33, 0
      %p290 = por %p288, %p289
      %p291 = scmp.ne.s32.totalorder %s279, %s280
      %p292 = scmp.eq.s32.totalorder %s34, 1
      %p293 = por %p291, %p292
      %p295 = scmp.ne.s32.totalorder %s280, %s294
      %p296 = scmp.eq.s32.totalorder %s34, 0
      %p297 = por %p295, %p296
      %s299 = sadd.s32 %s298, 1
      %p302 = scmp.eq.s32.totalorder %s28, 1
      %p303 = scmp.ne.s32.totalorder %s298, %s300
      %p304 = scmp.eq.s32.totalorder %s28, 0
      %p305 = por %p303, %p304
      %p306 = scmp.ne.s32.totalorder %s298, %s300
      %p307 = scmp.eq.s32.totalorder %s33, 1
      %p308 = por %p306, %p307
      %p309 = scmp.ne.s32.totalorder %s300, %s301
      %p310 = scmp.eq.s32.totalorder %s33, 0
      %p311 = por %p309, %p310
      %p312 = scmp.ne.s32.totalorder %s300, %s301
      %p313 = scmp.eq.s32.totalorder %s34, 1
      %p314 = por %p312, %p313
      %p316 = scmp.ne.s32.totalorder %s301, %s315
      %p317 = scmp.eq.s32.totalorder %s34, 0
      %p318 = por %p316, %p317
      %s320 = sadd.s32 %s319, 1
      %p323 = scmp.eq.s32.totalorder %s28, 1
      %p324 = scmp.ne.s32.totalorder %s319, %s321
      %p325 = scmp.eq.s32.totalorder %s28, 0
      %p326 = por %p324, %p325
      %p327 = scmp.ne.s32.totalorder %s319, %s321
      %p328 = scmp.eq.s32.totalorder %s33, 1
      %p329 = por %p327, %p328
      %p330 = scmp.ne.s32.totalorder %s321, %s322
      %p331 = scmp.eq.s32.totalorder %s33, 0
      %p332 = por %p330, %p331
      %p333 = scmp.ne.s32.totalorder %s321, %s322
      %p334 = scmp.eq.s32.totalorder %s34, 1
      %p335 = por %p333, %p334
      %p337 = scmp.ne.s32.totalorder %s322, %s336
      %p338 = scmp.eq.s32.totalorder %s34, 0
      %p339 = por %p337, %p338
      %s341 = sadd.s32 %s340, 1
      %p344 = scmp.eq.s32.totalorder %s28, 1
      %p345 = scmp.ne.s32.totalorder %s340, %s342
      %p346 = scmp.eq.s32.totalorder %s28, 0
      %p347 = por %p345, %p346
      %p348 = scmp.ne.s32.totalorder %s340, %s342
      %p349 = scmp.eq.s32.totalorder %s33, 1
      %p350 = por %p348, %p349
      %p351 = scmp.ne.s32.totalorder %s342, %s343
      %p352 = scmp.eq.s32.totalorder %s33, 0
      %p353 = por %p351, %p352
      %p354 = scmp.ne.s32.totalorder %s342, %s343
      %p355 = scmp.eq.s32.totalorder %s34, 1
      %p356 = por %p354, %p355
      %p358 = scmp.ne.s32.totalorder %s343, %s357
      %p359 = scmp.eq.s32.totalorder %s34, 0
      %p360 = por %p358, %p359
      %s362 = sadd.s32 %s361, 1
      %p365 = scmp.eq.s32.totalorder %s28, 1
      %p366 = scmp.ne.s32.totalorder %s361, %s363
      %p367 = scmp.eq.s32.totalorder %s28, 0
      %p368 = por %p366, %p367
      %p369 = scmp.ne.s32.totalorder %s361, %s363
      %p370 = scmp.eq.s32.totalorder %s33, 1
      %p371 = por %p369, %p370
      %p372 = scmp.ne.s32.totalorder %s363, %s364
      %p373 = scmp.eq.s32.totalorder %s33, 0
      %p374 = por %p372, %p373
      %p375 = scmp.ne.s32.totalorder %s363, %s364
      %p376 = scmp.eq.s32.totalorder %s34, 1
      %p377 = por %p375, %p376
      %p379 = scmp.ne.s32.totalorder %s364, %s378
      %p380 = scmp.eq.s32.totalorder %s34, 0
      %p381 = por %p379, %p380
      %s383 = sadd.s32 %s382, 1
      %p386 = scmp.eq.s32.totalorder %s28, 1
      %p387 = scmp.ne.s32.totalorder %s382, %s384
      %p388 = scmp.eq.s32.totalorder %s28, 0
      %p389 = por %p387, %p388
      %p390 = scmp.ne.s32.totalorder %s382, %s384
      %p391 = scmp.eq.s32.totalorder %s33, 1
      %p392 = por %p390, %p391
      %p393 = scmp.ne.s32.totalorder %s384, %s385
      %p394 = scmp.eq.s32.totalorder %s33, 0
      %p395 = por %p393, %p394
      %p396 = scmp.ne.s32.totalorder %s384, %s385
      %p397 = scmp.eq.s32.totalorder %s34, 1
      %p398 = por %p396, %p397
      %p400 = scmp.ne.s32.totalorder %s385, %s399
      %p401 = scmp.eq.s32.totalorder %s34, 0
      %p402 = por %p400, %p401
      %s404 = sadd.s32 %s403, 1
      %p407 = scmp.eq.s32.totalorder %s28, 1
      %p408 = scmp.ne.s32.totalorder %s403, %s405
      %p409 = scmp.eq.s32.totalorder %s28, 0
      %p410 = por %p408, %p409
      %p411 = scmp.ne.s32.totalorder %s403, %s405
      %p412 = scmp.eq.s32.totalorder %s33, 1
      %p413 = por %p411, %p412
      %p414 = scmp.ne.s32.totalorder %s405, %s406
      %p415 = scmp.eq.s32.totalorder %s33, 0
      %p416 = por %p414, %p415
      %p417 = scmp.ne.s32.totalorder %s405, %s406
      %p418 = scmp.eq.s32.totalorder %s34, 1
      %p419 = por %p417, %p418
      %p421 = scmp.ne.s32.totalorder %s406, %s420
      %p422 = scmp.eq.s32.totalorder %s34, 0
      %p423 = por %p421, %p422
      %s425 = sadd.s32 %s424, 1
      %p428 = scmp.eq.s32.totalorder %s28, 1
      %p429 = scmp.ne.s32.totalorder %s424, %s426
      %p430 = scmp.eq.s32.totalorder %s28, 0
      %p431 = por %p429, %p430
      %p432 = scmp.ne.s32.totalorder %s424, %s426
      %p433 = scmp.eq.s32.totalorder %s33, 1
      %p434 = por %p432, %p433
      %p435 = scmp.ne.s32.totalorder %s426, %s427
      %p436 = scmp.eq.s32.totalorder %s33, 0
      %p437 = por %p435, %p436
      %p438 = scmp.ne.s32.totalorder %s426, %s427
      %p439 = scmp.eq.s32.totalorder %s34, 1
      %p440 = por %p438, %p439
      %p442 = scmp.ne.s32.totalorder %s427, %s441
      %p443 = scmp.eq.s32.totalorder %s34, 0
      %p444 = por %p442, %p443
      %s445 = ssub.s32 %s28, %s35
      %p446 = scmp.eq.s32.totalorder %s445, 0
      %s448 = sadd.s32 %s447, 1
      %s449 = scalar_select %p446, %s447, %s448
      %p452 = pneg %p446
      %p453 = scmp.eq.s32.totalorder %s28, 1
      %p454 = por %p452, %p453
      %p455 = scmp.ne.s32.totalorder %s447, %s450
      %p456 = scmp.eq.s32.totalorder %s28, 0
      %p457 = por %p455, %p456
      %p458 = scmp.ne.s32.totalorder %s447, %s450
      %p459 = scmp.eq.s32.totalorder %s33, 1
      %p460 = por %p458, %p459
      %p461 = scmp.ne.s32.totalorder %s450, %s451
      %p462 = scmp.eq.s32.totalorder %s33, 0
      %p463 = por %p461, %p462
      %p464 = scmp.ne.s32.totalorder %s450, %s451
      %p465 = scmp.eq.s32.totalorder %s34, 1
      %p466 = por %p464, %p465
      %p468 = scmp.ne.s32.totalorder %s451, %s467
      %p469 = scmp.eq.s32.totalorder %s34, 0
      %p470 = por %p468, %p469
      %p471 = scmp.le.s32.totalorder 1, %s28
      %p472 = scmp.lt.s32.totalorder %s28, 3
      %p473 = pnand %p471, %p472
      %p474 = pneg %p473
      // Predicated region
      $region9: #{tpu_custom_call.1} parent=5 // pred_check
        _
      $region10: #{tpu_custom_call.1} parent=5 // pred_check_branch
        %476 = sbr.rel (%p473) target = $region12
      $region11: #{tpu_custom_call.1} parent=5 // pred_region
        %s477 = ssub.s32 %s28, 1
        // Predicated region
        $region13: #{tpu_custom_call.1} parent=11 // pred_check
          %p478 = pneg %p101
        $region14: #{tpu_custom_call.1} parent=11 // pred_check_branch
          %480 = sbr.rel (%p478) target = $region16
        $region15: #{tpu_custom_call.1} parent=11 // pred_region
          _
        $region16: #{tpu_custom_call.1} parent=11 // pred_fallthru
          _
        // Predicated region
        $region17: #{tpu_custom_call.1} parent=11 // pred_check
          %p481 = pneg %p122
        $region18: #{tpu_custom_call.1} parent=11 // pred_check_branch
          %483 = sbr.rel (%p481) target = $region20
        $region19: #{tpu_custom_call.1} parent=11 // pred_region
          _
        $region20: #{tpu_custom_call.1} parent=11 // pred_fallthru
          _
        // Predicated region
        $region21: #{tpu_custom_call.1} parent=11 // pred_check
          %p484 = pneg %p143
        $region22: #{tpu_custom_call.1} parent=11 // pred_check_branch
          %486 = sbr.rel (%p484) target = $region24
        $region23: #{tpu_custom_call.1} parent=11 // pred_region
          _
        $region24: #{tpu_custom_call.1} parent=11 // pred_fallthru
          _
        // Predicated region
        $region25: #{tpu_custom_call.1} parent=11 // pred_check
          %p487 = pneg %p164
        $region26: #{tpu_custom_call.1} parent=11 // pred_check_branch
          %489 = sbr.rel (%p487) target = $region28
        $region27: #{tpu_custom_call.1} parent=11 // pred_region
          _
        $region28: #{tpu_custom_call.1} parent=11 // pred_fallthru
          _
        // Predicated region
        $region29: #{tpu_custom_call.1} parent=11 // pred_check
          %p490 = pneg %p185
        $region30: #{tpu_custom_call.1} parent=11 // pred_check_branch
          %492 = sbr.rel (%p490) target = $region32
        $region31: #{tpu_custom_call.1} parent=11 // pred_region
          _
        $region32: #{tpu_custom_call.1} parent=11 // pred_fallthru
          _
        // Predicated region
        $region33: #{tpu_custom_call.1} parent=11 // pred_check
          %p493 = pneg %p206
        $region34: #{tpu_custom_call.1} parent=11 // pred_check_branch
          %495 = sbr.rel (%p493) target = $region36
        $region35: #{tpu_custom_call.1} parent=11 // pred_region
          _
        $region36: #{tpu_custom_call.1} parent=11 // pred_fallthru
          _
        // Predicated region
        $region37: #{tpu_custom_call.1} parent=11 // pred_check
          %p496 = pneg %p227
        $region38: #{tpu_custom_call.1} parent=11 // pred_check_branch
          %498 = sbr.rel (%p496) target = $region40
        $region39: #{tpu_custom_call.1} parent=11 // pred_region
          _
        $region40: #{tpu_custom_call.1} parent=11 // pred_fallthru
          _
        // Predicated region
        $region41: #{tpu_custom_call.1} parent=11 // pred_check
          %p499 = pneg %p248
        $region42: #{tpu_custom_call.1} parent=11 // pred_check_branch
          %501 = sbr.rel (%p499) target = $region44
        $region43: #{tpu_custom_call.1} parent=11 // pred_region
          _
        $region44: #{tpu_custom_call.1} parent=11 // pred_fallthru
          _
        // Predicated region
        $region45: #{tpu_custom_call.1} parent=11 // pred_check
          %p502 = pneg %p269
        $region46: #{tpu_custom_call.1} parent=11 // pred_check_branch
          %504 = sbr.rel (%p502) target = $region48
        $region47: #{tpu_custom_call.1} parent=11 // pred_region
          _
        $region48: #{tpu_custom_call.1} parent=11 // pred_fallthru
          _
        // Predicated region
        $region49: #{tpu_custom_call.1} parent=11 // pred_check
          %p505 = pneg %p290
        $region50: #{tpu_custom_call.1} parent=11 // pred_check_branch
          %507 = sbr.rel (%p505) target = $region52
        $region51: #{tpu_custom_call.1} parent=11 // pred_region
          _
        $region52: #{tpu_custom_call.1} parent=11 // pred_fallthru
          _
        // Predicated region
        $region53: #{tpu_custom_call.1} parent=11 // pred_check
          %p508 = pneg %p311
        $region54: #{tpu_custom_call.1} parent=11 // pred_check_branch
          %510 = sbr.rel (%p508) target = $region56
        $region55: #{tpu_custom_call.1} parent=11 // pred_region
          _
        $region56: #{tpu_custom_call.1} parent=11 // pred_fallthru
          _
        // Predicated region
        $region57: #{tpu_custom_call.1} parent=11 // pred_check
          %p511 = pneg %p332
        $region58: #{tpu_custom_call.1} parent=11 // pred_check_branch
          %513 = sbr.rel (%p511) target = $region60
        $region59: #{tpu_custom_call.1} parent=11 // pred_region
          _
        $region60: #{tpu_custom_call.1} parent=11 // pred_fallthru
          _
        // Predicated region
        $region61: #{tpu_custom_call.1} parent=11 // pred_check
          %p514 = pneg %p353
        $region62: #{tpu_custom_call.1} parent=11 // pred_check_branch
          %516 = sbr.rel (%p514) target = $region64
        $region63: #{tpu_custom_call.1} parent=11 // pred_region
          _
        $region64: #{tpu_custom_call.1} parent=11 // pred_fallthru
          _
        // Predicated region
        $region65: #{tpu_custom_call.1} parent=11 // pred_check
          %p517 = pneg %p374
        $region66: #{tpu_custom_call.1} parent=11 // pred_check_branch
          %519 = sbr.rel (%p517) target = $region68
        $region67: #{tpu_custom_call.1} parent=11 // pred_region
          _
        $region68: #{tpu_custom_call.1} parent=11 // pred_fallthru
          _
        // Predicated region
        $region69: #{tpu_custom_call.1} parent=11 // pred_check
          %p520 = pneg %p395
        $region70: #{tpu_custom_call.1} parent=11 // pred_check_branch
          %522 = sbr.rel (%p520) target = $region72
        $region71: #{tpu_custom_call.1} parent=11 // pred_region
          _
        $region72: #{tpu_custom_call.1} parent=11 // pred_fallthru
          _
        // Predicated region
        $region73: #{tpu_custom_call.1} parent=11 // pred_check
          %p523 = pneg %p416
        $region74: #{tpu_custom_call.1} parent=11 // pred_check_branch
          %525 = sbr.rel (%p523) target = $region76
        $region75: #{tpu_custom_call.1} parent=11 // pred_region
          _
        $region76: #{tpu_custom_call.1} parent=11 // pred_fallthru
          _
        // Predicated region
        $region77: #{tpu_custom_call.1} parent=11 // pred_check
          %p526 = pneg %p437
        $region78: #{tpu_custom_call.1} parent=11 // pred_check_branch
          %528 = sbr.rel (%p526) target = $region80
        $region79: #{tpu_custom_call.1} parent=11 // pred_region
          _
        $region80: #{tpu_custom_call.1} parent=11 // pred_fallthru
          _
      $region12: #{tpu_custom_call.1} parent=5 // pred_fallthru
        _
      %p529 = scmp.lt.s32.totalorder %s28, 2
      // Predicated region
      $region81: #{tpu_custom_call.1} parent=5 // pred_check
        %p530 = pneg %p529
      $region82: #{tpu_custom_call.1} parent=5 // pred_check_branch
        %532 = sbr.rel (%p530) target = $region84
      $region83: #{tpu_custom_call.1} parent=5 // pred_region
        // Predicated region
        $region85: #{tpu_custom_call.1} parent=83 // pred_check
          %p533 = pneg %p48
        $region86: #{tpu_custom_call.1} parent=83 // pred_check_branch
          %535 = sbr.rel (%p533) target = $region88
        $region87: #{tpu_custom_call.1} parent=83 // pred_region
          %s536 = smul.u32 2, %s28
          %p537 = scmp.lt.s32.totalorder %s536, 3
          %s538 = scalar_select %p537, %s536, 3
          %s539 = smul.addr %s538, 8
          %s540 = scalar_lea.vmem %s0, %s539
          %s541 = smul.u32 2, %s28
        $region88: #{tpu_custom_call.1} parent=83 // pred_fallthru
          _
        // Predicated region
        $region89: #{tpu_custom_call.1} parent=83 // pred_check
          %p542 = pneg %p74
        $region90: #{tpu_custom_call.1} parent=83 // pred_check_branch
          %544 = sbr.rel (%p542) target = $region92
        $region91: #{tpu_custom_call.1} parent=83 // pred_region
          %s545 = smul.u32 16, %s28
          %p546 = scmp.lt.s32.totalorder %s545, 31
          %s547 = scalar_select %p546, %s545, 31
          %s548 = smul.addr %s547, 8
          %s549 = scalar_lea.vmem %s1, %s548
          %s550 = smul.u32 16, %s28
        $region92: #{tpu_custom_call.1} parent=83 // pred_fallthru
          _
      $region84: #{tpu_custom_call.1} parent=5 // pred_fallthru
        _
      %p551 = scmp.le.s32.totalorder 1, %s28
      %p552 = scmp.lt.s32.totalorder %s28, 3
      %p553 = pnand %p551, %p552
      %p554 = pneg %p553
      // Predicated region
      $region93: #{tpu_custom_call.1} parent=5 // pred_check
        _
      $region94: #{tpu_custom_call.1} parent=5 // pred_check_branch
        %556 = sbr.rel (%p553) target = $region96
      $region95: #{tpu_custom_call.1} parent=5 // pred_region
        %s557 = ssub.s32 %s28, 1
        %s558 = smul.u32 2, %s33
        %p559 = scmp.lt.s32.totalorder %s558, 3
        %s560 = scalar_select %p559, %s558, 3
        %s561 = smul.addr %s560, 8
        %s562 = scalar_lea.vmem %s0, %s561
        %p563 = pneg %p54
        %p564 = pneg %p51
        %s565 = smul.u32 16, %s33
        %p566 = scmp.lt.s32.totalorder %s565, 31
        %s567 = scalar_select %p566, %s565, 31
        %s568 = smul.addr %s567, 8
        %s569 = scalar_lea.vmem %s1, %s568
        %p570 = pneg %p80
        %p571 = pneg %p77
        %p572 = pneg %p101
        %p573 = pneg %p98
        %p574 = pneg %p122
        %p575 = pneg %p119
        %p576 = pneg %p143
        %p577 = pneg %p140
        %p578 = pneg %p164
        %p579 = pneg %p161
        %p580 = pneg %p185
        %p581 = pneg %p182
        %p582 = pneg %p206
        %p583 = pneg %p203
        %p584 = pneg %p227
        %p585 = pneg %p224
        %p586 = pneg %p248
        %p587 = pneg %p245
        %p588 = pneg %p269
        %p589 = pneg %p266
        %p590 = pneg %p290
        %p591 = pneg %p287
        %p592 = pneg %p311
        %p593 = pneg %p308
        %p594 = pneg %p332
        %p595 = pneg %p329
        %p596 = pneg %p353
        %p597 = pneg %p350
        %p598 = pneg %p374
        %p599 = pneg %p371
        %p600 = pneg %p395
        %p601 = pneg %p392
        %p602 = pneg %p416
        %p603 = pneg %p413
        %p604 = pneg %p437
        %p605 = pneg %p434
        %p606 = pneg %p463
        %p607 = pneg %p460
        %s608 = sand.u32 %s450, 1
        %s609 = scalar_lea.sflag [#allocation3], %s608
        %s610 = sand.u32 %s450, 1
        %s611 = smul.addr %s610, 16
        %s612 = scalar_lea.vmem [#allocation2], %s611
        %s613 = smul.u32 2, %s33
        %p614 = scmp.lt.s32.totalorder %s613, 3
        %s615 = scalar_select %p614, %s613, 3
        %s616 = smul.addr %s615, 8
        %s617 = scalar_lea.vmem %s0, %s616
        %s618 = smul.u32 2, %s33
        %s619 = smul.u32 16, %s33
        %p620 = scmp.lt.s32.totalorder %s619, 31
        %s621 = scalar_select %p620, %s619, 31
        %s622 = smul.addr %s621, 8
        %s623 = scalar_lea.vmem %s1, %s622
        %s624 = smul.u32 16, %s33
        %s625 = smul.u32 2, %s33
        %v626 = vld [vmem:[%s617] sm:$0xff]
        %v627 = vld [vmem:[%s617 + $0x8] sm:$0xff]
        %v628 = vld [vmem:[%s623] sm:$0xff]
        %v629 = vld [vmem:[%s623 + $0x8] sm:$0xff]
        %v630 = vld [vmem:[%s623 + $0x10] sm:$0xff]
        %v631 = vld [vmem:[%s623 + $0x18] sm:$0xff]
        %v632 = vld [vmem:[%s623 + $0x20] sm:$0xff]
        %v633 = vld [vmem:[%s623 + $0x28] sm:$0xff]
        %v634 = vld [vmem:[%s623 + $0x30] sm:$0xff]
        %v635 = vld [vmem:[%s623 + $0x38] sm:$0xff]
        %v636 = vld [vmem:[%s623 + $0x40] sm:$0xff]
        %v637 = vld [vmem:[%s623 + $0x48] sm:$0xff]
        %v638 = vld [vmem:[%s623 + $0x50] sm:$0xff]
        %v639 = vld [vmem:[%s623 + $0x58] sm:$0xff]
        %v640 = vld [vmem:[%s623 + $0x60] sm:$0xff]
        %v641 = vld [vmem:[%s623 + $0x68] sm:$0xff]
        %v642 = vld [vmem:[%s623 + $0x70] sm:$0xff]
        %v643 = vld [vmem:[%s623 + $0x78] sm:$0xff]
        %vm644 = vcmask 261120
        %v645 = vsel %vm644, %v626, 0.0
        %646 = vadd.xlane.f32.xlu0 %v645
        %v647 = vpop.xlane.xlu0 %646
        %v648 = vsel %vm644, %v627, 0.0
        %649 = vadd.xlane.f32.xlu0 %v648
        %v650 = vpop.xlane.xlu0 %649
        %v651 = vrcp.pop 32.0
        %v652 = vmul.f32 32.0, %v651
        %v653 = vsub.f32 1.0, %v652
        %v654 = vmul.f32 %v651, %v653
        %v655 = vadd.f32 %v651, %v654
        %vm656 = vweird.f32 %v651
        %v657 = vsel %vm656, %v651, %v655
        %v658 = vmul.f32 %v647, %v657
        %v659 = vmul.f32 %v650, %v657
        %v660 = vsub.f32 %v626, %v658
        %v661 = vsub.f32 %v627, %v659
        %v662 = vmul.f32 %v660, %v660
        %v663 = vmul.f32 %v661, %v661
        %v664 = vsel %vm644, %v662, 0.0
        %665 = vadd.xlane.f32.xlu0 %v664
        %v666 = vpop.xlane.xlu0 %665
        %v667 = vsel %vm644, %v663, 0.0
        %668 = vadd.xlane.f32.xlu0 %v667
        %v669 = vpop.xlane.xlu0 %668
        %v670 = vmul.f32 %v666, %v657
        %v671 = vmul.f32 %v669, %v657
        %v672 = vadd.f32 %v670, 1e-05
        %v673 = vadd.f32 %v671, 1e-05
        %v674 = vrsqrt.pop %v672
        %v675 = vmul.f32 %v674, %v672
        %v676 = vmul.f32 %v675, %v674
        %v677 = vmul.f32 0.5, %v676
        %v678 = vsub.f32 1.5, %v677
        %v679 = vmul.f32 %v674, %v678
        %vm680 = vweird.f32 %v672
        %vm681 = vweird.f32 %v674
        %vm682 = vmor %vm680, %vm681
        %v683 = vsel %vm682, %v674, %v679
        %v684 = vrsqrt.pop %v673
        %v685 = vmul.f32 %v684, %v673
        %v686 = vmul.f32 %v685, %v684
        %v687 = vmul.f32 0.5, %v686
        %v688 = vsub.f32 1.5, %v687
        %v689 = vmul.f32 %v684, %v688
        %vm690 = vweird.f32 %v673
        %vm691 = vweird.f32 %v684
        %vm692 = vmor %vm690, %vm691
        %v693 = vsel %vm692, %v684, %v689
        %v694 = vmul.f32 %v660, %v683
        %v695 = vmul.f32 %v661, %v693
        %v696 = vld [vmem:[%s2] sm:$0x1]
        %v698 = vperm.slane %v696, 0
        %v700 = vmul.f32 %v694, %v698
        %v701 = vmul.f32 %v695, %v698
        %v702 = vld [vmem:[%s3] sm:$0x1]
        %v704 = vperm.slane %v702, 0
        %v706 = vadd.f32 %v700, %v704
        %v707 = vadd.f32 %v701, %v704
        %v708 = vld [vmem:[%s4] sm:$0xff]
        %v709 = vld [vmem:[%s4 + $0x8] sm:$0xff]
        %v710 = vld [vmem:[%s4 + $0x10] sm:$0xff]
        %v711 = vld [vmem:[%s4 + $0x18] sm:$0xff]
        %v713 = vsel %vm644, %v706, 0
        %v716 = vsel %vm644, %v707, 0
        %718 = vmatpush.msra.mxu0 0.0
        %719 = vmatpush.msra.mxu0 0.0
        %720 = vmatpush.msra.mxu0 0.0
        %721 = vmatpush.msra.mxu0 0.0
        %722 = vmatpush.msra.mxu0 0.0
        %723 = vmatpush.msra.mxu0 0.0
        %724 = vmatpush.msra.mxu0 0.0
        %725 = vmatpush.msra.mxu0 0.0
        %726 = vmatpush.msra.mxu0 0.0
        %727 = vmatpush.msra.mxu0 0.0
        %728 = vmatpush.msra.mxu0 0.0
        %729 = vmatpush.msra.mxu0 0.0
        %730 = vmatpush.msra.mxu0 %v711
        %731 = vmatpush.msra.mxu0 %v710
        %732 = vmatpush.msra.mxu0 %v709
        %733 = vmatpush.msra.mxu0 %v708
        %734 = vmatmul.f32.gmra.mxu0 %v713
        %v735 = vpop.f32.mrf.mxu0
        %v736 = vadd.f32 0.0, %v735
        %737 = vmatmul.f32.gmra.mxu0 %v716
        %v738 = vpop.f32.mrf.mxu0
        %v739 = vadd.f32 0.0, %v738
        %740 = vdwg.mxu0
        %743 = vrot.lane.b32.xlu0 %v736, 96
        %v744 = vpop.permute.xlu0 %743
        %745 = vrot.lane.b32.xlu0 %v739, 96
        %v746 = vpop.permute.xlu0 %745
        %vm747 = vcmask 64512
        %v748 = vsel %vm747, %v736, 0
        %v750 = vsel %vm747, %v739, 0
        %v752 = vsel %vm747, %v744, 0
        %v754 = vsel %vm747, %v746, 0
        %756 = vmatpush.xpose.msra.mxu0 0.0
        %757 = vmatpush.xpose.msra.mxu0 0.0
        %758 = vmatpush.xpose.msra.mxu0 0.0
        %759 = vmatpush.xpose.msra.mxu0 0.0
        %760 = vmatpush.xpose.msra.mxu0 0.0
        %761 = vmatpush.xpose.msra.mxu0 0.0
        %762 = vmatpush.xpose.msra.mxu0 0.0
        %763 = vmatpush.xpose.msra.mxu0 0.0
        %764 = vmatpush.xpose.msra.mxu0 0.0
        %765 = vmatpush.xpose.msra.mxu0 0.0
        %766 = vmatpush.xpose.msra.mxu0 0.0
        %767 = vmatpush.xpose.msra.mxu0 0.0
        %768 = vmatpush.xpose.msra.mxu0 0.0
        %769 = vmatpush.xpose.msra.mxu0 0.0
        %770 = vmatpush.xpose.msra.mxu0 %v754
        %771 = vmatpush.xpose.msra.mxu0 %v752
        %772 = vmatmul.f32.gmra.mxu0 %v748
        %v773 = vpop.f32.mrf.mxu0
        %v774 = vadd.f32 0.0, %v773
        %775 = vmatmul.f32.gmra.mxu0 %v750
        %v776 = vpop.f32.mrf.mxu0
        %v777 = vadd.f32 0.0, %v776
        %778 = vdwg.mxu0
        %779 = vrot.lane.b32.xlu0 %v736, 120
        %v780 = vpop.permute.xlu0 %779
        %781 = vrot.lane.b32.xlu0 %v739, 120
        %v782 = vpop.permute.xlu0 %781
        %783 = vrot.lane.b32.xlu0 %v736, 88
        %v784 = vpop.permute.xlu0 %783
        %785 = vrot.lane.b32.xlu0 %v739, 88
        %v786 = vpop.permute.xlu0 %785
        %v787 = vsel %vm747, %v780, 0
        %v789 = vsel %vm747, %v782, 0
        %v791 = vsel %vm747, %v784, 0
        %v793 = vsel %vm747, %v786, 0
        %795 = vmatpush.xpose.msra.mxu0 0.0
        %796 = vmatpush.xpose.msra.mxu0 0.0
        %797 = vmatpush.xpose.msra.mxu0 0.0
        %798 = vmatpush.xpose.msra.mxu0 0.0
        %799 = vmatpush.xpose.msra.mxu0 0.0
        %800 = vmatpush.xpose.msra.mxu0 0.0
        %801 = vmatpush.xpose.msra.mxu0 0.0
        %802 = vmatpush.xpose.msra.mxu0 0.0
        %803 = vmatpush.xpose.msra.mxu0 0.0
        %804 = vmatpush.xpose.msra.mxu0 0.0
        %805 = vmatpush.xpose.msra.mxu0 0.0
        %806 = vmatpush.xpose.msra.mxu0 0.0
        %807 = vmatpush.xpose.msra.mxu0 0.0
        %808 = vmatpush.xpose.msra.mxu0 0.0
        %809 = vmatpush.xpose.msra.mxu0 %v793
        %810 = vmatpush.xpose.msra.mxu0 %v791
        %811 = vmatmul.f32.gmra.mxu0 %v787
        %v812 = vpop.f32.mrf.mxu0
        %v813 = vadd.f32 0.0, %v812
        %814 = vmatmul.f32.gmra.mxu0 %v789
        %v815 = vpop.f32.mrf.mxu0
        %v816 = vadd.f32 0.0, %v815
        %817 = vdwg.mxu0
        %818 = vrot.lane.b32.xlu0 %v736, 112
        %v819 = vpop.permute.xlu0 %818
        %820 = vrot.lane.b32.xlu0 %v739, 112
        %v821 = vpop.permute.xlu0 %820
        %822 = vrot.lane.b32.xlu0 %v736, 80
        %v823 = vpop.permute.xlu0 %822
        %824 = vrot.lane.b32.xlu0 %v739, 80
        %v825 = vpop.permute.xlu0 %824
        %v826 = vsel %vm747, %v819, 0
        %v828 = vsel %vm747, %v821, 0
        %v830 = vsel %vm747, %v823, 0
        %v832 = vsel %vm747, %v825, 0
        %834 = vmatpush.xpose.msra.mxu0 0.0
        %835 = vmatpush.xpose.msra.mxu0 0.0
        %836 = vmatpush.xpose.msra.mxu0 0.0
        %837 = vmatpush.xpose.msra.mxu0 0.0
        %838 = vmatpush.xpose.msra.mxu0 0.0
        %839 = vmatpush.xpose.msra.mxu0 0.0
        %840 = vmatpush.xpose.msra.mxu0 0.0
        %841 = vmatpush.xpose.msra.mxu0 0.0
        %842 = vmatpush.xpose.msra.mxu0 0.0
        %843 = vmatpush.xpose.msra.mxu0 0.0
        %844 = vmatpush.xpose.msra.mxu0 0.0
        %845 = vmatpush.xpose.msra.mxu0 0.0
        %846 = vmatpush.xpose.msra.mxu0 0.0
        %847 = vmatpush.xpose.msra.mxu0 0.0
        %848 = vmatpush.xpose.msra.mxu0 %v832
        %849 = vmatpush.xpose.msra.mxu0 %v830
        %850 = vmatmul.f32.gmra.mxu0 %v826
        %v851 = vpop.f32.mrf.mxu0
        %v852 = vadd.f32 0.0, %v851
        %853 = vmatmul.f32.gmra.mxu0 %v828
        %v854 = vpop.f32.mrf.mxu0
        %v855 = vadd.f32 0.0, %v854
        %856 = vdwg.mxu0
        %857 = vrot.lane.b32.xlu0 %v736, 104
        %v858 = vpop.permute.xlu0 %857
        %859 = vrot.lane.b32.xlu0 %v739, 104
        %v860 = vpop.permute.xlu0 %859
        %861 = vrot.lane.b32.xlu0 %v736, 72
        %v862 = vpop.permute.xlu0 %861
        %863 = vrot.lane.b32.xlu0 %v739, 72
        %v864 = vpop.permute.xlu0 %863
        %v865 = vsel %vm747, %v858, 0
        %v867 = vsel %vm747, %v860, 0
        %v869 = vsel %vm747, %v862, 0
        %v871 = vsel %vm747, %v864, 0
        %873 = vmatpush.xpose.msra.mxu0 0.0
        %874 = vmatpush.xpose.msra.mxu0 0.0
        %875 = vmatpush.xpose.msra.mxu0 0.0
        %876 = vmatpush.xpose.msra.mxu0 0.0
        %877 = vmatpush.xpose.msra.mxu0 0.0
        %878 = vmatpush.xpose.msra.mxu0 0.0
        %879 = vmatpush.xpose.msra.mxu0 0.0
        %880 = vmatpush.xpose.msra.mxu0 0.0
        %881 = vmatpush.xpose.msra.mxu0 0.0
        %882 = vmatpush.xpose.msra.mxu0 0.0
        %883 = vmatpush.xpose.msra.mxu0 0.0
        %884 = vmatpush.xpose.msra.mxu0 0.0
        %885 = vmatpush.xpose.msra.mxu0 0.0
        %886 = vmatpush.xpose.msra.mxu0 0.0
        %887 = vmatpush.xpose.msra.mxu0 %v871
        %888 = vmatpush.xpose.msra.mxu0 %v869
        %889 = vmatmul.f32.gmra.mxu0 %v865
        %v890 = vpop.f32.mrf.mxu0
        %v891 = vadd.f32 0.0, %v890
        %892 = vmatmul.f32.gmra.mxu0 %v867
        %v893 = vpop.f32.mrf.mxu0
        %v894 = vadd.f32 0.0, %v893
        %895 = vdwg.mxu0
        %v896 = vmul.f32 %v774, 0.35355338
        %v897 = vmul.f32 %v777, 0.35355338
        %v898 = vmul.f32 %v813, 0.35355338
        %v899 = vmul.f32 %v816, 0.35355338
        %v900 = vmul.f32 %v852, 0.35355338
        %v901 = vmul.f32 %v855, 0.35355338
        %v902 = vmul.f32 %v891, 0.35355338
        %v903 = vmul.f32 %v894, 0.35355338
        %vm904 = vcmask 130048
        %v905 = vsel %vm904, %v896, -inf
        %906 = vmax.xlane.f32.xlu0 %v905
        %v907 = vpop.xlane.xlu0 %906
        %v908 = vsel %vm904, %v897, -inf
        %909 = vmax.xlane.f32.xlu0 %v908
        %v910 = vpop.xlane.xlu0 %909
        %v911 = vsel %vm904, %v898, -inf
        %912 = vmax.xlane.f32.xlu0 %v911
        %v913 = vpop.xlane.xlu0 %912
        %v914 = vsel %vm904, %v899, -inf
        %915 = vmax.xlane.f32.xlu0 %v914
        %v916 = vpop.xlane.xlu0 %915
        %v917 = vsel %vm904, %v900, -inf
        %918 = vmax.xlane.f32.xlu0 %v917
        %v919 = vpop.xlane.xlu0 %918
        %v920 = vsel %vm904, %v901, -inf
        %921 = vmax.xlane.f32.xlu0 %v920
        %v922 = vpop.xlane.xlu0 %921
        %v923 = vsel %vm904, %v902, -inf
        %924 = vmax.xlane.f32.xlu0 %v923
        %v925 = vpop.xlane.xlu0 %924
        %v926 = vsel %vm904, %v903, -inf
        %927 = vmax.xlane.f32.xlu0 %v926
        %v928 = vpop.xlane.xlu0 %927
        %v929 = vsub.f32 %v896, %v907
        %v930 = vsub.f32 %v897, %v910
        %v931 = vsub.f32 %v898, %v913
        %v932 = vsub.f32 %v899, %v916
        %v933 = vsub.f32 %v900, %v919
        %v934 = vsub.f32 %v901, %v922
        %v935 = vsub.f32 %v902, %v925
        %v936 = vsub.f32 %v903, %v928
        %v937 = vmul.f32 %v929, 1.442695
        %v938 = vpow.pop %v937
        %v939 = vmul.f32 %v930, 1.442695
        %v940 = vpow.pop %v939
        %v941 = vmul.f32 %v931, 1.442695
        %v942 = vpow.pop %v941
        %v943 = vmul.f32 %v932, 1.442695
        %v944 = vpow.pop %v943
        %v945 = vmul.f32 %v933, 1.442695
        %v946 = vpow.pop %v945
        %v947 = vmul.f32 %v934, 1.442695
        %v948 = vpow.pop %v947
        %v949 = vmul.f32 %v935, 1.442695
        %v950 = vpow.pop %v949
        %v951 = vmul.f32 %v936, 1.442695
        %v952 = vpow.pop %v951
        %v953 = vsel %vm904, %v938, 0.0
        %954 = vadd.xlane.f32.xlu0 %v953
        %v955 = vpop.xlane.xlu0 %954
        %v956 = vsel %vm904, %v940, 0.0
        %957 = vadd.xlane.f32.xlu0 %v956
        %v958 = vpop.xlane.xlu0 %957
        %v959 = vsel %vm904, %v942, 0.0
        %960 = vadd.xlane.f32.xlu0 %v959
        %v961 = vpop.xlane.xlu0 %960
        %v962 = vsel %vm904, %v944, 0.0
        %963 = vadd.xlane.f32.xlu0 %v962
        %v964 = vpop.xlane.xlu0 %963
        %v965 = vsel %vm904, %v946, 0.0
        %966 = vadd.xlane.f32.xlu0 %v965
        %v967 = vpop.xlane.xlu0 %966
        %v968 = vsel %vm904, %v948, 0.0
        %969 = vadd.xlane.f32.xlu0 %v968
        %v970 = vpop.xlane.xlu0 %969
        %v971 = vsel %vm904, %v950, 0.0
        %972 = vadd.xlane.f32.xlu0 %v971
        %v973 = vpop.xlane.xlu0 %972
        %v974 = vsel %vm904, %v952, 0.0
        %975 = vadd.xlane.f32.xlu0 %v974
        %v976 = vpop.xlane.xlu0 %975
        %v977 = vrcp.pop %v955
        %v978 = vmul.f32 %v955, %v977
        %v979 = vsub.f32 1.0, %v978
        %v980 = vmul.f32 %v977, %v979
        %v981 = vadd.f32 %v977, %v980
        %vm982 = vweird.f32 %v955
        %vm983 = vweird.f32 %v977
        %vm984 = vmor %vm982, %vm983
        %v985 = vsel %vm984, %v977, %v981
        %v986 = vand.u32 2147483647, %v955
        %vm987 = vcmp.eq.f32.partialorder %v986, 8.507059e+37
        %v988 = vand.u32 %v955, 2147483648
        %v989 = vor.u32 1.1754944e-38, %v988
        %v990 = vsel %vm987, %v989, %v985
        %v991 = vrcp.pop %v958
        %v992 = vmul.f32 %v958, %v991
        %v993 = vsub.f32 1.0, %v992
        %v994 = vmul.f32 %v991, %v993
        %v995 = vadd.f32 %v991, %v994
        %vm996 = vweird.f32 %v958
        %vm997 = vweird.f32 %v991
        %vm998 = vmor %vm996, %vm997
        %v999 = vsel %vm998, %v991, %v995
        %v1000 = vand.u32 2147483647, %v958
        %vm1001 = vcmp.eq.f32.partialorder %v1000, 8.507059e+37
        %v1002 = vand.u32 %v958, 2147483648
        %v1003 = vor.u32 1.1754944e-38, %v1002
        %v1004 = vsel %vm1001, %v1003, %v999
        %v1005 = vrcp.pop %v961
        %v1006 = vmul.f32 %v961, %v1005
        %v1007 = vsub.f32 1.0, %v1006
        %v1008 = vmul.f32 %v1005, %v1007
        %v1009 = vadd.f32 %v1005, %v1008
        %vm1010 = vweird.f32 %v961
        %vm1011 = vweird.f32 %v1005
        %vm1012 = vmor %vm1010, %vm1011
        %v1013 = vsel %vm1012, %v1005, %v1009
        %v1014 = vand.u32 2147483647, %v961
        %vm1015 = vcmp.eq.f32.partialorder %v1014, 8.507059e+37
        %v1016 = vand.u32 %v961, 2147483648
        %v1017 = vor.u32 1.1754944e-38, %v1016
        %v1018 = vsel %vm1015, %v1017, %v1013
        %v1019 = vrcp.pop %v964
        %v1020 = vmul.f32 %v964, %v1019
        %v1021 = vsub.f32 1.0, %v1020
        %v1022 = vmul.f32 %v1019, %v1021
        %v1023 = vadd.f32 %v1019, %v1022
        %vm1024 = vweird.f32 %v964
        %vm1025 = vweird.f32 %v1019
        %vm1026 = vmor %vm1024, %vm1025
        %v1027 = vsel %vm1026, %v1019, %v1023
        %v1028 = vand.u32 2147483647, %v964
        %vm1029 = vcmp.eq.f32.partialorder %v1028, 8.507059e+37
        %v1030 = vand.u32 %v964, 2147483648
        %v1031 = vor.u32 1.1754944e-38, %v1030
        %v1032 = vsel %vm1029, %v1031, %v1027
        %v1033 = vrcp.pop %v967
        %v1034 = vmul.f32 %v967, %v1033
        %v1035 = vsub.f32 1.0, %v1034
        %v1036 = vmul.f32 %v1033, %v1035
        %v1037 = vadd.f32 %v1033, %v1036
        %vm1038 = vweird.f32 %v967
        %vm1039 = vweird.f32 %v1033
        %vm1040 = vmor %vm1038, %vm1039
        %v1041 = vsel %vm1040, %v1033, %v1037
        %v1042 = vand.u32 2147483647, %v967
        %vm1043 = vcmp.eq.f32.partialorder %v1042, 8.507059e+37
        %v1044 = vand.u32 %v967, 2147483648
        %v1045 = vor.u32 1.1754944e-38, %v1044
        %v1046 = vsel %vm1043, %v1045, %v1041
        %v1047 = vrcp.pop %v970
        %v1048 = vmul.f32 %v970, %v1047
        %v1049 = vsub.f32 1.0, %v1048
        %v1050 = vmul.f32 %v1047, %v1049
        %v1051 = vadd.f32 %v1047, %v1050
        %vm1052 = vweird.f32 %v970
        %vm1053 = vweird.f32 %v1047
        %vm1054 = vmor %vm1052, %vm1053
        %v1055 = vsel %vm1054, %v1047, %v1051
        %v1056 = vand.u32 2147483647, %v970
        %vm1057 = vcmp.eq.f32.partialorder %v1056, 8.507059e+37
        %v1058 = vand.u32 %v970, 2147483648
        %v1059 = vor.u32 1.1754944e-38, %v1058
        %v1060 = vsel %vm1057, %v1059, %v1055
        %v1061 = vrcp.pop %v973
        %v1062 = vmul.f32 %v973, %v1061
        %v1063 = vsub.f32 1.0, %v1062
        %v1064 = vmul.f32 %v1061, %v1063
        %v1065 = vadd.f32 %v1061, %v1064
        %vm1066 = vweird.f32 %v973
        %vm1067 = vweird.f32 %v1061
        %vm1068 = vmor %vm1066, %vm1067
        %v1069 = vsel %vm1068, %v1061, %v1065
        %v1070 = vand.u32 2147483647, %v973
        %vm1071 = vcmp.eq.f32.partialorder %v1070, 8.507059e+37
        %v1072 = vand.u32 %v973, 2147483648
        %v1073 = vor.u32 1.1754944e-38, %v1072
        %v1074 = vsel %vm1071, %v1073, %v1069
        %v1075 = vrcp.pop %v976
        %v1076 = vmul.f32 %v976, %v1075
        %v1077 = vsub.f32 1.0, %v1076
        %v1078 = vmul.f32 %v1075, %v1077
        %v1079 = vadd.f32 %v1075, %v1078
        %vm1080 = vweird.f32 %v976
        %vm1081 = vweird.f32 %v1075
        %vm1082 = vmor %vm1080, %vm1081
        %v1083 = vsel %vm1082, %v1075, %v1079
        %v1084 = vand.u32 2147483647, %v976
        %vm1085 = vcmp.eq.f32.partialorder %v1084, 8.507059e+37
        %v1086 = vand.u32 %v976, 2147483648
        %v1087 = vor.u32 1.1754944e-38, %v1086
        %v1088 = vsel %vm1085, %v1087, %v1083
        %v1089 = vmul.f32 %v938, %v990
        %v1090 = vmul.f32 %v940, %v1004
        %v1091 = vmul.f32 %v942, %v1018
        %v1092 = vmul.f32 %v944, %v1032
        %v1093 = vmul.f32 %v946, %v1046
        %v1094 = vmul.f32 %v948, %v1060
        %v1095 = vmul.f32 %v950, %v1074
        %v1096 = vmul.f32 %v952, %v1088
        %1097 = vrot.lane.b32.xlu0 %v736, 64
        %v1098 = vpop.permute.xlu0 %1097
        %1099 = vrot.lane.b32.xlu0 %v739, 64
        %v1100 = vpop.permute.xlu0 %1099
        %v1104 = vsel %vm904, %v1089, 0
        %v1107 = vsel %vm904, %v1090, 0
        %1109 = vmatpush.msra.mxu0 0.0
        %1110 = vmatpush.msra.mxu0 0.0
        %1111 = vmatpush.msra.mxu0 0.0
        %1112 = vmatpush.msra.mxu0 0.0
        %1113 = vmatpush.msra.mxu0 0.0
        %1114 = vmatpush.msra.mxu0 0.0
        %1115 = vmatpush.msra.mxu0 0.0
        %1116 = vmatpush.msra.mxu0 0.0
        %1117 = vmatpush.msra.mxu0 0.0
        %1118 = vmatpush.msra.mxu0 0.0
        %1119 = vmatpush.msra.mxu0 0.0
        %1120 = vmatpush.msra.mxu0 0.0
        %1121 = vmatpush.msra.mxu0 0.0
        %1122 = vmatpush.msra.mxu0 0.0
        %1123 = vmatpush.msra.mxu0 %v1100
        %1124 = vmatpush.msra.mxu0 %v1098
        %1125 = vmatmul.f32.gmra.mxu0 %v1104
        %v1126 = vpop.f32.mrf.mxu0
        %v1127 = vadd.f32 0.0, %v1126
        %1128 = vmatmul.f32.gmra.mxu0 %v1107
        %v1129 = vpop.f32.mrf.mxu0
        %v1130 = vadd.f32 0.0, %v1129
        %1131 = vdwg.mxu0
        %1132 = vrot.lane.b32.xlu0 %v736, 56
        %v1133 = vpop.permute.xlu0 %1132
        %1134 = vrot.lane.b32.xlu0 %v739, 56
        %v1135 = vpop.permute.xlu0 %1134
        %v1139 = vsel %vm904, %v1091, 0
        %v1142 = vsel %vm904, %v1092, 0
        %1144 = vmatpush.msra.mxu0 0.0
        %1145 = vmatpush.msra.mxu0 0.0
        %1146 = vmatpush.msra.mxu0 0.0
        %1147 = vmatpush.msra.mxu0 0.0
        %1148 = vmatpush.msra.mxu0 0.0
        %1149 = vmatpush.msra.mxu0 0.0
        %1150 = vmatpush.msra.mxu0 0.0
        %1151 = vmatpush.msra.mxu0 0.0
        %1152 = vmatpush.msra.mxu0 0.0
        %1153 = vmatpush.msra.mxu0 0.0
        %1154 = vmatpush.msra.mxu0 0.0
        %1155 = vmatpush.msra.mxu0 0.0
        %1156 = vmatpush.msra.mxu0 0.0
        %1157 = vmatpush.msra.mxu0 0.0
        %1158 = vmatpush.msra.mxu0 %v1135
        %1159 = vmatpush.msra.mxu0 %v1133
        %1160 = vmatmul.f32.gmra.mxu0 %v1139
        %v1161 = vpop.f32.mrf.mxu0
        %v1162 = vadd.f32 0.0, %v1161
        %1163 = vmatmul.f32.gmra.mxu0 %v1142
        %v1164 = vpop.f32.mrf.mxu0
        %v1165 = vadd.f32 0.0, %v1164
        %1166 = vdwg.mxu0
        %1167 = vrot.lane.b32.xlu0 %v736, 48
        %v1168 = vpop.permute.xlu0 %1167
        %1169 = vrot.lane.b32.xlu0 %v739, 48
        %v1170 = vpop.permute.xlu0 %1169
        %v1174 = vsel %vm904, %v1093, 0
        %v1177 = vsel %vm904, %v1094, 0
        %1179 = vmatpush.msra.mxu0 0.0
        %1180 = vmatpush.msra.mxu0 0.0
        %1181 = vmatpush.msra.mxu0 0.0
        %1182 = vmatpush.msra.mxu0 0.0
        %1183 = vmatpush.msra.mxu0 0.0
        %1184 = vmatpush.msra.mxu0 0.0
        %1185 = vmatpush.msra.mxu0 0.0
        %1186 = vmatpush.msra.mxu0 0.0
        %1187 = vmatpush.msra.mxu0 0.0
        %1188 = vmatpush.msra.mxu0 0.0
        %1189 = vmatpush.msra.mxu0 0.0
        %1190 = vmatpush.msra.mxu0 0.0
        %1191 = vmatpush.msra.mxu0 0.0
        %1192 = vmatpush.msra.mxu0 0.0
        %1193 = vmatpush.msra.mxu0 %v1170
        %1194 = vmatpush.msra.mxu0 %v1168
        %1195 = vmatmul.f32.gmra.mxu0 %v1174
        %v1196 = vpop.f32.mrf.mxu0
        %v1197 = vadd.f32 0.0, %v1196
        %1198 = vmatmul.f32.gmra.mxu0 %v1177
        %v1199 = vpop.f32.mrf.mxu0
        %v1200 = vadd.f32 0.0, %v1199
        %1201 = vdwg.mxu0
        %1202 = vrot.lane.b32.xlu0 %v736, 40
        %v1203 = vpop.permute.xlu0 %1202
        %1204 = vrot.lane.b32.xlu0 %v739, 40
        %v1205 = vpop.permute.xlu0 %1204
        %v1209 = vsel %vm904, %v1095, 0
        %v1212 = vsel %vm904, %v1096, 0
        %1214 = vmatpush.msra.mxu0 0.0
        %1215 = vmatpush.msra.mxu0 0.0
        %1216 = vmatpush.msra.mxu0 0.0
        %1217 = vmatpush.msra.mxu0 0.0
        %1218 = vmatpush.msra.mxu0 0.0
        %1219 = vmatpush.msra.mxu0 0.0
        %1220 = vmatpush.msra.mxu0 0.0
        %1221 = vmatpush.msra.mxu0 0.0
        %1222 = vmatpush.msra.mxu0 0.0
        %1223 = vmatpush.msra.mxu0 0.0
        %1224 = vmatpush.msra.mxu0 0.0
        %1225 = vmatpush.msra.mxu0 0.0
        %1226 = vmatpush.msra.mxu0 0.0
        %1227 = vmatpush.msra.mxu0 0.0
        %1228 = vmatpush.msra.mxu0 %v1205
        %1229 = vmatpush.msra.mxu0 %v1203
        %1230 = vmatmul.f32.gmra.mxu0 %v1209
        %v1231 = vpop.f32.mrf.mxu0
        %v1232 = vadd.f32 0.0, %v1231
        %1233 = vmatmul.f32.gmra.mxu0 %v1212
        %v1234 = vpop.f32.mrf.mxu0
        %v1235 = vadd.f32 0.0, %v1234
        %1236 = vdwg.mxu0
        %1239 = vrot.lane.b32.xlu0 %v1162, 8
        %v1240 = vpop.permute.xlu0 %1239
        %1241 = vrot.lane.b32.xlu0 %v1165, 8
        %v1242 = vpop.permute.xlu0 %1241
        %1247 = vrot.lane.b32.xlu0 %v1197, 16
        %v1248 = vpop.permute.xlu0 %1247
        %1249 = vrot.lane.b32.xlu0 %v1200, 16
        %v1250 = vpop.permute.xlu0 %1249
        %1255 = vrot.lane.b32.xlu0 %v1232, 24
        %v1256 = vpop.permute.xlu0 %1255
        %1257 = vrot.lane.b32.xlu0 %v1235, 24
        %v1258 = vpop.permute.xlu0 %1257
        %v1261 = vsel %vm747, %v1127, %v1240
        %v1262 = vsel %vm747, %v1130, %v1242
        %v1263 = vsel %vm904, %v1261, %v1248
        %v1264 = vsel %vm904, %v1262, %v1250
        %vm1265 = vcmask 195584
        %v1266 = vsel %vm1265, %v1263, %v1256
        %v1267 = vsel %vm1265, %v1264, %v1258
        %v1268 = vld [vmem:[%s5] sm:$0xff]
        %v1269 = vld [vmem:[%s5 + $0x8] sm:$0xff]
        %v1270 = vld [vmem:[%s5 + $0x10] sm:$0xff]
        %v1271 = vld [vmem:[%s5 + $0x18] sm:$0xff]
        %v1272 = vld [vmem:[%s6] sm:$0x1]
        %v1274 = vperm.slane %v1272, 0
        %v1277 = vsel %vm644, %v1266, 0
        %v1280 = vsel %vm644, %v1267, 0
        %1282 = vmatpush.msra.mxu0 0.0
        %1283 = vmatpush.msra.mxu0 0.0
        %1284 = vmatpush.msra.mxu0 0.0
        %1285 = vmatpush.msra.mxu0 0.0
        %1286 = vmatpush.msra.mxu0 0.0
        %1287 = vmatpush.msra.mxu0 0.0
        %1288 = vmatpush.msra.mxu0 0.0
        %1289 = vmatpush.msra.mxu0 0.0
        %1290 = vmatpush.msra.mxu0 0.0
        %1291 = vmatpush.msra.mxu0 0.0
        %1292 = vmatpush.msra.mxu0 0.0
        %1293 = vmatpush.msra.mxu0 0.0
        %1294 = vmatpush.msra.mxu0 %v1271
        %1295 = vmatpush.msra.mxu0 %v1270
        %1296 = vmatpush.msra.mxu0 %v1269
        %1297 = vmatpush.msra.mxu0 %v1268
        %1298 = vmatmul.f32.gmra.mxu0 %v1277
        %v1299 = vpop.f32.mrf.mxu0
        %v1300 = vadd.f32 %v1274, %v1299
        %1301 = vmatmul.f32.gmra.mxu0 %v1280
        %v1302 = vpop.f32.mrf.mxu0
        %v1303 = vadd.f32 %v1274, %v1302
        %1304 = vdwg.mxu0
        %v1305 = vadd.f32 %v1300, %v626
        %v1306 = vadd.f32 %v1303, %v627
        %v1307 = vsel %vm644, %v1305, 0.0
        %1308 = vadd.xlane.f32.xlu0 %v1307
        %v1309 = vpop.xlane.xlu0 %1308
        %v1310 = vsel %vm644, %v1306, 0.0
        %1311 = vadd.xlane.f32.xlu0 %v1310
        %v1312 = vpop.xlane.xlu0 %1311
        %v1313 = vmul.f32 %v1309, %v657
        %v1314 = vmul.f32 %v1312, %v657
        %v1315 = vsub.f32 %v1305, %v1313
        %v1316 = vsub.f32 %v1306, %v1314
        %v1317 = vmul.f32 %v1315, %v1315
        %v1318 = vmul.f32 %v1316, %v1316
        %v1319 = vsel %vm644, %v1317, 0.0
        %1320 = vadd.xlane.f32.xlu0 %v1319
        %v1321 = vpop.xlane.xlu0 %1320
        %v1322 = vsel %vm644, %v1318, 0.0
        %1323 = vadd.xlane.f32.xlu0 %v1322
        %v1324 = vpop.xlane.xlu0 %1323
        %v1325 = vmul.f32 %v1321, %v657
        %v1326 = vmul.f32 %v1324, %v657
        %v1327 = vadd.f32 %v1325, 1e-05
        %v1328 = vadd.f32 %v1326, 1e-05
        %v1329 = vrsqrt.pop %v1327
        %v1330 = vmul.f32 %v1329, %v1327
        %v1331 = vmul.f32 %v1330, %v1329
        %v1332 = vmul.f32 0.5, %v1331
        %v1333 = vsub.f32 1.5, %v1332
        %v1334 = vmul.f32 %v1329, %v1333
        %vm1335 = vweird.f32 %v1327
        %vm1336 = vweird.f32 %v1329
        %vm1337 = vmor %vm1335, %vm1336
        %v1338 = vsel %vm1337, %v1329, %v1334
        %v1339 = vrsqrt.pop %v1328
        %v1340 = vmul.f32 %v1339, %v1328
        %v1341 = vmul.f32 %v1340, %v1339
        %v1342 = vmul.f32 0.5, %v1341
        %v1343 = vsub.f32 1.5, %v1342
        %v1344 = vmul.f32 %v1339, %v1343
        %vm1345 = vweird.f32 %v1328
        %vm1346 = vweird.f32 %v1339
        %vm1347 = vmor %vm1345, %vm1346
        %v1348 = vsel %vm1347, %v1339, %v1344
        %v1349 = vmul.f32 %v1315, %v1338
        %v1350 = vmul.f32 %v1316, %v1348
        %v1351 = vld [vmem:[%s7] sm:$0x1]
        %v1353 = vperm.slane %v1351, 0
        %v1355 = vmul.f32 %v1349, %v1353
        %v1356 = vmul.f32 %v1350, %v1353
        %v1357 = vld [vmem:[%s8] sm:$0x1]
        %v1359 = vperm.slane %v1357, 0
        %v1361 = vadd.f32 %v1355, %v1359
        %v1362 = vadd.f32 %v1356, %v1359
        %v1363 = vld [vmem:[%s9] sm:$0xff]
        %v1364 = vld [vmem:[%s9 + $0x8] sm:$0xff]
        %v1365 = vld [vmem:[%s9 + $0x10] sm:$0xff]
        %v1366 = vld [vmem:[%s9 + $0x18] sm:$0xff]
        %v1368 = vsel %vm644, %v1361, 0
        %v1371 = vsel %vm644, %v1362, 0
        %1373 = vmatpush.msra.mxu0 0.0
        %1374 = vmatpush.msra.mxu0 0.0
        %1375 = vmatpush.msra.mxu0 0.0
        %1376 = vmatpush.msra.mxu0 0.0
        %1377 = vmatpush.msra.mxu0 0.0
        %1378 = vmatpush.msra.mxu0 0.0
        %1379 = vmatpush.msra.mxu0 0.0
        %1380 = vmatpush.msra.mxu0 0.0
        %1381 = vmatpush.msra.mxu0 0.0
        %1382 = vmatpush.msra.mxu0 0.0
        %1383 = vmatpush.msra.mxu0 0.0
        %1384 = vmatpush.msra.mxu0 0.0
        %1385 = vmatpush.msra.mxu0 %v1366
        %1386 = vmatpush.msra.mxu0 %v1365
        %1387 = vmatpush.msra.mxu0 %v1364
        %1388 = vmatpush.msra.mxu0 %v1363
        %1389 = vmatmul.f32.gmra.mxu0 %v1368
        %v1390 = vpop.f32.mrf.mxu0
        %v1391 = vadd.f32 0.0, %v1390
        %1392 = vmatmul.f32.gmra.mxu0 %v1371
        %v1393 = vpop.f32.mrf.mxu0
        %v1394 = vadd.f32 0.0, %v1393
        %1395 = vdwg.mxu0
        %v1396 = vld [vmem:[%s10] sm:$0xff]
        %v1397 = vld [vmem:[%s10 + $0x8] sm:$0xff]
        %v1398 = vld [vmem:[%s10 + $0x10] sm:$0xff]
        %v1400 = vsel %vm1265, %v628, 0
        %v1403 = vsel %vm1265, %v629, 0
        %v1406 = vsel %vm1265, %v630, 0
        %v1409 = vsel %vm1265, %v631, 0
        %v1412 = vsel %vm1265, %v632, 0
        %v1415 = vsel %vm1265, %v633, 0
        %v1418 = vsel %vm1265, %v634, 0
        %v1421 = vsel %vm1265, %v635, 0
        %v1424 = vsel %vm1265, %v636, 0
        %v1427 = vsel %vm1265, %v637, 0
        %v1430 = vsel %vm1265, %v638, 0
        %v1433 = vsel %vm1265, %v639, 0
        %v1436 = vsel %vm1265, %v640, 0
        %v1439 = vsel %vm1265, %v641, 0
        %v1442 = vsel %vm1265, %v642, 0
        %v1445 = vsel %vm1265, %v643, 0
        %1447 = vmatpush.msra.mxu0 0.0
        %1448 = vmatpush.msra.mxu0 0.0
        %1449 = vmatpush.msra.mxu0 0.0
        %1450 = vmatpush.msra.mxu0 0.0
        %1451 = vmatpush.msra.mxu0 0.0
        %1452 = vmatpush.msra.mxu0 0.0
        %1453 = vmatpush.msra.mxu0 0.0
        %1454 = vmatpush.msra.mxu0 0.0
        %1455 = vmatpush.msra.mxu0 0.0
        %1456 = vmatpush.msra.mxu0 0.0
        %1457 = vmatpush.msra.mxu0 0.0
        %1458 = vmatpush.msra.mxu0 0.0
        %1459 = vmatpush.msra.mxu0 0.0
        %1460 = vmatpush.msra.mxu0 %v1398
        %1461 = vmatpush.msra.mxu0 %v1397
        %1462 = vmatpush.msra.mxu0 %v1396
        %1463 = vmatmul.f32.gmra.mxu0 %v1400
        %v1464 = vpop.f32.mrf.mxu0
        %v1465 = vadd.f32 0.0, %v1464
        %1466 = vmatmul.f32.gmra.mxu0 %v1403
        %v1467 = vpop.f32.mrf.mxu0
        %v1468 = vadd.f32 0.0, %v1467
        %1469 = vmatmul.f32.gmra.mxu0 %v1406
        %v1470 = vpop.f32.mrf.mxu0
        %v1471 = vadd.f32 0.0, %v1470
        %1472 = vmatmul.f32.gmra.mxu0 %v1409
        %v1473 = vpop.f32.mrf.mxu0
        %v1474 = vadd.f32 0.0, %v1473
        %1475 = vmatmul.f32.gmra.mxu0 %v1412
        %v1476 = vpop.f32.mrf.mxu0
        %v1477 = vadd.f32 0.0, %v1476
        %1478 = vmatmul.f32.gmra.mxu0 %v1415
        %v1479 = vpop.f32.mrf.mxu0
        %v1480 = vadd.f32 0.0, %v1479
        %1481 = vmatmul.f32.gmra.mxu0 %v1418
        %v1482 = vpop.f32.mrf.mxu0
        %v1483 = vadd.f32 0.0, %v1482
        %1484 = vmatmul.f32.gmra.mxu0 %v1421
        %v1485 = vpop.f32.mrf.mxu0
        %v1486 = vadd.f32 0.0, %v1485
        %1487 = vmatmul.f32.gmra.mxu0 %v1424
        %v1488 = vpop.f32.mrf.mxu0
        %v1489 = vadd.f32 0.0, %v1488
        %1490 = vmatmul.f32.gmra.mxu0 %v1427
        %v1491 = vpop.f32.mrf.mxu0
        %v1492 = vadd.f32 0.0, %v1491
        %1493 = vmatmul.f32.gmra.mxu0 %v1430
        %v1494 = vpop.f32.mrf.mxu0
        %v1495 = vadd.f32 0.0, %v1494
        %1496 = vmatmul.f32.gmra.mxu0 %v1433
        %v1497 = vpop.f32.mrf.mxu0
        %v1498 = vadd.f32 0.0, %v1497
        %1499 = vmatmul.f32.gmra.mxu0 %v1436
        %v1500 = vpop.f32.mrf.mxu0
        %v1501 = vadd.f32 0.0, %v1500
        %1502 = vmatmul.f32.gmra.mxu0 %v1439
        %v1503 = vpop.f32.mrf.mxu0
        %v1504 = vadd.f32 0.0, %v1503
        %1505 = vmatmul.f32.gmra.mxu0 %v1442
        %v1506 = vpop.f32.mrf.mxu0
        %v1507 = vadd.f32 0.0, %v1506
        %1508 = vmatmul.f32.gmra.mxu0 %v1445
        %v1509 = vpop.f32.mrf.mxu0
        %v1510 = vadd.f32 0.0, %v1509
        %1511 = vdwg.mxu0
        %v1513 = vsel %vm747, %v1391, 0
        %v1516 = vsel %vm747, %v1394, 0
        %v1519 = vsel %vm747, %v1465, 0
        %v1522 = vsel %vm747, %v1468, 0
        %v1525 = vsel %vm747, %v1471, 0
        %v1528 = vsel %vm747, %v1474, 0
        %v1531 = vsel %vm747, %v1477, 0
        %v1534 = vsel %vm747, %v1480, 0
        %v1537 = vsel %vm747, %v1483, 0
        %v1540 = vsel %vm747, %v1486, 0
        %v1543 = vsel %vm747, %v1489, 0
        %v1546 = vsel %vm747, %v1492, 0
        %v1549 = vsel %vm747, %v1495, 0
        %v1552 = vsel %vm747, %v1498, 0
        %v1555 = vsel %vm747, %v1501, 0
        %v1558 = vsel %vm747, %v1504, 0
        %v1561 = vsel %vm747, %v1507, 0
        %v1564 = vsel %vm747, %v1510, 0
        %1566 = vmatpush.xpose.msra.mxu0 %v1564
        %1567 = vmatpush.xpose.msra.mxu0 %v1561
        %1568 = vmatpush.xpose.msra.mxu0 %v1558
        %1569 = vmatpush.xpose.msra.mxu0 %v1555
        %1570 = vmatpush.xpose.msra.mxu0 %v1552
        %1571 = vmatpush.xpose.msra.mxu0 %v1549
        %1572 = vmatpush.xpose.msra.mxu0 %v1546
        %1573 = vmatpush.xpose.msra.mxu0 %v1543
        %1574 = vmatpush.xpose.msra.mxu0 %v1540
        %1575 = vmatpush.xpose.msra.mxu0 %v1537
        %1576 = vmatpush.xpose.msra.mxu0 %v1534
        %1577 = vmatpush.xpose.msra.mxu0 %v1531
        %1578 = vmatpush.xpose.msra.mxu0 %v1528
        %1579 = vmatpush.xpose.msra.mxu0 %v1525
        %1580 = vmatpush.xpose.msra.mxu0 %v1522
        %1581 = vmatpush.xpose.msra.mxu0 %v1519
        %1582 = vmatmul.f32.gmra.mxu0 %v1513
        %v1583 = vpop.f32.mrf.mxu0
        %v1584 = vadd.f32 0.0, %v1583
        %1585 = vmatmul.f32.gmra.mxu0 %v1516
        %v1586 = vpop.f32.mrf.mxu0
        %v1587 = vadd.f32 0.0, %v1586
        %1588 = vdwg.mxu0
        %1589 = vrot.lane.b32.xlu0 %v1391, 120
        %v1590 = vpop.permute.xlu0 %1589
        %1591 = vrot.lane.b32.xlu0 %v1394, 120
        %v1592 = vpop.permute.xlu0 %1591
        %1593 = vrot.lane.b32.xlu0 %v1465, 120
        %v1594 = vpop.permute.xlu0 %1593
        %1595 = vrot.lane.b32.xlu0 %v1468, 120
        %v1596 = vpop.permute.xlu0 %1595
        %1597 = vrot.lane.b32.xlu0 %v1471, 120
        %v1598 = vpop.permute.xlu0 %1597
        %1599 = vrot.lane.b32.xlu0 %v1474, 120
        %v1600 = vpop.permute.xlu0 %1599
        %1601 = vrot.lane.b32.xlu0 %v1477, 120
        %v1602 = vpop.permute.xlu0 %1601
        %1603 = vrot.lane.b32.xlu0 %v1480, 120
        %v1604 = vpop.permute.xlu0 %1603
        %1605 = vrot.lane.b32.xlu0 %v1483, 120
        %v1606 = vpop.permute.xlu0 %1605
        %1607 = vrot.lane.b32.xlu0 %v1486, 120
        %v1608 = vpop.permute.xlu0 %1607
        %1609 = vrot.lane.b32.xlu0 %v1489, 120
        %v1610 = vpop.permute.xlu0 %1609
        %1611 = vrot.lane.b32.xlu0 %v1492, 120
        %v1612 = vpop.permute.xlu0 %1611
        %1613 = vrot.lane.b32.xlu0 %v1495, 120
        %v1614 = vpop.permute.xlu0 %1613
        %1615 = vrot.lane.b32.xlu0 %v1498, 120
        %v1616 = vpop.permute.xlu0 %1615
        %1617 = vrot.lane.b32.xlu0 %v1501, 120
        %v1618 = vpop.permute.xlu0 %1617
        %1619 = vrot.lane.b32.xlu0 %v1504, 120
        %v1620 = vpop.permute.xlu0 %1619
        %1621 = vrot.lane.b32.xlu0 %v1507, 120
        %v1622 = vpop.permute.xlu0 %1621
        %1623 = vrot.lane.b32.xlu0 %v1510, 120
        %v1624 = vpop.permute.xlu0 %1623
        %v1625 = vsel %vm747, %v1590, 0
        %v1627 = vsel %vm747, %v1592, 0
        %v1629 = vsel %vm747, %v1594, 0
        %v1631 = vsel %vm747, %v1596, 0
        %v1633 = vsel %vm747, %v1598, 0
        %v1635 = vsel %vm747, %v1600, 0
        %v1637 = vsel %vm747, %v1602, 0
        %v1639 = vsel %vm747, %v1604, 0
        %v1641 = vsel %vm747, %v1606, 0
        %v1643 = vsel %vm747, %v1608, 0
        %v1645 = vsel %vm747, %v1610, 0
        %v1647 = vsel %vm747, %v1612, 0
        %v1649 = vsel %vm747, %v1614, 0
        %v1651 = vsel %vm747, %v1616, 0
        %v1653 = vsel %vm747, %v1618, 0
        %v1655 = vsel %vm747, %v1620, 0
        %v1657 = vsel %vm747, %v1622, 0
        %v1659 = vsel %vm747, %v1624, 0
        %1661 = vmatpush.xpose.msra.mxu0 %v1659
        %1662 = vmatpush.xpose.msra.mxu0 %v1657
        %1663 = vmatpush.xpose.msra.mxu0 %v1655
        %1664 = vmatpush.xpose.msra.mxu0 %v1653
        %1665 = vmatpush.xpose.msra.mxu0 %v1651
        %1666 = vmatpush.xpose.msra.mxu0 %v1649
        %1667 = vmatpush.xpose.msra.mxu0 %v1647
        %1668 = vmatpush.xpose.msra.mxu0 %v1645
        %1669 = vmatpush.xpose.msra.mxu0 %v1643
        %1670 = vmatpush.xpose.msra.mxu0 %v1641
        %1671 = vmatpush.xpose.msra.mxu0 %v1639
        %1672 = vmatpush.xpose.msra.mxu0 %v1637
        %1673 = vmatpush.xpose.msra.mxu0 %v1635
        %1674 = vmatpush.xpose.msra.mxu0 %v1633
        %1675 = vmatpush.xpose.msra.mxu0 %v1631
        %1676 = vmatpush.xpose.msra.mxu0 %v1629
        %1677 = vmatmul.f32.gmra.mxu0 %v1625
        %v1678 = vpop.f32.mrf.mxu0
        %v1679 = vadd.f32 0.0, %v1678
        %1680 = vmatmul.f32.gmra.mxu0 %v1627
        %v1681 = vpop.f32.mrf.mxu0
        %v1682 = vadd.f32 0.0, %v1681
        %1683 = vdwg.mxu0
        %1684 = vrot.lane.b32.xlu0 %v1391, 112
        %v1685 = vpop.permute.xlu0 %1684
        %1686 = vrot.lane.b32.xlu0 %v1394, 112
        %v1687 = vpop.permute.xlu0 %1686
        %1688 = vrot.lane.b32.xlu0 %v1465, 112
        %v1689 = vpop.permute.xlu0 %1688
        %1690 = vrot.lane.b32.xlu0 %v1468, 112
        %v1691 = vpop.permute.xlu0 %1690
        %1692 = vrot.lane.b32.xlu0 %v1471, 112
        %v1693 = vpop.permute.xlu0 %1692
        %1694 = vrot.lane.b32.xlu0 %v1474, 112
        %v1695 = vpop.permute.xlu0 %1694
        %1696 = vrot.lane.b32.xlu0 %v1477, 112
        %v1697 = vpop.permute.xlu0 %1696
        %1698 = vrot.lane.b32.xlu0 %v1480, 112
        %v1699 = vpop.permute.xlu0 %1698
        %1700 = vrot.lane.b32.xlu0 %v1483, 112
        %v1701 = vpop.permute.xlu0 %1700
        %1702 = vrot.lane.b32.xlu0 %v1486, 112
        %v1703 = vpop.permute.xlu0 %1702
        %1704 = vrot.lane.b32.xlu0 %v1489, 112
        %v1705 = vpop.permute.xlu0 %1704
        %1706 = vrot.lane.b32.xlu0 %v1492, 112
        %v1707 = vpop.permute.xlu0 %1706
        %1708 = vrot.lane.b32.xlu0 %v1495, 112
        %v1709 = vpop.permute.xlu0 %1708
        %1710 = vrot.lane.b32.xlu0 %v1498, 112
        %v1711 = vpop.permute.xlu0 %1710
        %1712 = vrot.lane.b32.xlu0 %v1501, 112
        %v1713 = vpop.permute.xlu0 %1712
        %1714 = vrot.lane.b32.xlu0 %v1504, 112
        %v1715 = vpop.permute.xlu0 %1714
        %1716 = vrot.lane.b32.xlu0 %v1507, 112
        %v1717 = vpop.permute.xlu0 %1716
        %1718 = vrot.lane.b32.xlu0 %v1510, 112
        %v1719 = vpop.permute.xlu0 %1718
        %v1720 = vsel %vm747, %v1685, 0
        %v1722 = vsel %vm747, %v1687, 0
        %v1724 = vsel %vm747, %v1689, 0
        %v1726 = vsel %vm747, %v1691, 0
        %v1728 = vsel %vm747, %v1693, 0
        %v1730 = vsel %vm747, %v1695, 0
        %v1732 = vsel %vm747, %v1697, 0
        %v1734 = vsel %vm747, %v1699, 0
        %v1736 = vsel %vm747, %v1701, 0
        %v1738 = vsel %vm747, %v1703, 0
        %v1740 = vsel %vm747, %v1705, 0
        %v1742 = vsel %vm747, %v1707, 0
        %v1744 = vsel %vm747, %v1709, 0
        %v1746 = vsel %vm747, %v1711, 0
        %v1748 = vsel %vm747, %v1713, 0
        %v1750 = vsel %vm747, %v1715, 0
        %v1752 = vsel %vm747, %v1717, 0
        %v1754 = vsel %vm747, %v1719, 0
        %1756 = vmatpush.xpose.msra.mxu0 %v1754
        %1757 = vmatpush.xpose.msra.mxu0 %v1752
        %1758 = vmatpush.xpose.msra.mxu0 %v1750
        %1759 = vmatpush.xpose.msra.mxu0 %v1748
        %1760 = vmatpush.xpose.msra.mxu0 %v1746
        %1761 = vmatpush.xpose.msra.mxu0 %v1744
        %1762 = vmatpush.xpose.msra.mxu0 %v1742
        %1763 = vmatpush.xpose.msra.mxu0 %v1740
        %1764 = vmatpush.xpose.msra.mxu0 %v1738
        %1765 = vmatpush.xpose.msra.mxu0 %v1736
        %1766 = vmatpush.xpose.msra.mxu0 %v1734
        %1767 = vmatpush.xpose.msra.mxu0 %v1732
        %1768 = vmatpush.xpose.msra.mxu0 %v1730
        %1769 = vmatpush.xpose.msra.mxu0 %v1728
        %1770 = vmatpush.xpose.msra.mxu0 %v1726
        %1771 = vmatpush.xpose.msra.mxu0 %v1724
        %1772 = vmatmul.f32.gmra.mxu0 %v1720
        %v1773 = vpop.f32.mrf.mxu0
        %v1774 = vadd.f32 0.0, %v1773
        %1775 = vmatmul.f32.gmra.mxu0 %v1722
        %v1776 = vpop.f32.mrf.mxu0
        %v1777 = vadd.f32 0.0, %v1776
        %1778 = vdwg.mxu0
        %1779 = vrot.lane.b32.xlu0 %v1391, 104
        %v1780 = vpop.permute.xlu0 %1779
        %1781 = vrot.lane.b32.xlu0 %v1394, 104
        %v1782 = vpop.permute.xlu0 %1781
        %1783 = vrot.lane.b32.xlu0 %v1465, 104
        %v1784 = vpop.permute.xlu0 %1783
        %1785 = vrot.lane.b32.xlu0 %v1468, 104
        %v1786 = vpop.permute.xlu0 %1785
        %1787 = vrot.lane.b32.xlu0 %v1471, 104
        %v1788 = vpop.permute.xlu0 %1787
        %1789 = vrot.lane.b32.xlu0 %v1474, 104
        %v1790 = vpop.permute.xlu0 %1789
        %1791 = vrot.lane.b32.xlu0 %v1477, 104
        %v1792 = vpop.permute.xlu0 %1791
        %1793 = vrot.lane.b32.xlu0 %v1480, 104
        %v1794 = vpop.permute.xlu0 %1793
        %1795 = vrot.lane.b32.xlu0 %v1483, 104
        %v1796 = vpop.permute.xlu0 %1795
        %1797 = vrot.lane.b32.xlu0 %v1486, 104
        %v1798 = vpop.permute.xlu0 %1797
        %1799 = vrot.lane.b32.xlu0 %v1489, 104
        %v1800 = vpop.permute.xlu0 %1799
        %1801 = vrot.lane.b32.xlu0 %v1492, 104
        %v1802 = vpop.permute.xlu0 %1801
        %1803 = vrot.lane.b32.xlu0 %v1495, 104
        %v1804 = vpop.permute.xlu0 %1803
        %1805 = vrot.lane.b32.xlu0 %v1498, 104
        %v1806 = vpop.permute.xlu0 %1805
        %1807 = vrot.lane.b32.xlu0 %v1501, 104
        %v1808 = vpop.permute.xlu0 %1807
        %1809 = vrot.lane.b32.xlu0 %v1504, 104
        %v1810 = vpop.permute.xlu0 %1809
        %1811 = vrot.lane.b32.xlu0 %v1507, 104
        %v1812 = vpop.permute.xlu0 %1811
        %1813 = vrot.lane.b32.xlu0 %v1510, 104
        %v1814 = vpop.permute.xlu0 %1813
        %v1815 = vsel %vm747, %v1780, 0
        %v1817 = vsel %vm747, %v1782, 0
        %v1819 = vsel %vm747, %v1784, 0
        %v1821 = vsel %vm747, %v1786, 0
        %v1823 = vsel %vm747, %v1788, 0
        %v1825 = vsel %vm747, %v1790, 0
        %v1827 = vsel %vm747, %v1792, 0
        %v1829 = vsel %vm747, %v1794, 0
        %v1831 = vsel %vm747, %v1796, 0
        %v1833 = vsel %vm747, %v1798, 0
        %v1835 = vsel %vm747, %v1800, 0
        %v1837 = vsel %vm747, %v1802, 0
        %v1839 = vsel %vm747, %v1804, 0
        %v1841 = vsel %vm747, %v1806, 0
        %v1843 = vsel %vm747, %v1808, 0
        %v1845 = vsel %vm747, %v1810, 0
        %v1847 = vsel %vm747, %v1812, 0
        %v1849 = vsel %vm747, %v1814, 0
        %1851 = vmatpush.xpose.msra.mxu0 %v1849
        %1852 = vmatpush.xpose.msra.mxu0 %v1847
        %1853 = vmatpush.xpose.msra.mxu0 %v1845
        %1854 = vmatpush.xpose.msra.mxu0 %v1843
        %1855 = vmatpush.xpose.msra.mxu0 %v1841
        %1856 = vmatpush.xpose.msra.mxu0 %v1839
        %1857 = vmatpush.xpose.msra.mxu0 %v1837
        %1858 = vmatpush.xpose.msra.mxu0 %v1835
        %1859 = vmatpush.xpose.msra.mxu0 %v1833
        %1860 = vmatpush.xpose.msra.mxu0 %v1831
        %1861 = vmatpush.xpose.msra.mxu0 %v1829
        %1862 = vmatpush.xpose.msra.mxu0 %v1827
        %1863 = vmatpush.xpose.msra.mxu0 %v1825
        %1864 = vmatpush.xpose.msra.mxu0 %v1823
        %1865 = vmatpush.xpose.msra.mxu0 %v1821
        %1866 = vmatpush.xpose.msra.mxu0 %v1819
        %1867 = vmatmul.f32.gmra.mxu0 %v1815
        %v1868 = vpop.f32.mrf.mxu0
        %v1869 = vadd.f32 0.0, %v1868
        %1870 = vmatmul.f32.gmra.mxu0 %v1817
        %v1871 = vpop.f32.mrf.mxu0
        %v1872 = vadd.f32 0.0, %v1871
        %1873 = vdwg.mxu0
        %v1874 = vmul.f32 %v1584, 0.35355338
        %v1875 = vmul.f32 %v1587, 0.35355338
        %v1876 = vmul.f32 %v1679, 0.35355338
        %v1877 = vmul.f32 %v1682, 0.35355338
        %v1878 = vmul.f32 %v1774, 0.35355338
        %v1879 = vmul.f32 %v1777, 0.35355338
        %v1880 = vmul.f32 %v1869, 0.35355338
        %v1881 = vmul.f32 %v1872, 0.35355338
        %v1882 = vlaneseq
        %v1883 = vand.u32 %v1882, 127
        %vm1884 = vcmp.lt.s32.totalorder %v1883, 8
        %v1885 = vsel %vm1884, 0.0, -1e+30
        %v1886 = vadd.f32 %v1874, %v1885
        %v1887 = vadd.f32 %v1875, %v1885
        %v1888 = vadd.f32 %v1876, %v1885
        %v1889 = vadd.f32 %v1877, %v1885
        %v1890 = vadd.f32 %v1878, %v1885
        %v1891 = vadd.f32 %v1879, %v1885
        %v1892 = vadd.f32 %v1880, %v1885
        %v1893 = vadd.f32 %v1881, %v1885
        %1894 = vmax.xlane.f32.xlu0 %v1886
        %v1895 = vpop.xlane.xlu0 %1894
        %1896 = vmax.xlane.f32.xlu0 %v1887
        %v1897 = vpop.xlane.xlu0 %1896
        %1898 = vmax.xlane.f32.xlu0 %v1888
        %v1899 = vpop.xlane.xlu0 %1898
        %1900 = vmax.xlane.f32.xlu0 %v1889
        %v1901 = vpop.xlane.xlu0 %1900
        %1902 = vmax.xlane.f32.xlu0 %v1890
        %v1903 = vpop.xlane.xlu0 %1902
        %1904 = vmax.xlane.f32.xlu0 %v1891
        %v1905 = vpop.xlane.xlu0 %1904
        %1906 = vmax.xlane.f32.xlu0 %v1892
        %v1907 = vpop.xlane.xlu0 %1906
        %1908 = vmax.xlane.f32.xlu0 %v1893
        %v1909 = vpop.xlane.xlu0 %1908
        %v1910 = vsub.f32 %v1886, %v1895
        %v1911 = vsub.f32 %v1887, %v1897
        %v1912 = vsub.f32 %v1888, %v1899
        %v1913 = vsub.f32 %v1889, %v1901
        %v1914 = vsub.f32 %v1890, %v1903
        %v1915 = vsub.f32 %v1891, %v1905
        %v1916 = vsub.f32 %v1892, %v1907
        %v1917 = vsub.f32 %v1893, %v1909
        %v1918 = vmul.f32 %v1910, 1.442695
        %v1919 = vpow.pop %v1918
        %v1920 = vmul.f32 %v1911, 1.442695
        %v1921 = vpow.pop %v1920
        %v1922 = vmul.f32 %v1912, 1.442695
        %v1923 = vpow.pop %v1922
        %v1924 = vmul.f32 %v1913, 1.442695
        %v1925 = vpow.pop %v1924
        %v1926 = vmul.f32 %v1914, 1.442695
        %v1927 = vpow.pop %v1926
        %v1928 = vmul.f32 %v1915, 1.442695
        %v1929 = vpow.pop %v1928
        %v1930 = vmul.f32 %v1916, 1.442695
        %v1931 = vpow.pop %v1930
        %v1932 = vmul.f32 %v1917, 1.442695
        %v1933 = vpow.pop %v1932
        %1934 = vadd.xlane.f32.xlu0 %v1919
        %v1935 = vpop.xlane.xlu0 %1934
        %1936 = vadd.xlane.f32.xlu0 %v1921
        %v1937 = vpop.xlane.xlu0 %1936
        %1938 = vadd.xlane.f32.xlu0 %v1923
        %v1939 = vpop.xlane.xlu0 %1938
        %1940 = vadd.xlane.f32.xlu0 %v1925
        %v1941 = vpop.xlane.xlu0 %1940
        %1942 = vadd.xlane.f32.xlu0 %v1927
        %v1943 = vpop.xlane.xlu0 %1942
        %1944 = vadd.xlane.f32.xlu0 %v1929
        %v1945 = vpop.xlane.xlu0 %1944
        %1946 = vadd.xlane.f32.xlu0 %v1931
        %v1947 = vpop.xlane.xlu0 %1946
        %1948 = vadd.xlane.f32.xlu0 %v1933
        %v1949 = vpop.xlane.xlu0 %1948
        %v1950 = vrcp.pop %v1935
        %v1951 = vmul.f32 %v1935, %v1950
        %v1952 = vsub.f32 1.0, %v1951
        %v1953 = vmul.f32 %v1950, %v1952
        %v1954 = vadd.f32 %v1950, %v1953
        %vm1955 = vweird.f32 %v1935
        %vm1956 = vweird.f32 %v1950
        %vm1957 = vmor %vm1955, %vm1956
        %v1958 = vsel %vm1957, %v1950, %v1954
        %v1959 = vand.u32 2147483647, %v1935
        %vm1960 = vcmp.eq.f32.partialorder %v1959, 8.507059e+37
        %v1961 = vand.u32 %v1935, 2147483648
        %v1962 = vor.u32 1.1754944e-38, %v1961
        %v1963 = vsel %vm1960, %v1962, %v1958
        %v1964 = vrcp.pop %v1937
        %v1965 = vmul.f32 %v1937, %v1964
        %v1966 = vsub.f32 1.0, %v1965
        %v1967 = vmul.f32 %v1964, %v1966
        %v1968 = vadd.f32 %v1964, %v1967
        %vm1969 = vweird.f32 %v1937
        %vm1970 = vweird.f32 %v1964
        %vm1971 = vmor %vm1969, %vm1970
        %v1972 = vsel %vm1971, %v1964, %v1968
        %v1973 = vand.u32 2147483647, %v1937
        %vm1974 = vcmp.eq.f32.partialorder %v1973, 8.507059e+37
        %v1975 = vand.u32 %v1937, 2147483648
        %v1976 = vor.u32 1.1754944e-38, %v1975
        %v1977 = vsel %vm1974, %v1976, %v1972
        %v1978 = vrcp.pop %v1939
        %v1979 = vmul.f32 %v1939, %v1978
        %v1980 = vsub.f32 1.0, %v1979
        %v1981 = vmul.f32 %v1978, %v1980
        %v1982 = vadd.f32 %v1978, %v1981
        %vm1983 = vweird.f32 %v1939
        %vm1984 = vweird.f32 %v1978
        %vm1985 = vmor %vm1983, %vm1984
        %v1986 = vsel %vm1985, %v1978, %v1982
        %v1987 = vand.u32 2147483647, %v1939
        %vm1988 = vcmp.eq.f32.partialorder %v1987, 8.507059e+37
        %v1989 = vand.u32 %v1939, 2147483648
        %v1990 = vor.u32 1.1754944e-38, %v1989
        %v1991 = vsel %vm1988, %v1990, %v1986
        %v1992 = vrcp.pop %v1941
        %v1993 = vmul.f32 %v1941, %v1992
        %v1994 = vsub.f32 1.0, %v1993
        %v1995 = vmul.f32 %v1992, %v1994
        %v1996 = vadd.f32 %v1992, %v1995
        %vm1997 = vweird.f32 %v1941
        %vm1998 = vweird.f32 %v1992
        %vm1999 = vmor %vm1997, %vm1998
        %v2000 = vsel %vm1999, %v1992, %v1996
        %v2001 = vand.u32 2147483647, %v1941
        %vm2002 = vcmp.eq.f32.partialorder %v2001, 8.507059e+37
        %v2003 = vand.u32 %v1941, 2147483648
        %v2004 = vor.u32 1.1754944e-38, %v2003
        %v2005 = vsel %vm2002, %v2004, %v2000
        %v2006 = vrcp.pop %v1943
        %v2007 = vmul.f32 %v1943, %v2006
        %v2008 = vsub.f32 1.0, %v2007
        %v2009 = vmul.f32 %v2006, %v2008
        %v2010 = vadd.f32 %v2006, %v2009
        %vm2011 = vweird.f32 %v1943
        %vm2012 = vweird.f32 %v2006
        %vm2013 = vmor %vm2011, %vm2012
        %v2014 = vsel %vm2013, %v2006, %v2010
        %v2015 = vand.u32 2147483647, %v1943
        %vm2016 = vcmp.eq.f32.partialorder %v2015, 8.507059e+37
        %v2017 = vand.u32 %v1943, 2147483648
        %v2018 = vor.u32 1.1754944e-38, %v2017
        %v2019 = vsel %vm2016, %v2018, %v2014
        %v2020 = vrcp.pop %v1945
        %v2021 = vmul.f32 %v1945, %v2020
        %v2022 = vsub.f32 1.0, %v2021
        %v2023 = vmul.f32 %v2020, %v2022
        %v2024 = vadd.f32 %v2020, %v2023
        %vm2025 = vweird.f32 %v1945
        %vm2026 = vweird.f32 %v2020
        %vm2027 = vmor %vm2025, %vm2026
        %v2028 = vsel %vm2027, %v2020, %v2024
        %v2029 = vand.u32 2147483647, %v1945
        %vm2030 = vcmp.eq.f32.partialorder %v2029, 8.507059e+37
        %v2031 = vand.u32 %v1945, 2147483648
        %v2032 = vor.u32 1.1754944e-38, %v2031
        %v2033 = vsel %vm2030, %v2032, %v2028
        %v2034 = vrcp.pop %v1947
        %v2035 = vmul.f32 %v1947, %v2034
        %v2036 = vsub.f32 1.0, %v2035
        %v2037 = vmul.f32 %v2034, %v2036
        %v2038 = vadd.f32 %v2034, %v2037
        %vm2039 = vweird.f32 %v1947
        %vm2040 = vweird.f32 %v2034
        %vm2041 = vmor %vm2039, %vm2040
        %v2042 = vsel %vm2041, %v2034, %v2038
        %v2043 = vand.u32 2147483647, %v1947
        %vm2044 = vcmp.eq.f32.partialorder %v2043, 8.507059e+37
        %v2045 = vand.u32 %v1947, 2147483648
        %v2046 = vor.u32 1.1754944e-38, %v2045
        %v2047 = vsel %vm2044, %v2046, %v2042
        %v2048 = vrcp.pop %v1949
        %v2049 = vmul.f32 %v1949, %v2048
        %v2050 = vsub.f32 1.0, %v2049
        %v2051 = vmul.f32 %v2048, %v2050
        %v2052 = vadd.f32 %v2048, %v2051
        %vm2053 = vweird.f32 %v1949
        %vm2054 = vweird.f32 %v2048
        %vm2055 = vmor %vm2053, %vm2054
        %v2056 = vsel %vm2055, %v2048, %v2052
        %v2057 = vand.u32 2147483647, %v1949
        %vm2058 = vcmp.eq.f32.partialorder %v2057, 8.507059e+37
        %v2059 = vand.u32 %v1949, 2147483648
        %v2060 = vor.u32 1.1754944e-38, %v2059
        %v2061 = vsel %vm2058, %v2060, %v2056
        %v2062 = vmul.f32 %v1919, %v1963
        %v2063 = vmul.f32 %v1921, %v1977
        %v2064 = vmul.f32 %v1923, %v1991
        %v2065 = vmul.f32 %v1925, %v2005
        %v2066 = vmul.f32 %v1927, %v2019
        %v2067 = vmul.f32 %v1929, %v2033
        %v2068 = vmul.f32 %v1931, %v2047
        %v2069 = vmul.f32 %v1933, %v2061
        %2070 = vrot.lane.b32.xlu0 %v1465, 96
        %v2071 = vpop.permute.xlu0 %2070
        %2072 = vrot.lane.b32.xlu0 %v1468, 96
        %v2073 = vpop.permute.xlu0 %2072
        %2074 = vrot.lane.b32.xlu0 %v1471, 96
        %v2075 = vpop.permute.xlu0 %2074
        %2076 = vrot.lane.b32.xlu0 %v1474, 96
        %v2077 = vpop.permute.xlu0 %2076
        %2078 = vrot.lane.b32.xlu0 %v1477, 96
        %v2079 = vpop.permute.xlu0 %2078
        %2080 = vrot.lane.b32.xlu0 %v1480, 96
        %v2081 = vpop.permute.xlu0 %2080
        %2082 = vrot.lane.b32.xlu0 %v1483, 96
        %v2083 = vpop.permute.xlu0 %2082
        %2084 = vrot.lane.b32.xlu0 %v1486, 96
        %v2085 = vpop.permute.xlu0 %2084
        %2086 = vrot.lane.b32.xlu0 %v1489, 96
        %v2087 = vpop.permute.xlu0 %2086
        %2088 = vrot.lane.b32.xlu0 %v1492, 96
        %v2089 = vpop.permute.xlu0 %2088
        %2090 = vrot.lane.b32.xlu0 %v1495, 96
        %v2091 = vpop.permute.xlu0 %2090
        %2092 = vrot.lane.b32.xlu0 %v1498, 96
        %v2093 = vpop.permute.xlu0 %2092
        %2094 = vrot.lane.b32.xlu0 %v1501, 96
        %v2095 = vpop.permute.xlu0 %2094
        %2096 = vrot.lane.b32.xlu0 %v1504, 96
        %v2097 = vpop.permute.xlu0 %2096
        %2098 = vrot.lane.b32.xlu0 %v1507, 96
        %v2099 = vpop.permute.xlu0 %2098
        %2100 = vrot.lane.b32.xlu0 %v1510, 96
        %v2101 = vpop.permute.xlu0 %2100
        %2118 = vmatpush.msra.mxu0 %v2101
        %2119 = vmatpush.msra.mxu0 %v2099
        %2120 = vmatpush.msra.mxu0 %v2097
        %2121 = vmatpush.msra.mxu0 %v2095
        %2122 = vmatpush.msra.mxu0 %v2093
        %2123 = vmatpush.msra.mxu0 %v2091
        %2124 = vmatpush.msra.mxu0 %v2089
        %2125 = vmatpush.msra.mxu0 %v2087
        %2126 = vmatpush.msra.mxu0 %v2085
        %2127 = vmatpush.msra.mxu0 %v2083
        %2128 = vmatpush.msra.mxu0 %v2081
        %2129 = vmatpush.msra.mxu0 %v2079
        %2130 = vmatpush.msra.mxu0 %v2077
        %2131 = vmatpush.msra.mxu0 %v2075
        %2132 = vmatpush.msra.mxu0 %v2073
        %2133 = vmatpush.msra.mxu0 %v2071
        %2134 = vmatmul.f32.gmra.mxu0 %v2062
        %v2135 = vpop.f32.mrf.mxu0
        %v2136 = vadd.f32 0.0, %v2135
        %2137 = vmatmul.f32.gmra.mxu0 %v2063
        %v2138 = vpop.f32.mrf.mxu0
        %v2139 = vadd.f32 0.0, %v2138
        %2140 = vdwg.mxu0
        %2141 = vrot.lane.b32.xlu0 %v1465, 88
        %v2142 = vpop.permute.xlu0 %2141
        %2143 = vrot.lane.b32.xlu0 %v1468, 88
        %v2144 = vpop.permute.xlu0 %2143
        %2145 = vrot.lane.b32.xlu0 %v1471, 88
        %v2146 = vpop.permute.xlu0 %2145
        %2147 = vrot.lane.b32.xlu0 %v1474, 88
        %v2148 = vpop.permute.xlu0 %2147
        %2149 = vrot.lane.b32.xlu0 %v1477, 88
        %v2150 = vpop.permute.xlu0 %2149
        %2151 = vrot.lane.b32.xlu0 %v1480, 88
        %v2152 = vpop.permute.xlu0 %2151
        %2153 = vrot.lane.b32.xlu0 %v1483, 88
        %v2154 = vpop.permute.xlu0 %2153
        %2155 = vrot.lane.b32.xlu0 %v1486, 88
        %v2156 = vpop.permute.xlu0 %2155
        %2157 = vrot.lane.b32.xlu0 %v1489, 88
        %v2158 = vpop.permute.xlu0 %2157
        %2159 = vrot.lane.b32.xlu0 %v1492, 88
        %v2160 = vpop.permute.xlu0 %2159
        %2161 = vrot.lane.b32.xlu0 %v1495, 88
        %v2162 = vpop.permute.xlu0 %2161
        %2163 = vrot.lane.b32.xlu0 %v1498, 88
        %v2164 = vpop.permute.xlu0 %2163
        %2165 = vrot.lane.b32.xlu0 %v1501, 88
        %v2166 = vpop.permute.xlu0 %2165
        %2167 = vrot.lane.b32.xlu0 %v1504, 88
        %v2168 = vpop.permute.xlu0 %2167
        %2169 = vrot.lane.b32.xlu0 %v1507, 88
        %v2170 = vpop.permute.xlu0 %2169
        %2171 = vrot.lane.b32.xlu0 %v1510, 88
        %v2172 = vpop.permute.xlu0 %2171
        %2189 = vmatpush.msra.mxu0 %v2172
        %2190 = vmatpush.msra.mxu0 %v2170
        %2191 = vmatpush.msra.mxu0 %v2168
        %2192 = vmatpush.msra.mxu0 %v2166
        %2193 = vmatpush.msra.mxu0 %v2164
        %2194 = vmatpush.msra.mxu0 %v2162
        %2195 = vmatpush.msra.mxu0 %v2160
        %2196 = vmatpush.msra.mxu0 %v2158
        %2197 = vmatpush.msra.mxu0 %v2156
        %2198 = vmatpush.msra.mxu0 %v2154
        %2199 = vmatpush.msra.mxu0 %v2152
        %2200 = vmatpush.msra.mxu0 %v2150
        %2201 = vmatpush.msra.mxu0 %v2148
        %2202 = vmatpush.msra.mxu0 %v2146
        %2203 = vmatpush.msra.mxu0 %v2144
        %2204 = vmatpush.msra.mxu0 %v2142
        %2205 = vmatmul.f32.gmra.mxu0 %v2064
        %v2206 = vpop.f32.mrf.mxu0
        %v2207 = vadd.f32 0.0, %v2206
        %2208 = vmatmul.f32.gmra.mxu0 %v2065
        %v2209 = vpop.f32.mrf.mxu0
        %v2210 = vadd.f32 0.0, %v2209
        %2211 = vdwg.mxu0
        %2212 = vrot.lane.b32.xlu0 %v1465, 80
        %v2213 = vpop.permute.xlu0 %2212
        %2214 = vrot.lane.b32.xlu0 %v1468, 80
        %v2215 = vpop.permute.xlu0 %2214
        %2216 = vrot.lane.b32.xlu0 %v1471, 80
        %v2217 = vpop.permute.xlu0 %2216
        %2218 = vrot.lane.b32.xlu0 %v1474, 80
        %v2219 = vpop.permute.xlu0 %2218
        %2220 = vrot.lane.b32.xlu0 %v1477, 80
        %v2221 = vpop.permute.xlu0 %2220
        %2222 = vrot.lane.b32.xlu0 %v1480, 80
        %v2223 = vpop.permute.xlu0 %2222
        %2224 = vrot.lane.b32.xlu0 %v1483, 80
        %v2225 = vpop.permute.xlu0 %2224
        %2226 = vrot.lane.b32.xlu0 %v1486, 80
        %v2227 = vpop.permute.xlu0 %2226
        %2228 = vrot.lane.b32.xlu0 %v1489, 80
        %v2229 = vpop.permute.xlu0 %2228
        %2230 = vrot.lane.b32.xlu0 %v1492, 80
        %v2231 = vpop.permute.xlu0 %2230
        %2232 = vrot.lane.b32.xlu0 %v1495, 80
        %v2233 = vpop.permute.xlu0 %2232
        %2234 = vrot.lane.b32.xlu0 %v1498, 80
        %v2235 = vpop.permute.xlu0 %2234
        %2236 = vrot.lane.b32.xlu0 %v1501, 80
        %v2237 = vpop.permute.xlu0 %2236
        %2238 = vrot.lane.b32.xlu0 %v1504, 80
        %v2239 = vpop.permute.xlu0 %2238
        %2240 = vrot.lane.b32.xlu0 %v1507, 80
        %v2241 = vpop.permute.xlu0 %2240
        %2242 = vrot.lane.b32.xlu0 %v1510, 80
        %v2243 = vpop.permute.xlu0 %2242
        %2260 = vmatpush.msra.mxu0 %v2243
        %2261 = vmatpush.msra.mxu0 %v2241
        %2262 = vmatpush.msra.mxu0 %v2239
        %2263 = vmatpush.msra.mxu0 %v2237
        %2264 = vmatpush.msra.mxu0 %v2235
        %2265 = vmatpush.msra.mxu0 %v2233
        %2266 = vmatpush.msra.mxu0 %v2231
        %2267 = vmatpush.msra.mxu0 %v2229
        %2268 = vmatpush.msra.mxu0 %v2227
        %2269 = vmatpush.msra.mxu0 %v2225
        %2270 = vmatpush.msra.mxu0 %v2223
        %2271 = vmatpush.msra.mxu0 %v2221
        %2272 = vmatpush.msra.mxu0 %v2219
        %2273 = vmatpush.msra.mxu0 %v2217
        %2274 = vmatpush.msra.mxu0 %v2215
        %2275 = vmatpush.msra.mxu0 %v2213
        %2276 = vmatmul.f32.gmra.mxu0 %v2066
        %v2277 = vpop.f32.mrf.mxu0
        %v2278 = vadd.f32 0.0, %v2277
        %2279 = vmatmul.f32.gmra.mxu0 %v2067
        %v2280 = vpop.f32.mrf.mxu0
        %v2281 = vadd.f32 0.0, %v2280
        %2282 = vdwg.mxu0
        %2283 = vrot.lane.b32.xlu0 %v1465, 72
        %v2284 = vpop.permute.xlu0 %2283
        %2285 = vrot.lane.b32.xlu0 %v1468, 72
        %v2286 = vpop.permute.xlu0 %2285
        %2287 = vrot.lane.b32.xlu0 %v1471, 72
        %v2288 = vpop.permute.xlu0 %2287
        %2289 = vrot.lane.b32.xlu0 %v1474, 72
        %v2290 = vpop.permute.xlu0 %2289
        %2291 = vrot.lane.b32.xlu0 %v1477, 72
        %v2292 = vpop.permute.xlu0 %2291
        %2293 = vrot.lane.b32.xlu0 %v1480, 72
        %v2294 = vpop.permute.xlu0 %2293
        %2295 = vrot.lane.b32.xlu0 %v1483, 72
        %v2296 = vpop.permute.xlu0 %2295
        %2297 = vrot.lane.b32.xlu0 %v1486, 72
        %v2298 = vpop.permute.xlu0 %2297
        %2299 = vrot.lane.b32.xlu0 %v1489, 72
        %v2300 = vpop.permute.xlu0 %2299
        %2301 = vrot.lane.b32.xlu0 %v1492, 72
        %v2302 = vpop.permute.xlu0 %2301
        %2303 = vrot.lane.b32.xlu0 %v1495, 72
        %v2304 = vpop.permute.xlu0 %2303
        %2305 = vrot.lane.b32.xlu0 %v1498, 72
        %v2306 = vpop.permute.xlu0 %2305
        %2307 = vrot.lane.b32.xlu0 %v1501, 72
        %v2308 = vpop.permute.xlu0 %2307
        %2309 = vrot.lane.b32.xlu0 %v1504, 72
        %v2310 = vpop.permute.xlu0 %2309
        %2311 = vrot.lane.b32.xlu0 %v1507, 72
        %v2312 = vpop.permute.xlu0 %2311
        %2313 = vrot.lane.b32.xlu0 %v1510, 72
        %v2314 = vpop.permute.xlu0 %2313
        %2331 = vmatpush.msra.mxu0 %v2314
        %2332 = vmatpush.msra.mxu0 %v2312
        %2333 = vmatpush.msra.mxu0 %v2310
        %2334 = vmatpush.msra.mxu0 %v2308
        %2335 = vmatpush.msra.mxu0 %v2306
        %2336 = vmatpush.msra.mxu0 %v2304
        %2337 = vmatpush.msra.mxu0 %v2302
        %2338 = vmatpush.msra.mxu0 %v2300
        %2339 = vmatpush.msra.mxu0 %v2298
        %2340 = vmatpush.msra.mxu0 %v2296
        %2341 = vmatpush.msra.mxu0 %v2294
        %2342 = vmatpush.msra.mxu0 %v2292
        %2343 = vmatpush.msra.mxu0 %v2290
        %2344 = vmatpush.msra.mxu0 %v2288
        %2345 = vmatpush.msra.mxu0 %v2286
        %2346 = vmatpush.msra.mxu0 %v2284
        %2347 = vmatmul.f32.gmra.mxu0 %v2068
        %v2348 = vpop.f32.mrf.mxu0
        %v2349 = vadd.f32 0.0, %v2348
        %2350 = vmatmul.f32.gmra.mxu0 %v2069
        %v2351 = vpop.f32.mrf.mxu0
        %v2352 = vadd.f32 0.0, %v2351
        %2353 = vdwg.mxu0
        %2356 = vrot.lane.b32.xlu0 %v2207, 8
        %v2357 = vpop.permute.xlu0 %2356
        %2358 = vrot.lane.b32.xlu0 %v2210, 8
        %v2359 = vpop.permute.xlu0 %2358
        %2364 = vrot.lane.b32.xlu0 %v2278, 16
        %v2365 = vpop.permute.xlu0 %2364
        %2366 = vrot.lane.b32.xlu0 %v2281, 16
        %v2367 = vpop.permute.xlu0 %2366
        %2372 = vrot.lane.b32.xlu0 %v2349, 24
        %v2373 = vpop.permute.xlu0 %2372
        %2374 = vrot.lane.b32.xlu0 %v2352, 24
        %v2375 = vpop.permute.xlu0 %2374
        %v2378 = vsel %vm747, %v2136, %v2357
        %v2379 = vsel %vm747, %v2139, %v2359
        %v2380 = vsel %vm904, %v2378, %v2365
        %v2381 = vsel %vm904, %v2379, %v2367
        %v2382 = vsel %vm1265, %v2380, %v2373
        %v2383 = vsel %vm1265, %v2381, %v2375
        %v2384 = vld [vmem:[%s11] sm:$0xff]
        %v2385 = vld [vmem:[%s11 + $0x8] sm:$0xff]
        %v2386 = vld [vmem:[%s11 + $0x10] sm:$0xff]
        %v2387 = vld [vmem:[%s11 + $0x18] sm:$0xff]
        %v2388 = vld [vmem:[%s12] sm:$0x1]
        %v2390 = vperm.slane %v2388, 0
        %v2393 = vsel %vm644, %v2382, 0
        %v2396 = vsel %vm644, %v2383, 0
        %2398 = vmatpush.msra.mxu0 0.0
        %2399 = vmatpush.msra.mxu0 0.0
        %2400 = vmatpush.msra.mxu0 0.0
        %2401 = vmatpush.msra.mxu0 0.0
        %2402 = vmatpush.msra.mxu0 0.0
        %2403 = vmatpush.msra.mxu0 0.0
        %2404 = vmatpush.msra.mxu0 0.0
        %2405 = vmatpush.msra.mxu0 0.0
        %2406 = vmatpush.msra.mxu0 0.0
        %2407 = vmatpush.msra.mxu0 0.0
        %2408 = vmatpush.msra.mxu0 0.0
        %2409 = vmatpush.msra.mxu0 0.0
        %2410 = vmatpush.msra.mxu0 %v2387
        %2411 = vmatpush.msra.mxu0 %v2386
        %2412 = vmatpush.msra.mxu0 %v2385
        %2413 = vmatpush.msra.mxu0 %v2384
        %2414 = vmatmul.f32.gmra.mxu0 %v2393
        %v2415 = vpop.f32.mrf.mxu0
        %v2416 = vadd.f32 %v2390, %v2415
        %2417 = vmatmul.f32.gmra.mxu0 %v2396
        %v2418 = vpop.f32.mrf.mxu0
        %v2419 = vadd.f32 %v2390, %v2418
        %2420 = vdwg.mxu0
        %v2421 = vadd.f32 %v2416, %v1305
        %v2422 = vadd.f32 %v2419, %v1306
        %v2423 = vsel %vm644, %v2421, 0.0
        %2424 = vadd.xlane.f32.xlu0 %v2423
        %v2425 = vpop.xlane.xlu0 %2424
        %v2426 = vsel %vm644, %v2422, 0.0
        %2427 = vadd.xlane.f32.xlu0 %v2426
        %v2428 = vpop.xlane.xlu0 %2427
        %v2429 = vmul.f32 %v2425, %v657
        %v2430 = vmul.f32 %v2428, %v657
        %v2431 = vsub.f32 %v2421, %v2429
        %v2432 = vsub.f32 %v2422, %v2430
        %v2433 = vmul.f32 %v2431, %v2431
        %v2434 = vmul.f32 %v2432, %v2432
        %v2435 = vsel %vm644, %v2433, 0.0
        %2436 = vadd.xlane.f32.xlu0 %v2435
        %v2437 = vpop.xlane.xlu0 %2436
        %v2438 = vsel %vm644, %v2434, 0.0
        %2439 = vadd.xlane.f32.xlu0 %v2438
        %v2440 = vpop.xlane.xlu0 %2439
        %v2441 = vmul.f32 %v2437, %v657
        %v2442 = vmul.f32 %v2440, %v657
        %v2443 = vadd.f32 %v2441, 1e-05
        %v2444 = vadd.f32 %v2442, 1e-05
        %v2445 = vrsqrt.pop %v2443
        %v2446 = vmul.f32 %v2445, %v2443
        %v2447 = vmul.f32 %v2446, %v2445
        %v2448 = vmul.f32 0.5, %v2447
        %v2449 = vsub.f32 1.5, %v2448
        %v2450 = vmul.f32 %v2445, %v2449
        %vm2451 = vweird.f32 %v2443
        %vm2452 = vweird.f32 %v2445
        %vm2453 = vmor %vm2451, %vm2452
        %v2454 = vsel %vm2453, %v2445, %v2450
        %v2455 = vrsqrt.pop %v2444
        %v2456 = vmul.f32 %v2455, %v2444
        %v2457 = vmul.f32 %v2456, %v2455
        %v2458 = vmul.f32 0.5, %v2457
        %v2459 = vsub.f32 1.5, %v2458
        %v2460 = vmul.f32 %v2455, %v2459
        %vm2461 = vweird.f32 %v2444
        %vm2462 = vweird.f32 %v2455
        %vm2463 = vmor %vm2461, %vm2462
        %v2464 = vsel %vm2463, %v2455, %v2460
        %v2465 = vmul.f32 %v2431, %v2454
        %v2466 = vmul.f32 %v2432, %v2464
        %v2467 = vld [vmem:[%s13] sm:$0x1]
        %v2469 = vperm.slane %v2467, 0
        %v2471 = vmul.f32 %v2465, %v2469
        %v2472 = vmul.f32 %v2466, %v2469
        %v2473 = vld [vmem:[%s14] sm:$0x1]
        %v2475 = vperm.slane %v2473, 0
        %v2477 = vadd.f32 %v2471, %v2475
        %v2478 = vadd.f32 %v2472, %v2475
        %v2479 = vld [vmem:[%s15] sm:$0xff]
        %v2480 = vld [vmem:[%s15 + $0x8] sm:$0xff]
        %v2481 = vld [vmem:[%s15 + $0x10] sm:$0xff]
        %v2482 = vld [vmem:[%s15 + $0x18] sm:$0xff]
        %v2483 = vld [vmem:[%s15 + $0x20] sm:$0xff]
        %v2484 = vld [vmem:[%s15 + $0x28] sm:$0xff]
        %v2485 = vld [vmem:[%s15 + $0x30] sm:$0xff]
        %v2486 = vld [vmem:[%s15 + $0x38] sm:$0xff]
        %v2487 = vld [vmem:[%s16] sm:$0x3]
        %v2489 = vperm.slane %v2487, 0
        %v2490 = vperm.slane %v2487, 1
        %v2494 = vsel %vm644, %v2477, 0
        %v2497 = vsel %vm644, %v2478, 0
        %2499 = vmatpush.msra.mxu0 0.0
        %2500 = vmatpush.msra.mxu0 0.0
        %2501 = vmatpush.msra.mxu0 0.0
        %2502 = vmatpush.msra.mxu0 0.0
        %2503 = vmatpush.msra.mxu0 0.0
        %2504 = vmatpush.msra.mxu0 0.0
        %2505 = vmatpush.msra.mxu0 0.0
        %2506 = vmatpush.msra.mxu0 0.0
        %2507 = vmatpush.msra.mxu0 0.0
        %2508 = vmatpush.msra.mxu0 0.0
        %2509 = vmatpush.msra.mxu0 0.0
        %2510 = vmatpush.msra.mxu0 0.0
        %2511 = vmatpush.msra.mxu0 %v2485
        %2512 = vmatpush.msra.mxu0 %v2483
        %2513 = vmatpush.msra.mxu0 %v2481
        %2514 = vmatpush.msra.mxu0 %v2479
        %2515 = vmatmul.f32.gmra.mxu0 %v2494
        %v2516 = vpop.f32.mrf.mxu0
        %v2517 = vadd.f32 %v2489, %v2516
        %2518 = vmatmul.f32.gmra.mxu0 %v2497
        %v2519 = vpop.f32.mrf.mxu0
        %v2520 = vadd.f32 %v2489, %v2519
        %2521 = vdwg.mxu0
        %2522 = vmatpush.msra.mxu0 0.0
        %2523 = vmatpush.msra.mxu0 0.0
        %2524 = vmatpush.msra.mxu0 0.0
        %2525 = vmatpush.msra.mxu0 0.0
        %2526 = vmatpush.msra.mxu0 0.0
        %2527 = vmatpush.msra.mxu0 0.0
        %2528 = vmatpush.msra.mxu0 0.0
        %2529 = vmatpush.msra.mxu0 0.0
        %2530 = vmatpush.msra.mxu0 0.0
        %2531 = vmatpush.msra.mxu0 0.0
        %2532 = vmatpush.msra.mxu0 0.0
        %2533 = vmatpush.msra.mxu0 0.0
        %2534 = vmatpush.msra.mxu0 %v2486
        %2535 = vmatpush.msra.mxu0 %v2484
        %2536 = vmatpush.msra.mxu0 %v2482
        %2537 = vmatpush.msra.mxu0 %v2480
        %2538 = vmatmul.f32.gmra.mxu0 %v2494
        %v2539 = vpop.f32.mrf.mxu0
        %v2540 = vadd.f32 %v2490, %v2539
        %2541 = vmatmul.f32.gmra.mxu0 %v2497
        %v2542 = vpop.f32.mrf.mxu0
        %v2543 = vadd.f32 %v2490, %v2542
        %2544 = vdwg.mxu0
        %v2545 = vmul.f32 %v2540, 0.5
        %v2546 = vmul.f32 %v2543, 0.5
        %v2547 = vmul.f32 %v2540, 0.70710677
        %v2548 = vmul.f32 %v2543, 0.70710677
        %v2549 = vmul.f32 %v2547, %v2547
        %v2550 = vmin.f32 16.0, %v2549
        %v2551 = vmul.f32 %v2550, 2.1237322e-06
        %v2552 = vadd.f32 %v2551, 0.00028619796
        %v2553 = vmul.f32 %v2550, %v2552
        %v2554 = vadd.f32 %v2553, 0.0036580483
        %v2555 = vmul.f32 %v2550, %v2554
        %v2556 = vadd.f32 %v2555, 0.05243302
        %v2557 = vmul.f32 %v2550, %v2556
        %v2558 = vadd.f32 %v2557, 0.18741608
        %v2559 = vmul.f32 %v2550, %v2558
        %v2560 = vadd.f32 %v2559, 1.1283791
        %v2561 = vmul.f32 %v2547, %v2560
        %v2562 = vmul.f32 %v2550, 3.8918573e-05
        %v2563 = vadd.f32 %v2562, 0.001143296
        %v2564 = vmul.f32 %v2550, %v2563
        %v2565 = vadd.f32 %v2564, 0.014752088
        %v2566 = vmul.f32 %v2550, %v2565
        %v2567 = vadd.f32 %v2566, 0.112945676
        %v2568 = vmul.f32 %v2550, %v2567
        %v2569 = vadd.f32 %v2568, 0.4994258
        %v2570 = vmul.f32 %v2550, %v2569
        %v2571 = vadd.f32 %v2570, 1.0
        %v2572 = vrcp.pop %v2571
        %v2573 = vmul.f32 %v2571, %v2572
        %v2574 = vsub.f32 1.0, %v2573
        %v2575 = vmul.f32 %v2572, %v2574
        %v2576 = vadd.f32 %v2572, %v2575
        %vm2577 = vweird.f32 %v2571
        %vm2578 = vweird.f32 %v2572
        %vm2579 = vmor %vm2577, %vm2578
        %v2580 = vsel %vm2579, %v2572, %v2576
        %v2581 = vand.u32 2147483647, %v2571
        %vm2582 = vcmp.eq.f32.partialorder %v2581, 8.507059e+37
        %v2583 = vand.u32 %v2571, 2147483648
        %v2584 = vor.u32 1.1754944e-38, %v2583
        %v2585 = vsel %vm2582, %v2584, %v2580
        %v2586 = vmul.f32 %v2561, %v2585
        %v2587 = vmin.f32 %v2586, 1.0
        %v2588 = vmax.f32 %v2587, -1.0
        %v2589 = vmul.f32 %v2548, %v2548
        %v2590 = vmin.f32 16.0, %v2589
        %v2591 = vmul.f32 %v2590, 2.1237322e-06
        %v2592 = vadd.f32 %v2591, 0.00028619796
        %v2593 = vmul.f32 %v2590, %v2592
        %v2594 = vadd.f32 %v2593, 0.0036580483
        %v2595 = vmul.f32 %v2590, %v2594
        %v2596 = vadd.f32 %v2595, 0.05243302
        %v2597 = vmul.f32 %v2590, %v2596
        %v2598 = vadd.f32 %v2597, 0.18741608
        %v2599 = vmul.f32 %v2590, %v2598
        %v2600 = vadd.f32 %v2599, 1.1283791
        %v2601 = vmul.f32 %v2548, %v2600
        %v2602 = vmul.f32 %v2590, 3.8918573e-05
        %v2603 = vadd.f32 %v2602, 0.001143296
        %v2604 = vmul.f32 %v2590, %v2603
        %v2605 = vadd.f32 %v2604, 0.014752088
        %v2606 = vmul.f32 %v2590, %v2605
        %v2607 = vadd.f32 %v2606, 0.112945676
        %v2608 = vmul.f32 %v2590, %v2607
        %v2609 = vadd.f32 %v2608, 0.4994258
        %v2610 = vmul.f32 %v2590, %v2609
        %v2611 = vadd.f32 %v2610, 1.0
        %v2612 = vrcp.pop %v2611
        %v2613 = vmul.f32 %v2611, %v2612
        %v2614 = vsub.f32 1.0, %v2613
        %v2615 = vmul.f32 %v2612, %v2614
        %v2616 = vadd.f32 %v2612, %v2615
        %vm2617 = vweird.f32 %v2611
        %vm2618 = vweird.f32 %v2612
        %vm2619 = vmor %vm2617, %vm2618
        %v2620 = vsel %vm2619, %v2612, %v2616
        %v2621 = vand.u32 2147483647, %v2611
        %vm2622 = vcmp.eq.f32.partialorder %v2621, 8.507059e+37
        %v2623 = vand.u32 %v2611, 2147483648
        %v2624 = vor.u32 1.1754944e-38, %v2623
        %v2625 = vsel %vm2622, %v2624, %v2620
        %v2626 = vmul.f32 %v2601, %v2625
        %v2627 = vmin.f32 %v2626, 1.0
        %v2628 = vmax.f32 %v2627, -1.0
        %v2629 = vadd.f32 %v2588, 1.0
        %v2630 = vadd.f32 %v2628, 1.0
        %v2631 = vmul.f32 %v2545, %v2629
        %v2632 = vmul.f32 %v2546, %v2630
        %v2633 = vmul.f32 %v2517, %v2631
        %v2634 = vmul.f32 %v2520, %v2632
        %v2635 = vld [vmem:[%s17] sm:$0xff]
        %v2636 = vld [vmem:[%s17 + $0x8] sm:$0xff]
        %v2637 = vld [vmem:[%s17 + $0x10] sm:$0xff]
        %v2638 = vld [vmem:[%s17 + $0x18] sm:$0xff]
        %v2639 = vld [vmem:[%s17 + $0x20] sm:$0xff]
        %v2640 = vld [vmem:[%s17 + $0x28] sm:$0xff]
        %v2641 = vld [vmem:[%s17 + $0x30] sm:$0xff]
        %v2642 = vld [vmem:[%s17 + $0x38] sm:$0xff]
        %v2643 = vld [vmem:[%s17 + $0x40] sm:$0xff]
        %v2644 = vld [vmem:[%s17 + $0x48] sm:$0xff]
        %v2645 = vld [vmem:[%s17 + $0x50] sm:$0xff]
        %v2646 = vld [vmem:[%s17 + $0x58] sm:$0xff]
        %v2647 = vld [vmem:[%s17 + $0x60] sm:$0xff]
        %v2648 = vld [vmem:[%s17 + $0x68] sm:$0xff]
        %v2649 = vld [vmem:[%s17 + $0x70] sm:$0xff]
        %v2650 = vld [vmem:[%s17 + $0x78] sm:$0xff]
        %v2651 = vld [vmem:[%s18] sm:$0x1]
        %v2653 = vperm.slane %v2651, 0
        %2655 = vmatpush.msra.mxu0 %v2650
        %2656 = vmatpush.msra.mxu0 %v2649
        %2657 = vmatpush.msra.mxu0 %v2648
        %2658 = vmatpush.msra.mxu0 %v2647
        %2659 = vmatpush.msra.mxu0 %v2646
        %2660 = vmatpush.msra.mxu0 %v2645
        %2661 = vmatpush.msra.mxu0 %v2644
        %2662 = vmatpush.msra.mxu0 %v2643
        %2663 = vmatpush.msra.mxu0 %v2642
        %2664 = vmatpush.msra.mxu0 %v2641
        %2665 = vmatpush.msra.mxu0 %v2640
        %2666 = vmatpush.msra.mxu0 %v2639
        %2667 = vmatpush.msra.mxu0 %v2638
        %2668 = vmatpush.msra.mxu0 %v2637
        %2669 = vmatpush.msra.mxu0 %v2636
        %2670 = vmatpush.msra.mxu0 %v2635
        %2671 = vmatmul.f32.gmra.mxu0 %v2633
        %v2672 = vpop.f32.mrf.mxu0
        %v2673 = vadd.f32 %v2653, %v2672
        %2674 = vmatmul.f32.gmra.mxu0 %v2634
        %v2675 = vpop.f32.mrf.mxu0
        %v2676 = vadd.f32 %v2653, %v2675
        %2677 = vdwg.mxu0
        %v2678 = vadd.f32 %v2673, %v2421
        %v2679 = vadd.f32 %v2676, %v2422
        %2680 = vst.msk [vmem:[%s612] sm:$0xff] %vm644, %v2678
        %2681 = vst.msk [vmem:[%s612 + $0x8] sm:$0xff] %vm644, %v2679
        %s2682 = sand.u32 %s450, 1
        %s2683 = scalar_lea.sflag [#allocation3], %s2682
        %s2684 = sand.u32 %s450, 1
        %s2685 = smul.addr %s2684, 16
        %s2686 = scalar_lea.vmem [#allocation2], %s2685
        // Predicated region
        $region97: #{tpu_custom_call.1} parent=95 // pred_check
          %p2687 = pneg %p460
        $region98: #{tpu_custom_call.1} parent=95 // pred_check_branch
          %2689 = sbr.rel (%p2687) target = $region100
        $region99: #{tpu_custom_call.1} parent=95 // pred_region
          %s2690 = smul.u32 2, %s33
          %2692 = vsyncadd %s2683, 0
          %s2693 = smul.addr %s2690, 8
          %s2694 = scalar_lea.hbm %s19, %s2693
          %s2695 = sshll.u32 %s2686, 4
          %s2696 = int_to_ptr.vmem [resolvable:$true] %s2695
          %s2697 = sshll.u32 %s2694, 4
          %s2698 = int_to_ptr.hbm [resolvable:$true] %s2697
          %2703 = dma.vmem_to_hbm [thread:$0]  %s2696, 256, %s2698, %s2683, 128, 128, 8
        $region100: #{tpu_custom_call.1} parent=95 // pred_fallthru
          _
      $region96: #{tpu_custom_call.1} parent=5 // pred_fallthru
        _
      %p2704 = scmp.le.s32.totalorder 2, %s28
      // Predicated region
      $region101: #{tpu_custom_call.1} parent=5 // pred_check
        %p2705 = pneg %p2704
      $region102: #{tpu_custom_call.1} parent=5 // pred_check_branch
        %2707 = sbr.rel (%p2705) target = $region104
      $region103: #{tpu_custom_call.1} parent=5 // pred_region
        %s2708 = ssub.s32 %s28, 2
        // Predicated region
        $region105: #{tpu_custom_call.1} parent=103 // pred_check
          %p2709 = pneg %p466
        $region106: #{tpu_custom_call.1} parent=103 // pred_check_branch
          %2711 = sbr.rel (%p2709) target = $region108
        $region107: #{tpu_custom_call.1} parent=103 // pred_region
          %s2712 = sand.u32 %s451, 1
          %s2713 = scalar_lea.sflag [#allocation3], %s2712
          %s2714 = sand.u32 %s451, 1
          %s2715 = smul.addr %s2714, 16
          %s2716 = scalar_lea.vmem [#allocation2], %s2715
          %2718 = dma.done %s2713, 256
        $region108: #{tpu_custom_call.1} parent=103 // pred_fallthru
          _
      $region104: #{tpu_custom_call.1} parent=5 // pred_fallthru
        _
    $region6: #{tpu_custom_call.1} parent=1 // loop_footer
      %s32 = sadd.s32 1, %s28
    $region7: #{tpu_custom_call.1} parent=1 // loop_footer_branch
      %27 = sbr.rel target = $region3
    $region8: #{tpu_custom_call.1} parent=1 // loop_exit
      _
    %2719 = vsyncpa [#allocation3], 1
    %s2720 = scalar_lea.sflag [#allocation3], 1
    %2721 = vsyncpa %s2720, 1

</llo_original>
